<compile_context>
chip_gen: v7x
topology: tpu7x:2x2x1
jax: 0.10.0
libtpu: 0.0.40
codegen_flags: <defaults>
</compile_context>

<pallas_src>
import math

import jax
import jax.numpy as jnp
from jax.experimental import pallas as pl
from jax.experimental.pallas import tpu as pltpu

NUM_HEADS = 8


def encoder_attention_kernel(
    x_ref,       # (Bb, S, E)   activations (f32 or bf16)
    wqkv_ref,    # (H, E, 3D)   per-head fused QKV weight, columns [q_h | k_h | v_h]
    bqkv_ref,    # (H, 1, 3D)   f32
    wo_ref,      # (H, D, E)    out_proj.weight^T split per head
    bo_ref,      # (1, E)       f32
    wl_ref,      # (E, E)       linear_1.weight^T
    bl_ref,      # (1, E)       f32
    o_ref,       # (Bb, S, E)
):
    Bb, S, E = x_ref.shape
    H = NUM_HEADS
    D = E // H
    R = Bb * S
    scale = 1.0 / math.sqrt(D)
    cdt = wqkv_ref.dtype                       # MXU input dtype (f32 or bf16)

    x_in = x_ref[...].reshape(R, E)            # native dtype, leading-dim reshape only
    x_c = x_in.astype(cdt)                     # MXU input (no-op when dtypes match)

    # ---- head-batched QKV projection: output is already head-major -----------------
    x_b = jnp.broadcast_to(x_c[None], (H, R, E))
    qkv = jnp.einsum("hre,hef->hrf", x_b, wqkv_ref[...],
                     preferred_element_type=jnp.float32)            # (H, R, 3D) f32
    qkv = qkv + bqkv_ref[...].astype(jnp.float32)

    # 3 narrow lane slices (q|k|v) + leading-dim regroup (H, Bb*S, D) -> (H*Bb, S, D)
    q = (qkv[..., 0:D] * scale).reshape(H * Bb, S, D).astype(cdt)   # q pre-scaled in f32
    k = qkv[..., D:2 * D].reshape(H * Bb, S, D).astype(cdt)
    v = qkv[..., 2 * D:3 * D].reshape(H * Bb, S, D).astype(cdt)

    # ---- heads-batched attention: one score dot, one softmax, one context dot ------
    s = jnp.einsum("gqd,gkd->gqk", q, k,
                   preferred_element_type=jnp.float32)              # (H*Bb, S, S) f32
    s = s - jnp.max(s, axis=-1, keepdims=True)
    p = jnp.exp(s)
    p = p * pl.reciprocal(jnp.sum(p, axis=-1, keepdims=True), approx=True)
    # TODO(synk): attention-weight dropout omitted (eval-mode identity forward).
    ctx = jnp.einsum("gqk,gkd->gqd", p.astype(cdt), v,
                     preferred_element_type=jnp.float32)            # (H*Bb, S, D) f32

    # ---- out-projection: contract (head, D) via batched matmul + head sum ----------
    ctx_h = ctx.reshape(H, R, D).astype(cdt)                        # leading-dim regroup
    attn = jnp.einsum("hrd,hde->hre", ctx_h, wo_ref[...],
                      preferred_element_type=jnp.float32).sum(axis=0)   # (R, E) f32
    attn = attn + bo_ref[...].astype(jnp.float32)

    # ---- residual 1, final Linear, residual 2 ---------------------------------------
    x_hat = x_in.astype(jnp.float32) + attn
    y = x_hat + jnp.dot(x_hat.astype(cdt), wl_ref[...],
                        preferred_element_type=jnp.float32) \
              + bl_ref[...].astype(jnp.float32)

    o_ref[...] = y.reshape(Bb, S, E).astype(o_ref.dtype)


# ----------------------------------------------------------------------------------
# Tiling / VMEM budgeting
# ----------------------------------------------------------------------------------
def _round_up(v, m):
    return ((v + m - 1) // m) * m


def _padded_bytes(shape, itemsize):
    """Rough VMEM footprint: minor dim padded to 128 lanes, second-minor to 8 sublanes."""
    if len(shape) == 1:
        return _round_up(int(shape[0]), 128) * itemsize
    lead = 1
    for d in shape[:-2]:
        lead *= int(d)
    return lead * _round_up(int(shape[-2]), 8) * _round_up(int(shape[-1]), 128) * itemsize


def _vmem_estimate(block_b, S, E, H, x_isz, w_isz, o_isz):
    """Conservative per-grid-step VMEM footprint (pipeline buffers + intermediates)."""
    D = E // H
    R = block_b * S
    f32 = 4
    total = 0
    # Pipelined (double-buffered) input/output activation tiles.
    total += 2 * _padded_bytes((block_b, S, E), x_isz)
    total += 2 * _padded_bytes((block_b, S, E), o_isz)
    # Weights/biases (constant index maps, but assume default double-buffering).
    total += 2 * (_padded_bytes((H, E, 3 * D), w_isz) + _padded_bytes((H, 1, 3 * D), f32)
                  + _padded_bytes((H, D, E), w_isz) + _padded_bytes((1, E), f32)
                  + _padded_bytes((E, E), w_isz) + _padded_bytes((1, E), f32))
    # In-kernel intermediates.
    total += _padded_bytes((H, R, E), w_isz)               # broadcast x (MXU dtype)
    total += _padded_bytes((H, R, 3 * D), f32)             # qkv
    total += 3 * _padded_bytes((H * block_b, S, D), f32)   # q, k, v
    total += 2 * _padded_bytes((H * block_b, S, S), f32)   # scores + probs
    total += _padded_bytes((H * block_b, S, D), f32)       # ctx
    total += _padded_bytes((H, R, E), f32)                 # per-head out-proj (pre sum)
    total += 3 * _padded_bytes((R, E), f32)                # attn, x_hat, y
    return total


def _vmem_budget():
    """Generation-aware (usable budget, scoped vmem limit) in bytes."""
    cap = 64 * 1024 * 1024                       # worst case: v7x per-TensorCore VMEM
    try:
        cap = int(pltpu.get_tpu_info().vmem_capacity_bytes)
    except Exception:
        pass
    vmem_limit = min(cap * 3 // 4, 96 * 1024 * 1024)
    return int(vmem_limit * 0.85), int(vmem_limit)


def _pick_block_b(B, S, E, H, x_isz, w_isz, o_isz, budget_bytes,
                  x_tile_target=4 * 1024 * 1024):
    """Largest block_b that (a) keeps the full per-step footprint under budget,
    (b) keeps the x tile around a few MiB, and (c) leaves >= 2 grid steps so the
    'parallel' batch axis can shard across v7x's two TensorCores."""
    hi = max(1, B // 2)
    best = 1
    for bb in range(1, hi + 1):
        if bb > 1 and _padded_bytes((bb, S, E), x_isz) > x_tile_target:
            break
        if _vmem_estimate(bb, S, E, H, x_isz, w_isz, o_isz) <= budget_bytes:
            best = bb
    return best


def _const_spec(shape):
    zeros = (0,) * len(shape)
    return pl.BlockSpec(shape, lambda b: zeros)


def encoder_attention_pallas(x, wqkv, bqkv, wo, bo, wl, bl, *, block_b=None):
    B, S, E = x.shape
    H = NUM_HEADS
    assert E % H == 0
    D = E // H

    budget, vmem_limit = _vmem_budget()
    if block_b is None:
        block_b = _pick_block_b(B, S, E, H, x.dtype.itemsize, wqkv.dtype.itemsize,
                                x.dtype.itemsize, budget)
    grid_b = pl.cdiv(B, block_b)
    b_pad = grid_b * block_b
    x_in = x if b_pad == B else jnp.pad(x, ((0, b_pad - B), (0, 0), (0, 0)))

    # Advisory cost estimate so XLA can schedule around the custom call.
    flops = int(2 * B * S * E * 3 * E + 4 * B * H * S * S * D + 4 * B * S * E * E)
    transcendentals = int(B * H * S * S)
    bytes_accessed = int(2 * B * S * E * x.dtype.itemsize + sum(
        int(a.size) * a.dtype.itemsize for a in (wqkv, bqkv, wo, bo, wl, bl)))

    out = pl.pallas_call(
        encoder_attention_kernel,
        out_shape=jax.ShapeDtypeStruct((b_pad, S, E), x.dtype),
        grid_spec=pltpu.PrefetchScalarGridSpec(
            num_scalar_prefetch=0,
            grid=(grid_b,),
            in_specs=[
                pl.BlockSpec((block_b, S, E), lambda b: (b, 0, 0)),   # x
                _const_spec((H, E, 3 * D)),                           # wqkv (per-head)
                _const_spec((H, 1, 3 * D)),                           # bqkv
                _const_spec((H, D, E)),                               # wo  (per-head)
                _const_spec((1, E)),                                  # bo
                _const_spec((E, E)),                                  # wl
                _const_spec((1, E)),                                  # bl
            ],
            out_specs=pl.BlockSpec((block_b, S, E), lambda b: (b, 0, 0)),
        ),
        compiler_params=pltpu.CompilerParams(
            dimension_semantics=("parallel",),
            vmem_limit_bytes=vmem_limit),
        cost_estimate=pl.CostEstimate(flops=flops,
                                      transcendentals=transcendentals,
                                      bytes_accessed=bytes_accessed),
    )(x_in, wqkv, bqkv, wo, bo, wl, bl)

    return out if b_pad == B else out[:B]


# ----------------------------------------------------------------------------------
# Reference + parameter plumbing
# ----------------------------------------------------------------------------------
def reference_forward(x, in_proj_w, in_proj_b, out_proj_w, out_proj_b, lin_w, lin_b):
    """Pure-JAX replica of the PyTorch forward (eval mode) for verification."""
    B, S, E = x.shape
    H = NUM_HEADS
    D = E // H
    q = x @ in_proj_w[:E].T + in_proj_b[:E]
    k = x @ in_proj_w[E:2 * E].T + in_proj_b[E:2 * E]
    v = x @ in_proj_w[2 * E:].T + in_proj_b[2 * E:]

    def split(t):
        return t.reshape(B, S, H, D).transpose(0, 2, 1, 3)

    qh, kh, vh = split(q), split(k), split(v)
    s = jnp.einsum("bhqd,bhkd->bhqk", qh, kh) / math.sqrt(D)
    p = jax.nn.softmax(s, axis=-1)
    o = jnp.einsum("bhqk,bhkd->bhqd", p, vh).transpose(0, 2, 1, 3).reshape(B, S, E)
    attn = o @ out_proj_w.T + out_proj_b
    x_hat = x + attn
    return x_hat + x_hat @ lin_w.T + lin_b


def make_params(key, rnn_size):
    """Deterministic synthetic init with PyTorch nn.MultiheadAttention / nn.Linear shapes."""
    E = rnn_size
    k = jax.random.split(key, 6)
    in_proj_w = jax.random.normal(k[0], (3 * E, E), jnp.float32) * 0.05
    in_proj_b = jax.random.normal(k[1], (3 * E,), jnp.float32) * 0.05
    out_proj_w = jax.random.normal(k[2], (E, E), jnp.float32) * 0.05
    out_proj_b = jax.random.normal(k[3], (E,), jnp.float32) * 0.05
    lin_w = jax.random.normal(k[4], (E, E), jnp.float32) * 0.05
    lin_b = jax.random.normal(k[5], (E,), jnp.float32) * 0.05
    return in_proj_w, in_proj_b, out_proj_w, out_proj_b, lin_w, lin_b


def repack_for_kernel(in_proj_w, in_proj_b, out_proj_w, out_proj_b, lin_w, lin_b,
                      *, compute_dtype=jnp.float32):
    """Host-side repack into head-batched layouts.  bf16 weights feed the MXU natively
    on v5e/v6e/v7x (f32 accumulation); biases stay f32 (added post-accumulation)."""
    E = out_proj_w.shape[0]
    H = NUM_HEADS
    D = E // H
    # in_proj_w: (3E, E) rows ordered [q; k; v], head-major within each block.
    w3 = in_proj_w.reshape(3, H, D, E)
    wqkv = jnp.transpose(w3, (1, 3, 0, 2)).reshape(H, E, 3 * D).astype(compute_dtype)
    b3 = in_proj_b.reshape(3, H, D)
    bqkv = jnp.transpose(b3, (1, 0, 2)).reshape(H, 1, 3 * D).astype(jnp.float32)
    # out_proj: attn = ctx_headmajor @ out_proj_w.T  ->  per-head (D, E) slabs.
    wo = out_proj_w.T.reshape(H, D, E).astype(compute_dtype)
    bo = out_proj_b.reshape(1, E).astype(jnp.float32)
    wl = lin_w.T.astype(compute_dtype)
    bl = lin_b.reshape(1, E).astype(jnp.float32)
    return wqkv, bqkv, wo, bo, wl, bl


if __name__ == "__main__":
    # Small shapes: rnn_size=32 (8 heads, head_dim=4), batch=2, seq=8.
    B, S, E = 2, 8, 32
    key = jax.random.PRNGKey(0)
    kx, kp = jax.random.split(key)
    x = jax.random.normal(kx, (B, S, E), jnp.float32)

    raw_params = make_params(kp, E)
    ref = reference_forward(x, *raw_params)

    # f32 weight path (tolerance covers the approx softmax reciprocal).
    out_f32 = encoder_attention_pallas(
        x, *repack_for_kernel(*raw_params, compute_dtype=jnp.float32))
    out_f32 = jax.block_until_ready(out_f32)
    assert out_f32.shape == (B, S, E)
    err_f32 = float(jnp.max(jnp.abs(out_f32 - ref)))
    assert jnp.allclose(out_f32, ref, rtol=1e-3, atol=1e-3), f"f32 max abs err {err_f32}"

    # bf16 MXU-input path (valid on v5e/v6e/v7x): f32 accumulation, looser tolerance.
    out_bf16 = encoder_attention_pallas(
        x, *repack_for_kernel(*raw_params, compute_dtype=jnp.bfloat16))
    out_bf16 = jax.block_until_ready(out_bf16)
    err_bf16 = float(jnp.max(jnp.abs(out_bf16 - ref)))
    assert jnp.allclose(out_bf16, ref, rtol=3e-2, atol=3e-2), f"bf16 max abs err {err_bf16}"

    print("KERNEL_OK")
</pallas_src>

<mosaic_0001>
module attributes {stable_mosaic.version = 11 : i64} {
  func.func @encoder_attention_kernel(%arg0: i32, %arg1: memref<1x8x32xf32, #tpu.memory_space<vmem>>, %arg2: memref<8x32x12xf32, #tpu.memory_space<vmem>>, %arg3: memref<8x1x12xf32, #tpu.memory_space<vmem>>, %arg4: memref<8x4x32xf32, #tpu.memory_space<vmem>>, %arg5: memref<1x32xf32, #tpu.memory_space<vmem>>, %arg6: memref<32x32xf32, #tpu.memory_space<vmem>>, %arg7: memref<1x32xf32, #tpu.memory_space<vmem>>, %arg8: memref<1x8x32xf32, #tpu.memory_space<vmem>>) attributes {dimension_semantics = [#tpu.dimension_semantics<parallel>], iteration_bounds = array<i64: 2>, scalar_prefetch = 0 : i64, scratch_operands = 0 : i64, tpu.core_type = #tpu.core_type<tc>, window_params = [{transform_indices = @transform_0, window_bounds = array<i64: 1, 8, 32>}, {pipeline_mode = #tpu.pipeline_mode<synchronous>, transform_indices = @transform_1, window_bounds = array<i64: 8, 32, 12>}, {pipeline_mode = #tpu.pipeline_mode<synchronous>, transform_indices = @transform_2, window_bounds = array<i64: 8, 1, 12>}, {pipeline_mode = #tpu.pipeline_mode<synchronous>, transform_indices = @transform_3, window_bounds = array<i64: 8, 4, 32>}, {pipeline_mode = #tpu.pipeline_mode<synchronous>, transform_indices = @transform_4, window_bounds = array<i64: 1, 32>}, {pipeline_mode = #tpu.pipeline_mode<synchronous>, transform_indices = @transform_5, window_bounds = array<i64: 32, 32>}, {pipeline_mode = #tpu.pipeline_mode<synchronous>, transform_indices = @transform_6, window_bounds = array<i64: 1, 32>}, {transform_indices = @transform_7, window_bounds = array<i64: 1, 8, 32>}]} {
    %c0 = arith.constant 0 : index
    %c0_0 = arith.constant 0 : index
    %c0_1 = arith.constant 0 : index
    %0 = vector.load %arg1[%c0, %c0_0, %c0_1] : memref<1x8x32xf32, #tpu.memory_space<vmem>>, vector<1x8x32xf32>
    %1 = vector.shape_cast %0 : vector<1x8x32xf32> to vector<8x32xf32>
    %2 = vector.shape_cast %1 : vector<8x32xf32> to vector<1x8x32xf32>
    %3 = vector.shape_cast %2 : vector<1x8x32xf32> to vector<1x8x32xf32>
    %4 = vector.broadcast %3 : vector<1x8x32xf32> to vector<8x8x32xf32>
    %c0_2 = arith.constant 0 : index
    %c0_3 = arith.constant 0 : index
    %c0_4 = arith.constant 0 : index
    %5 = vector.load %arg2[%c0_2, %c0_3, %c0_4] : memref<8x32x12xf32, #tpu.memory_space<vmem>>, vector<8x32x12xf32>
    "tpu.trace_start"() <{level = 10 : i32, message = "hre,hef->hrf"}> : () -> ()
    %cst = arith.constant dense<0.000000e+00> : vector<8x8x12xf32>
    %6 = tpu.matmul %4, %5, %cst {dimension_numbers = #tpu.dot_dimension_numbers<[2], [1], [1], [2], [0, 0, 0, 1, 1, 2], [0], [0]>} : vector<8x8x32xf32>, vector<8x32x12xf32>, vector<8x8x12xf32> -> vector<8x8x12xf32>
    "tpu.trace_stop"() : () -> ()
    %c0_5 = arith.constant 0 : index
    %c0_6 = arith.constant 0 : index
    %c0_7 = arith.constant 0 : index
    %7 = vector.load %arg3[%c0_5, %c0_6, %c0_7] : memref<8x1x12xf32, #tpu.memory_space<vmem>>, vector<8x1x12xf32>
    %8 = vector.broadcast %7 : vector<8x1x12xf32> to vector<8x8x12xf32>
    %9 = arith.addf %6, %8 : vector<8x8x12xf32>
    %10 = vector.extract_strided_slice %9 {offsets = [0, 0, 0], sizes = [8, 8, 4], strides = [1, 1, 1]} : vector<8x8x12xf32> to vector<8x8x4xf32>
    %cst_8 = arith.constant 5.000000e-01 : f32
    %11 = vector.broadcast %cst_8 : f32 to vector<8x8x4xf32>
    %12 = arith.mulf %10, %11 : vector<8x8x4xf32>
    %13 = vector.extract_strided_slice %9 {offsets = [0, 0, 4], sizes = [8, 8, 4], strides = [1, 1, 1]} : vector<8x8x12xf32> to vector<8x8x4xf32>
    %14 = vector.extract_strided_slice %9 {offsets = [0, 0, 8], sizes = [8, 8, 4], strides = [1, 1, 1]} : vector<8x8x12xf32> to vector<8x8x4xf32>
    "tpu.trace_start"() <{level = 10 : i32, message = "gqd,gkd->gqk"}> : () -> ()
    %cst_9 = arith.constant dense<0.000000e+00> : vector<8x8x8xf32>
    %15 = tpu.matmul %12, %13, %cst_9 {dimension_numbers = #tpu.dot_dimension_numbers<[2], [2], [1], [1], [0, 0, 0, 1, 1, 1], [0], [0]>} : vector<8x8x4xf32>, vector<8x8x4xf32>, vector<8x8x8xf32> -> vector<8x8x8xf32>
    "tpu.trace_stop"() : () -> ()
    %cst_10 = arith.constant dense<0xFF800000> : vector<8x8xf32>
    %16 = vector.multi_reduction <maximumf>, %15, %cst_10 [2] : vector<8x8x8xf32> to vector<8x8xf32>
    %17 = vector.shape_cast %16 : vector<8x8xf32> to vector<8x8x1xf32>
    %18 = vector.broadcast %17 : vector<8x8x1xf32> to vector<8x8x8xf32>
    %19 = arith.subf %15, %18 : vector<8x8x8xf32>
    %20 = math.exp %19 : vector<8x8x8xf32>
    %cst_11 = arith.constant dense<0.000000e+00> : vector<8x8xf32>
    %21 = vector.multi_reduction <add>, %20, %cst_11 [2] : vector<8x8x8xf32> to vector<8x8xf32>
    %22 = vector.shape_cast %21 : vector<8x8xf32> to vector<8x8x1xf32>
    %23 = tpu.reciprocal %22 {approx = true} : vector<8x8x1xf32> -> vector<8x8x1xf32>
    %24 = vector.broadcast %23 : vector<8x8x1xf32> to vector<8x8x8xf32>
    %25 = arith.mulf %20, %24 : vector<8x8x8xf32>
    "tpu.trace_start"() <{level = 10 : i32, message = "gqk,gkd->gqd"}> : () -> ()
    %cst_12 = arith.constant dense<0.000000e+00> : vector<8x8x4xf32>
    %26 = tpu.matmul %25, %14, %cst_12 {dimension_numbers = #tpu.dot_dimension_numbers<[2], [1], [1], [2], [0, 0, 0, 1, 1, 2], [0], [0]>} : vector<8x8x8xf32>, vector<8x8x4xf32>, vector<8x8x4xf32> -> vector<8x8x4xf32>
    "tpu.trace_stop"() : () -> ()
    %c0_13 = arith.constant 0 : index
    %c0_14 = arith.constant 0 : index
    %c0_15 = arith.constant 0 : index
    %27 = vector.load %arg4[%c0_13, %c0_14, %c0_15] : memref<8x4x32xf32, #tpu.memory_space<vmem>>, vector<8x4x32xf32>
    "tpu.trace_start"() <{level = 10 : i32, message = "hrd,hde->hre"}> : () -> ()
    %cst_16 = arith.constant dense<0.000000e+00> : vector<8x8x32xf32>
    %28 = tpu.matmul %26, %27, %cst_16 {dimension_numbers = #tpu.dot_dimension_numbers<[2], [1], [1], [2], [0, 0, 0, 1, 1, 2], [0], [0]>} : vector<8x8x4xf32>, vector<8x4x32xf32>, vector<8x8x32xf32> -> vector<8x8x32xf32>
    "tpu.trace_stop"() : () -> ()
    %cst_17 = arith.constant dense<0.000000e+00> : vector<8x32xf32>
    %29 = vector.multi_reduction <add>, %28, %cst_17 [0] : vector<8x8x32xf32> to vector<8x32xf32>
    %c0_18 = arith.constant 0 : index
    %c0_19 = arith.constant 0 : index
    %30 = vector.load %arg5[%c0_18, %c0_19] : memref<1x32xf32, #tpu.memory_space<vmem>>, vector<1x32xf32>
    %31 = vector.broadcast %30 : vector<1x32xf32> to vector<8x32xf32>
    %32 = arith.addf %29, %31 : vector<8x32xf32>
    %33 = arith.addf %1, %32 : vector<8x32xf32>
    %c0_20 = arith.constant 0 : index
    %c0_21 = arith.constant 0 : index
    %34 = vector.load %arg6[%c0_20, %c0_21] : memref<32x32xf32, #tpu.memory_space<vmem>>, vector<32x32xf32>
    %cst_22 = arith.constant dense<0.000000e+00> : vector<8x32xf32>
    %35 = tpu.matmul %33, %34, %cst_22 {dimension_numbers = #tpu.dot_dimension_numbers<[1], [0], [0], [1], [0, 0, 1, 1], [], []>} : vector<8x32xf32>, vector<32x32xf32>, vector<8x32xf32> -> vector<8x32xf32>
    %36 = arith.addf %33, %35 : vector<8x32xf32>
    %c0_23 = arith.constant 0 : index
    %c0_24 = arith.constant 0 : index
    %37 = vector.load %arg7[%c0_23, %c0_24] : memref<1x32xf32, #tpu.memory_space<vmem>>, vector<1x32xf32>
    %38 = vector.broadcast %37 : vector<1x32xf32> to vector<8x32xf32>
    %39 = arith.addf %36, %38 : vector<8x32xf32>
    %40 = vector.shape_cast %39 : vector<8x32xf32> to vector<1x8x32xf32>
    %c0_25 = arith.constant 0 : index
    %c0_26 = arith.constant 0 : index
    %c0_27 = arith.constant 0 : index
    %41 = vector.load %arg8[%c0_25, %c0_26, %c0_27] : memref<1x8x32xf32, #tpu.memory_space<vmem>>, vector<1x8x32xf32>
    tpu.vector_store %arg8[%c0_25, %c0_26, %c0_27], %40 {strides = array<i32>} : memref<1x8x32xf32, #tpu.memory_space<vmem>>, vector<1x8x32xf32>,
    return
  }
  func.func @transform_0(%arg0: i32) -> (i32, i32, i32) {
    %c0_i32 = arith.constant 0 : i32
    %c0_i32_0 = arith.constant 0 : i32
    %c0_i32_1 = arith.constant 0 : i32
    return %arg0, %c0_i32, %c0_i32_0 : i32, i32, i32
  }
  func.func @transform_1(%arg0: i32) -> (i32, i32, i32) {
    %c0_i32 = arith.constant 0 : i32
    %c0_i32_0 = arith.constant 0 : i32
    %c0_i32_1 = arith.constant 0 : i32
    %c0_i32_2 = arith.constant 0 : i32
    return %c0_i32, %c0_i32_0, %c0_i32_1 : i32, i32, i32
  }
  func.func @transform_2(%arg0: i32) -> (i32, i32, i32) {
    %c0_i32 = arith.constant 0 : i32
    %c0_i32_0 = arith.constant 0 : i32
    %c0_i32_1 = arith.constant 0 : i32
    %c0_i32_2 = arith.constant 0 : i32
    return %c0_i32, %c0_i32_0, %c0_i32_1 : i32, i32, i32
  }
  func.func @transform_3(%arg0: i32) -> (i32, i32, i32) {
    %c0_i32 = arith.constant 0 : i32
    %c0_i32_0 = arith.constant 0 : i32
    %c0_i32_1 = arith.constant 0 : i32
    %c0_i32_2 = arith.constant 0 : i32
    return %c0_i32, %c0_i32_0, %c0_i32_1 : i32, i32, i32
  }
  func.func @transform_4(%arg0: i32) -> (i32, i32) {
    %c0_i32 = arith.constant 0 : i32
    %c0_i32_0 = arith.constant 0 : i32
    %c0_i32_1 = arith.constant 0 : i32
    return %c0_i32, %c0_i32_0 : i32, i32
  }
  func.func @transform_5(%arg0: i32) -> (i32, i32) {
    %c0_i32 = arith.constant 0 : i32
    %c0_i32_0 = arith.constant 0 : i32
    %c0_i32_1 = arith.constant 0 : i32
    return %c0_i32, %c0_i32_0 : i32, i32
  }
  func.func @transform_6(%arg0: i32) -> (i32, i32) {
    %c0_i32 = arith.constant 0 : i32
    %c0_i32_0 = arith.constant 0 : i32
    %c0_i32_1 = arith.constant 0 : i32
    return %c0_i32, %c0_i32_0 : i32, i32
  }
  func.func @transform_7(%arg0: i32) -> (i32, i32, i32) {
    %c0_i32 = arith.constant 0 : i32
    %c0_i32_0 = arith.constant 0 : i32
    %c0_i32_1 = arith.constant 0 : i32
    return %arg0, %c0_i32, %c0_i32_0 : i32, i32, i32
  }
}

</mosaic_0001>

<llo_original>
// kernel: tpu_custom_call.1
$region0: #{tpu_custom_call.1}
  #allocation0 [shape = 'u32[]', space=smem, size = 0x4, offset = 0x4, fixed_abs, tag = 'smem constant byte address 0x4 - core index']
  #allocation1 [shape = 'u32[144,128]{1,0:T(1,128)}', space=vmem, size = 0x12000, scoped, tag = 'internal scratch']
  %s0 = inlined_call_operand.vmem [shape: f32[2,8,32], index: 0, kind: input, shape index: {}]
  %s1 = inlined_call_operand.vmem [shape: f32[8,32,12], index: 1, kind: input, shape index: {}]
  %s2 = inlined_call_operand.vmem [shape: f32[8,1,12], index: 2, kind: input, shape index: {}]
  %s3 = inlined_call_operand.vmem [shape: f32[8,4,32], index: 3, kind: input, shape index: {}]
  %s4 = inlined_call_operand.vmem [shape: f32[1,32], index: 4, kind: input, shape index: {}]
  %s5 = inlined_call_operand.vmem [shape: f32[32,32], index: 5, kind: input, shape index: {}]
  %s6 = inlined_call_operand.vmem [shape: f32[1,32], index: 6, kind: input, shape index: {}]
  %s7 = inlined_call_operand.hbm [shape: f32[2,8,32], index: 7, kind: output, shape index: {}]
  %s8 = sld [smem:[#allocation0]]
  $region61: #{tpu_custom_call.1} parent=0
    _
  %s10 = ssub.s32 1, %s8
  %s11 = scalar_select 0, %s10, %s8
  $region1: #{tpu_custom_call.1} parent=0
    #allocation2 [shape = 'u8[8192]{0}', space=vmem, size = 0x2000, scoped, tag = 'output window, operand 0']
    #allocation3 [shape = 's32[2]{0}', space=sflag, size = 0x8, scoped, tag = 'scoped memory for tpu_custom_call.1']
    %12 = vsyncpa [#allocation3], 0
    %s13 = scalar_lea.sflag [#allocation3], 1
    %14 = vsyncpa %s13, 0
    loop: start=0, step=1, limit=4
    $region2: #{tpu_custom_call.1} parent=1 // loop_pre_header
      _
    $region3: #{tpu_custom_call.1} parent=1 // loop_header
      %s16 = sphi 0, %s20
      %p17 = scmp.ge.s32.totalorder %s16, 4
      %s26 = sphi 0, %s28
      %s29 = sphi 0, %s26
      %s30 = sphi 0, %s29
      %s46 = sphi 0, %s30
      %s50 = sphi 0, %s50
      %s52 = sphi 0, %s50
      %s53 = sphi 0, %s52
      %s67 = sphi 0, %s53
      %s71 = sphi 0, %s71
      %s73 = sphi 0, %s71
      %s74 = sphi 0, %s73
      %s88 = sphi 0, %s74
      %s92 = sphi 0, %s92
      %s94 = sphi 0, %s92
      %s95 = sphi 0, %s94
      %s109 = sphi 0, %s95
      %s113 = sphi 0, %s113
      %s115 = sphi 0, %s113
      %s116 = sphi 0, %s115
      %s130 = sphi 0, %s116
      %s134 = sphi 0, %s134
      %s136 = sphi 0, %s134
      %s137 = sphi 0, %s136
      %s151 = sphi 0, %s137
      %s155 = sphi 0, %s155
      %s157 = sphi 0, %s155
      %s158 = sphi 0, %s157
      %s172 = sphi 0, %s158
      %s178 = sphi 0, %s180
      %s181 = sphi 0, %s178
      %s182 = sphi 0, %s181
      %s198 = sphi 0, %s182
    $region4: #{tpu_custom_call.1} parent=1 // loop_header_branch
      %19 = sbr.rel (%p17) target = $region8
    $region5: #{tpu_custom_call.1} parent=1 // loop_body
      %s21 = ssub.s32 %s16, 1
      %s22 = ssub.s32 %s16, 2
      %s23 = sadd.s32 %s16, 1
      %s24 = ssub.s32 %s16, %s23
      %p25 = scmp.eq.s32.totalorder %s24, 0
      %s27 = sadd.s32 %s26, 1
      %s28 = scalar_select %p25, %s26, %s27
      %p31 = pneg %p25
      %p32 = scmp.eq.s32.totalorder %s16, 1
      %p33 = por %p31, %p32
      %p34 = scmp.ne.s32.totalorder %s26, %s29
      %p35 = scmp.eq.s32.totalorder %s16, 0
      %p36 = por %p34, %p35
      %p37 = scmp.ne.s32.totalorder %s26, %s29
      %p38 = scmp.eq.s32.totalorder %s21, 1
      %p39 = por %p37, %p38
      %p40 = scmp.ne.s32.totalorder %s29, %s30
      %p41 = scmp.eq.s32.totalorder %s21, 0
      %p42 = por %p40, %p41
      %p43 = scmp.ne.s32.totalorder %s29, %s30
      %p44 = scmp.eq.s32.totalorder %s22, 1
      %p45 = por %p43, %p44
      %p47 = scmp.ne.s32.totalorder %s30, %s46
      %p48 = scmp.eq.s32.totalorder %s22, 0
      %p49 = por %p47, %p48
      %s51 = sadd.s32 %s50, 1
      %p54 = scmp.eq.s32.totalorder %s16, 1
      %p55 = scmp.ne.s32.totalorder %s50, %s52
      %p56 = scmp.eq.s32.totalorder %s16, 0
      %p57 = por %p55, %p56
      %p58 = scmp.ne.s32.totalorder %s50, %s52
      %p59 = scmp.eq.s32.totalorder %s21, 1
      %p60 = por %p58, %p59
      %p61 = scmp.ne.s32.totalorder %s52, %s53
      %p62 = scmp.eq.s32.totalorder %s21, 0
      %p63 = por %p61, %p62
      %p64 = scmp.ne.s32.totalorder %s52, %s53
      %p65 = scmp.eq.s32.totalorder %s22, 1
      %p66 = por %p64, %p65
      %p68 = scmp.ne.s32.totalorder %s53, %s67
      %p69 = scmp.eq.s32.totalorder %s22, 0
      %p70 = por %p68, %p69
      %s72 = sadd.s32 %s71, 1
      %p75 = scmp.eq.s32.totalorder %s16, 1
      %p76 = scmp.ne.s32.totalorder %s71, %s73
      %p77 = scmp.eq.s32.totalorder %s16, 0
      %p78 = por %p76, %p77
      %p79 = scmp.ne.s32.totalorder %s71, %s73
      %p80 = scmp.eq.s32.totalorder %s21, 1
      %p81 = por %p79, %p80
      %p82 = scmp.ne.s32.totalorder %s73, %s74
      %p83 = scmp.eq.s32.totalorder %s21, 0
      %p84 = por %p82, %p83
      %p85 = scmp.ne.s32.totalorder %s73, %s74
      %p86 = scmp.eq.s32.totalorder %s22, 1
      %p87 = por %p85, %p86
      %p89 = scmp.ne.s32.totalorder %s74, %s88
      %p90 = scmp.eq.s32.totalorder %s22, 0
      %p91 = por %p89, %p90
      %s93 = sadd.s32 %s92, 1
      %p96 = scmp.eq.s32.totalorder %s16, 1
      %p97 = scmp.ne.s32.totalorder %s92, %s94
      %p98 = scmp.eq.s32.totalorder %s16, 0
      %p99 = por %p97, %p98
      %p100 = scmp.ne.s32.totalorder %s92, %s94
      %p101 = scmp.eq.s32.totalorder %s21, 1
      %p102 = por %p100, %p101
      %p103 = scmp.ne.s32.totalorder %s94, %s95
      %p104 = scmp.eq.s32.totalorder %s21, 0
      %p105 = por %p103, %p104
      %p106 = scmp.ne.s32.totalorder %s94, %s95
      %p107 = scmp.eq.s32.totalorder %s22, 1
      %p108 = por %p106, %p107
      %p110 = scmp.ne.s32.totalorder %s95, %s109
      %p111 = scmp.eq.s32.totalorder %s22, 0
      %p112 = por %p110, %p111
      %s114 = sadd.s32 %s113, 1
      %p117 = scmp.eq.s32.totalorder %s16, 1
      %p118 = scmp.ne.s32.totalorder %s113, %s115
      %p119 = scmp.eq.s32.totalorder %s16, 0
      %p120 = por %p118, %p119
      %p121 = scmp.ne.s32.totalorder %s113, %s115
      %p122 = scmp.eq.s32.totalorder %s21, 1
      %p123 = por %p121, %p122
      %p124 = scmp.ne.s32.totalorder %s115, %s116
      %p125 = scmp.eq.s32.totalorder %s21, 0
      %p126 = por %p124, %p125
      %p127 = scmp.ne.s32.totalorder %s115, %s116
      %p128 = scmp.eq.s32.totalorder %s22, 1
      %p129 = por %p127, %p128
      %p131 = scmp.ne.s32.totalorder %s116, %s130
      %p132 = scmp.eq.s32.totalorder %s22, 0
      %p133 = por %p131, %p132
      %s135 = sadd.s32 %s134, 1
      %p138 = scmp.eq.s32.totalorder %s16, 1
      %p139 = scmp.ne.s32.totalorder %s134, %s136
      %p140 = scmp.eq.s32.totalorder %s16, 0
      %p141 = por %p139, %p140
      %p142 = scmp.ne.s32.totalorder %s134, %s136
      %p143 = scmp.eq.s32.totalorder %s21, 1
      %p144 = por %p142, %p143
      %p145 = scmp.ne.s32.totalorder %s136, %s137
      %p146 = scmp.eq.s32.totalorder %s21, 0
      %p147 = por %p145, %p146
      %p148 = scmp.ne.s32.totalorder %s136, %s137
      %p149 = scmp.eq.s32.totalorder %s22, 1
      %p150 = por %p148, %p149
      %p152 = scmp.ne.s32.totalorder %s137, %s151
      %p153 = scmp.eq.s32.totalorder %s22, 0
      %p154 = por %p152, %p153
      %s156 = sadd.s32 %s155, 1
      %p159 = scmp.eq.s32.totalorder %s16, 1
      %p160 = scmp.ne.s32.totalorder %s155, %s157
      %p161 = scmp.eq.s32.totalorder %s16, 0
      %p162 = por %p160, %p161
      %p163 = scmp.ne.s32.totalorder %s155, %s157
      %p164 = scmp.eq.s32.totalorder %s21, 1
      %p165 = por %p163, %p164
      %p166 = scmp.ne.s32.totalorder %s157, %s158
      %p167 = scmp.eq.s32.totalorder %s21, 0
      %p168 = por %p166, %p167
      %p169 = scmp.ne.s32.totalorder %s157, %s158
      %p170 = scmp.eq.s32.totalorder %s22, 1
      %p171 = por %p169, %p170
      %p173 = scmp.ne.s32.totalorder %s158, %s172
      %p174 = scmp.eq.s32.totalorder %s22, 0
      %p175 = por %p173, %p174
      %s176 = ssub.s32 %s16, %s23
      %p177 = scmp.eq.s32.totalorder %s176, 0
      %s179 = sadd.s32 %s178, 1
      %s180 = scalar_select %p177, %s178, %s179
      %p183 = pneg %p177
      %p184 = scmp.eq.s32.totalorder %s16, 1
      %p185 = por %p183, %p184
      %p186 = scmp.ne.s32.totalorder %s178, %s181
      %p187 = scmp.eq.s32.totalorder %s16, 0
      %p188 = por %p186, %p187
      %p189 = scmp.ne.s32.totalorder %s178, %s181
      %p190 = scmp.eq.s32.totalorder %s21, 1
      %p191 = por %p189, %p190
      %p192 = scmp.ne.s32.totalorder %s181, %s182
      %p193 = scmp.eq.s32.totalorder %s21, 0
      %p194 = por %p192, %p193
      %p195 = scmp.ne.s32.totalorder %s181, %s182
      %p196 = scmp.eq.s32.totalorder %s22, 1
      %p197 = por %p195, %p196
      %p199 = scmp.ne.s32.totalorder %s182, %s198
      %p200 = scmp.eq.s32.totalorder %s22, 0
      %p201 = por %p199, %p200
      %p202 = scmp.le.s32.totalorder 1, %s16
      %p203 = scmp.lt.s32.totalorder %s16, 3
      %p204 = pnand %p202, %p203
      %p205 = pneg %p204
      // Predicated region
      $region9: #{tpu_custom_call.1} parent=5 // pred_check
        _
      $region10: #{tpu_custom_call.1} parent=5 // pred_check_branch
        %207 = sbr.rel (%p204) target = $region12
      $region11: #{tpu_custom_call.1} parent=5 // pred_region
        %s208 = ssub.s32 %s16, 1
        // Predicated region
        $region13: #{tpu_custom_call.1} parent=11 // pred_check
          %p209 = pneg %p63
        $region14: #{tpu_custom_call.1} parent=11 // pred_check_branch
          %211 = sbr.rel (%p209) target = $region16
        $region15: #{tpu_custom_call.1} parent=11 // pred_region
          _
        $region16: #{tpu_custom_call.1} parent=11 // pred_fallthru
          _
        // Predicated region
        $region17: #{tpu_custom_call.1} parent=11 // pred_check
          %p212 = pneg %p84
        $region18: #{tpu_custom_call.1} parent=11 // pred_check_branch
          %214 = sbr.rel (%p212) target = $region20
        $region19: #{tpu_custom_call.1} parent=11 // pred_region
          _
        $region20: #{tpu_custom_call.1} parent=11 // pred_fallthru
          _
        // Predicated region
        $region21: #{tpu_custom_call.1} parent=11 // pred_check
          %p215 = pneg %p105
        $region22: #{tpu_custom_call.1} parent=11 // pred_check_branch
          %217 = sbr.rel (%p215) target = $region24
        $region23: #{tpu_custom_call.1} parent=11 // pred_region
          _
        $region24: #{tpu_custom_call.1} parent=11 // pred_fallthru
          _
        // Predicated region
        $region25: #{tpu_custom_call.1} parent=11 // pred_check
          %p218 = pneg %p126
        $region26: #{tpu_custom_call.1} parent=11 // pred_check_branch
          %220 = sbr.rel (%p218) target = $region28
        $region27: #{tpu_custom_call.1} parent=11 // pred_region
          _
        $region28: #{tpu_custom_call.1} parent=11 // pred_fallthru
          _
        // Predicated region
        $region29: #{tpu_custom_call.1} parent=11 // pred_check
          %p221 = pneg %p147
        $region30: #{tpu_custom_call.1} parent=11 // pred_check_branch
          %223 = sbr.rel (%p221) target = $region32
        $region31: #{tpu_custom_call.1} parent=11 // pred_region
          _
        $region32: #{tpu_custom_call.1} parent=11 // pred_fallthru
          _
        // Predicated region
        $region33: #{tpu_custom_call.1} parent=11 // pred_check
          %p224 = pneg %p168
        $region34: #{tpu_custom_call.1} parent=11 // pred_check_branch
          %226 = sbr.rel (%p224) target = $region36
        $region35: #{tpu_custom_call.1} parent=11 // pred_region
          _
        $region36: #{tpu_custom_call.1} parent=11 // pred_fallthru
          _
      $region12: #{tpu_custom_call.1} parent=5 // pred_fallthru
        _
      %p227 = scmp.lt.s32.totalorder %s16, 2
      // Predicated region
      $region37: #{tpu_custom_call.1} parent=5 // pred_check
        %p228 = pneg %p227
      $region38: #{tpu_custom_call.1} parent=5 // pred_check_branch
        %230 = sbr.rel (%p228) target = $region40
      $region39: #{tpu_custom_call.1} parent=5 // pred_region
        // Predicated region
        $region41: #{tpu_custom_call.1} parent=39 // pred_check
          %p231 = pneg %p36
        $region42: #{tpu_custom_call.1} parent=39 // pred_check_branch
          %233 = sbr.rel (%p231) target = $region44
        $region43: #{tpu_custom_call.1} parent=39 // pred_region
          %p234 = scmp.lt.s32.totalorder %s16, 1
          %s235 = scalar_select %p234, %s16, 1
          %s236 = smul.addr %s235, 8
          %s237 = scalar_lea.vmem %s0, %s236
        $region44: #{tpu_custom_call.1} parent=39 // pred_fallthru
          _
      $region40: #{tpu_custom_call.1} parent=5 // pred_fallthru
        _
      %p238 = scmp.le.s32.totalorder 1, %s16
      %p239 = scmp.lt.s32.totalorder %s16, 3
      %p240 = pnand %p238, %p239
      %p241 = pneg %p240
      // Predicated region
      $region45: #{tpu_custom_call.1} parent=5 // pred_check
        _
      $region46: #{tpu_custom_call.1} parent=5 // pred_check_branch
        %243 = sbr.rel (%p240) target = $region48
      $region47: #{tpu_custom_call.1} parent=5 // pred_region
        %s244 = ssub.s32 %s16, 1
        %p245 = scmp.lt.s32.totalorder %s21, 1
        %s246 = scalar_select %p245, %s21, 1
        %s247 = smul.addr %s246, 8
        %s248 = scalar_lea.vmem %s0, %s247
        %p249 = pneg %p42
        %p250 = pneg %p39
        %p251 = pneg %p63
        %p252 = pneg %p60
        %p253 = pneg %p84
        %p254 = pneg %p81
        %p255 = pneg %p105
        %p256 = pneg %p102
        %p257 = pneg %p126
        %p258 = pneg %p123
        %p259 = pneg %p147
        %p260 = pneg %p144
        %p261 = pneg %p168
        %p262 = pneg %p165
        %p263 = pneg %p194
        %p264 = pneg %p191
        %s265 = sand.u32 %s181, 1
        %s266 = scalar_lea.sflag [#allocation3], %s265
        %s267 = sand.u32 %s181, 1
        %s268 = smul.addr %s267, 8
        %s269 = scalar_lea.vmem [#allocation2], %s268
        %p270 = scmp.lt.s32.totalorder %s21, 1
        %s271 = scalar_select %p270, %s21, 1
        %s272 = smul.addr %s271, 8
        %s273 = scalar_lea.vmem %s0, %s272
        %v274 = vld [vmem:[%s273] sm:$0xff]
        %v275 = vld [vmem:[%s1] sm:$0xff]
        %v276 = vld [vmem:[%s1 + $0x8] sm:$0xff]
        %v277 = vld [vmem:[%s1 + $0x10] sm:$0xff]
        %v278 = vld [vmem:[%s1 + $0x18] sm:$0xff]
        %v279 = vld [vmem:[%s1 + $0x20] sm:$0xff]
        %v280 = vld [vmem:[%s1 + $0x28] sm:$0xff]
        %v281 = vld [vmem:[%s1 + $0x30] sm:$0xff]
        %v282 = vld [vmem:[%s1 + $0x38] sm:$0xff]
        %v283 = vld [vmem:[%s1 + $0x40] sm:$0xff]
        %v284 = vld [vmem:[%s1 + $0x48] sm:$0xff]
        %v285 = vld [vmem:[%s1 + $0x50] sm:$0xff]
        %v286 = vld [vmem:[%s1 + $0x58] sm:$0xff]
        %v287 = vld [vmem:[%s1 + $0x60] sm:$0xff]
        %v288 = vld [vmem:[%s1 + $0x68] sm:$0xff]
        %v289 = vld [vmem:[%s1 + $0x70] sm:$0xff]
        %v290 = vld [vmem:[%s1 + $0x78] sm:$0xff]
        %v291 = vld [vmem:[%s1 + $0x80] sm:$0xff]
        %v292 = vld [vmem:[%s1 + $0x88] sm:$0xff]
        %v293 = vld [vmem:[%s1 + $0x90] sm:$0xff]
        %v294 = vld [vmem:[%s1 + $0x98] sm:$0xff]
        %v295 = vld [vmem:[%s1 + $0xa0] sm:$0xff]
        %v296 = vld [vmem:[%s1 + $0xa8] sm:$0xff]
        %v297 = vld [vmem:[%s1 + $0xb0] sm:$0xff]
        %v298 = vld [vmem:[%s1 + $0xb8] sm:$0xff]
        %v299 = vld [vmem:[%s1 + $0xc0] sm:$0xff]
        %v300 = vld [vmem:[%s1 + $0xc8] sm:$0xff]
        %v301 = vld [vmem:[%s1 + $0xd0] sm:$0xff]
        %v302 = vld [vmem:[%s1 + $0xd8] sm:$0xff]
        %v303 = vld [vmem:[%s1 + $0xe0] sm:$0xff]
        %v304 = vld [vmem:[%s1 + $0xe8] sm:$0xff]
        %v305 = vld [vmem:[%s1 + $0xf0] sm:$0xff]
        %v306 = vld [vmem:[%s1 + $0xf8] sm:$0xff]
        %v307 = vld [vmem:[%s2] sm:$0x1]
        %v308 = vld [vmem:[%s2 + $0x1] sm:$0x1]
        %v309 = vld [vmem:[%s2 + $0x2] sm:$0x1]
        %v310 = vld [vmem:[%s2 + $0x3] sm:$0x1]
        %v311 = vld [vmem:[%s2 + $0x4] sm:$0x1]
        %v312 = vld [vmem:[%s2 + $0x5] sm:$0x1]
        %v313 = vld [vmem:[%s2 + $0x6] sm:$0x1]
        %v314 = vld [vmem:[%s2 + $0x7] sm:$0x1]
        %v323 = vlaneseq
        %v324 = vshrl.u32 %v323, 7
        %v325 = vsub.s32 0, %v324
        %v326 = vrot.slane %v307, %v325
        %v327 = vlaneseq
        %v328 = vshrl.u32 %v327, 7
        %v329 = vsub.s32 0, %v328
        %v330 = vrot.slane %v308, %v329
        %v331 = vlaneseq
        %v332 = vshrl.u32 %v331, 7
        %v333 = vsub.s32 0, %v332
        %v334 = vrot.slane %v309, %v333
        %v335 = vlaneseq
        %v336 = vshrl.u32 %v335, 7
        %v337 = vsub.s32 0, %v336
        %v338 = vrot.slane %v310, %v337
        %v339 = vlaneseq
        %v340 = vshrl.u32 %v339, 7
        %v341 = vsub.s32 0, %v340
        %v342 = vrot.slane %v311, %v341
        %v343 = vlaneseq
        %v344 = vshrl.u32 %v343, 7
        %v345 = vsub.s32 0, %v344
        %v346 = vrot.slane %v312, %v345
        %v347 = vlaneseq
        %v348 = vshrl.u32 %v347, 7
        %v349 = vsub.s32 0, %v348
        %v350 = vrot.slane %v313, %v349
        %v351 = vlaneseq
        %v352 = vshrl.u32 %v351, 7
        %v353 = vsub.s32 0, %v352
        %v354 = vrot.slane %v314, %v353
        %vm363 = vcmask 261120
        %v365 = vsel %vm363, %v274, 0
        %367 = vmatprep.subr.mxu0 0.0
        %368 = vmatpush1.msra.mxu0 %v275
        %369 = vmatprep.subr.mxu0 0.0
        %370 = vmatpush1.msra.mxu0 %v276
        %371 = vmatprep.subr.mxu0 0.0
        %372 = vmatpush1.msra.mxu0 %v277
        %373 = vmatprep.subr.mxu0 0.0
        %374 = vmatpush1.msra.mxu0 %v278
        %375 = vmatprep.subr.mxu0 0.0
        %376 = vmatpush1.msra.mxu0 0.0
        %377 = vmatprep.subr.mxu0 0.0
        %378 = vmatpush1.msra.mxu0 0.0
        %379 = vmatprep.subr.mxu0 0.0
        %380 = vmatpush1.msra.mxu0 0.0
        %381 = vmatprep.subr.mxu0 0.0
        %382 = vmatpush1.msra.mxu0 0.0
        %383 = vmatprep.subr.mxu0 0.0
        %384 = vmatpush1.msra.mxu0 0.0
        %385 = vmatprep.subr.mxu0 0.0
        %386 = vmatpush1.msra.mxu0 0.0
        %387 = vmatprep.subr.mxu0 0.0
        %388 = vmatpush1.msra.mxu0 0.0
        %389 = vmatprep.subr.mxu0 0.0
        %390 = vmatpush1.msra.mxu0 0.0
        %391 = vmatprep.subr.mxu0 0.0
        %392 = vmatpush1.msra.mxu0 0.0
        %393 = vmatprep.subr.mxu0 0.0
        %394 = vmatpush1.msra.mxu0 0.0
        %395 = vmatprep.subr.mxu0 0.0
        %396 = vmatpush1.msra.mxu0 0.0
        %397 = vmatprep.subr.mxu0 0.0
        %398 = vmatpush1.msra.mxu0 0.0
        %399 = vmatprep.subr.mxu0 0.0
        %400 = vmatpush1.msra.mxu0 0.0
        %401 = vmatprep.subr.mxu0 0.0
        %402 = vmatpush1.msra.mxu0 0.0
        %403 = vmatprep.subr.mxu0 0.0
        %404 = vmatpush1.msra.mxu0 0.0
        %405 = vmatprep.subr.mxu0 0.0
        %406 = vmatpush1.msra.mxu0 0.0
        %407 = vmatprep.subr.mxu0 0.0
        %408 = vmatpush1.msra.mxu0 0.0
        %409 = vmatprep.subr.mxu0 0.0
        %410 = vmatpush1.msra.mxu0 0.0
        %411 = vmatprep.subr.mxu0 0.0
        %412 = vmatpush1.msra.mxu0 0.0
        %413 = vmatprep.subr.mxu0 0.0
        %414 = vmatpush1.msra.mxu0 0.0
        %415 = vmatprep.subr.mxu0 0.0
        %416 = vmatpush1.msra.mxu0 0.0
        %417 = vmatprep.subr.mxu0 0.0
        %418 = vmatpush1.msra.mxu0 0.0
        %419 = vmatprep.subr.mxu0 0.0
        %420 = vmatpush1.msra.mxu0 0.0
        %421 = vmatprep.subr.mxu0 0.0
        %422 = vmatpush1.msra.mxu0 0.0
        %423 = vmatprep.subr.mxu0 0.0
        %424 = vmatpush1.msra.mxu0 0.0
        %425 = vmatprep.subr.mxu0 0.0
        %426 = vmatpush1.msra.mxu0 0.0
        %427 = vmatprep.subr.mxu0 0.0
        %428 = vmatpush1.msra.mxu0 0.0
        %429 = vmatprep.subr.mxu0 0.0
        %430 = vmatpush1.msra.mxu0 0.0
        %431 = vmatprep.mubr.f32.mxu0 0.0
        %432 = vmatmul.mubr.f32.gmra.mrb[0].mxu0 %v365
        %v433 = vpop.f32.mrb[0].mxu0
        %v434 = vadd.f32 %v326, %v433
        %v435 = vpop.f32.mrb[0].mxu0
        %436 = vdwg.mxu0
        %437 = vmatprep.subr.mxu0 0.0
        %438 = vmatpush1.msra.mxu0 %v279
        %439 = vmatprep.subr.mxu0 0.0
        %440 = vmatpush1.msra.mxu0 %v280
        %441 = vmatprep.subr.mxu0 0.0
        %442 = vmatpush1.msra.mxu0 %v281
        %443 = vmatprep.subr.mxu0 0.0
        %444 = vmatpush1.msra.mxu0 %v282
        %445 = vmatprep.subr.mxu0 0.0
        %446 = vmatpush1.msra.mxu0 0.0
        %447 = vmatprep.subr.mxu0 0.0
        %448 = vmatpush1.msra.mxu0 0.0
        %449 = vmatprep.subr.mxu0 0.0
        %450 = vmatpush1.msra.mxu0 0.0
        %451 = vmatprep.subr.mxu0 0.0
        %452 = vmatpush1.msra.mxu0 0.0
        %453 = vmatprep.subr.mxu0 0.0
        %454 = vmatpush1.msra.mxu0 0.0
        %455 = vmatprep.subr.mxu0 0.0
        %456 = vmatpush1.msra.mxu0 0.0
        %457 = vmatprep.subr.mxu0 0.0
        %458 = vmatpush1.msra.mxu0 0.0
        %459 = vmatprep.subr.mxu0 0.0
        %460 = vmatpush1.msra.mxu0 0.0
        %461 = vmatprep.subr.mxu0 0.0
        %462 = vmatpush1.msra.mxu0 0.0
        %463 = vmatprep.subr.mxu0 0.0
        %464 = vmatpush1.msra.mxu0 0.0
        %465 = vmatprep.subr.mxu0 0.0
        %466 = vmatpush1.msra.mxu0 0.0
        %467 = vmatprep.subr.mxu0 0.0
        %468 = vmatpush1.msra.mxu0 0.0
        %469 = vmatprep.subr.mxu0 0.0
        %470 = vmatpush1.msra.mxu0 0.0
        %471 = vmatprep.subr.mxu0 0.0
        %472 = vmatpush1.msra.mxu0 0.0
        %473 = vmatprep.subr.mxu0 0.0
        %474 = vmatpush1.msra.mxu0 0.0
        %475 = vmatprep.subr.mxu0 0.0
        %476 = vmatpush1.msra.mxu0 0.0
        %477 = vmatprep.subr.mxu0 0.0
        %478 = vmatpush1.msra.mxu0 0.0
        %479 = vmatprep.subr.mxu0 0.0
        %480 = vmatpush1.msra.mxu0 0.0
        %481 = vmatprep.subr.mxu0 0.0
        %482 = vmatpush1.msra.mxu0 0.0
        %483 = vmatprep.subr.mxu0 0.0
        %484 = vmatpush1.msra.mxu0 0.0
        %485 = vmatprep.subr.mxu0 0.0
        %486 = vmatpush1.msra.mxu0 0.0
        %487 = vmatprep.subr.mxu0 0.0
        %488 = vmatpush1.msra.mxu0 0.0
        %489 = vmatprep.subr.mxu0 0.0
        %490 = vmatpush1.msra.mxu0 0.0
        %491 = vmatprep.subr.mxu0 0.0
        %492 = vmatpush1.msra.mxu0 0.0
        %493 = vmatprep.subr.mxu0 0.0
        %494 = vmatpush1.msra.mxu0 0.0
        %495 = vmatprep.subr.mxu0 0.0
        %496 = vmatpush1.msra.mxu0 0.0
        %497 = vmatprep.subr.mxu0 0.0
        %498 = vmatpush1.msra.mxu0 0.0
        %499 = vmatprep.subr.mxu0 0.0
        %500 = vmatpush1.msra.mxu0 0.0
        %501 = vmatprep.mubr.f32.mxu0 0.0
        %502 = vmatmul.mubr.f32.gmra.mrb[0].mxu0 %v365
        %v503 = vpop.f32.mrb[0].mxu0
        %v504 = vadd.f32 %v330, %v503
        %v505 = vpop.f32.mrb[0].mxu0
        %506 = vdwg.mxu0
        %507 = vmatprep.subr.mxu0 0.0
        %508 = vmatpush1.msra.mxu0 %v283
        %509 = vmatprep.subr.mxu0 0.0
        %510 = vmatpush1.msra.mxu0 %v284
        %511 = vmatprep.subr.mxu0 0.0
        %512 = vmatpush1.msra.mxu0 %v285
        %513 = vmatprep.subr.mxu0 0.0
        %514 = vmatpush1.msra.mxu0 %v286
        %515 = vmatprep.subr.mxu0 0.0
        %516 = vmatpush1.msra.mxu0 0.0
        %517 = vmatprep.subr.mxu0 0.0
        %518 = vmatpush1.msra.mxu0 0.0
        %519 = vmatprep.subr.mxu0 0.0
        %520 = vmatpush1.msra.mxu0 0.0
        %521 = vmatprep.subr.mxu0 0.0
        %522 = vmatpush1.msra.mxu0 0.0
        %523 = vmatprep.subr.mxu0 0.0
        %524 = vmatpush1.msra.mxu0 0.0
        %525 = vmatprep.subr.mxu0 0.0
        %526 = vmatpush1.msra.mxu0 0.0
        %527 = vmatprep.subr.mxu0 0.0
        %528 = vmatpush1.msra.mxu0 0.0
        %529 = vmatprep.subr.mxu0 0.0
        %530 = vmatpush1.msra.mxu0 0.0
        %531 = vmatprep.subr.mxu0 0.0
        %532 = vmatpush1.msra.mxu0 0.0
        %533 = vmatprep.subr.mxu0 0.0
        %534 = vmatpush1.msra.mxu0 0.0
        %535 = vmatprep.subr.mxu0 0.0
        %536 = vmatpush1.msra.mxu0 0.0
        %537 = vmatprep.subr.mxu0 0.0
        %538 = vmatpush1.msra.mxu0 0.0
        %539 = vmatprep.subr.mxu0 0.0
        %540 = vmatpush1.msra.mxu0 0.0
        %541 = vmatprep.subr.mxu0 0.0
        %542 = vmatpush1.msra.mxu0 0.0
        %543 = vmatprep.subr.mxu0 0.0
        %544 = vmatpush1.msra.mxu0 0.0
        %545 = vmatprep.subr.mxu0 0.0
        %546 = vmatpush1.msra.mxu0 0.0
        %547 = vmatprep.subr.mxu0 0.0
        %548 = vmatpush1.msra.mxu0 0.0
        %549 = vmatprep.subr.mxu0 0.0
        %550 = vmatpush1.msra.mxu0 0.0
        %551 = vmatprep.subr.mxu0 0.0
        %552 = vmatpush1.msra.mxu0 0.0
        %553 = vmatprep.subr.mxu0 0.0
        %554 = vmatpush1.msra.mxu0 0.0
        %555 = vmatprep.subr.mxu0 0.0
        %556 = vmatpush1.msra.mxu0 0.0
        %557 = vmatprep.subr.mxu0 0.0
        %558 = vmatpush1.msra.mxu0 0.0
        %559 = vmatprep.subr.mxu0 0.0
        %560 = vmatpush1.msra.mxu0 0.0
        %561 = vmatprep.subr.mxu0 0.0
        %562 = vmatpush1.msra.mxu0 0.0
        %563 = vmatprep.subr.mxu0 0.0
        %564 = vmatpush1.msra.mxu0 0.0
        %565 = vmatprep.subr.mxu0 0.0
        %566 = vmatpush1.msra.mxu0 0.0
        %567 = vmatprep.subr.mxu0 0.0
        %568 = vmatpush1.msra.mxu0 0.0
        %569 = vmatprep.subr.mxu0 0.0
        %570 = vmatpush1.msra.mxu0 0.0
        %571 = vmatprep.mubr.f32.mxu0 0.0
        %572 = vmatmul.mubr.f32.gmra.mrb[0].mxu0 %v365
        %v573 = vpop.f32.mrb[0].mxu0
        %v574 = vadd.f32 %v334, %v573
        %v575 = vpop.f32.mrb[0].mxu0
        %576 = vdwg.mxu0
        %577 = vmatprep.subr.mxu0 0.0
        %578 = vmatpush1.msra.mxu0 %v287
        %579 = vmatprep.subr.mxu0 0.0
        %580 = vmatpush1.msra.mxu0 %v288
        %581 = vmatprep.subr.mxu0 0.0
        %582 = vmatpush1.msra.mxu0 %v289
        %583 = vmatprep.subr.mxu0 0.0
        %584 = vmatpush1.msra.mxu0 %v290
        %585 = vmatprep.subr.mxu0 0.0
        %586 = vmatpush1.msra.mxu0 0.0
        %587 = vmatprep.subr.mxu0 0.0
        %588 = vmatpush1.msra.mxu0 0.0
        %589 = vmatprep.subr.mxu0 0.0
        %590 = vmatpush1.msra.mxu0 0.0
        %591 = vmatprep.subr.mxu0 0.0
        %592 = vmatpush1.msra.mxu0 0.0
        %593 = vmatprep.subr.mxu0 0.0
        %594 = vmatpush1.msra.mxu0 0.0
        %595 = vmatprep.subr.mxu0 0.0
        %596 = vmatpush1.msra.mxu0 0.0
        %597 = vmatprep.subr.mxu0 0.0
        %598 = vmatpush1.msra.mxu0 0.0
        %599 = vmatprep.subr.mxu0 0.0
        %600 = vmatpush1.msra.mxu0 0.0
        %601 = vmatprep.subr.mxu0 0.0
        %602 = vmatpush1.msra.mxu0 0.0
        %603 = vmatprep.subr.mxu0 0.0
        %604 = vmatpush1.msra.mxu0 0.0
        %605 = vmatprep.subr.mxu0 0.0
        %606 = vmatpush1.msra.mxu0 0.0
        %607 = vmatprep.subr.mxu0 0.0
        %608 = vmatpush1.msra.mxu0 0.0
        %609 = vmatprep.subr.mxu0 0.0
        %610 = vmatpush1.msra.mxu0 0.0
        %611 = vmatprep.subr.mxu0 0.0
        %612 = vmatpush1.msra.mxu0 0.0
        %613 = vmatprep.subr.mxu0 0.0
        %614 = vmatpush1.msra.mxu0 0.0
        %615 = vmatprep.subr.mxu0 0.0
        %616 = vmatpush1.msra.mxu0 0.0
        %617 = vmatprep.subr.mxu0 0.0
        %618 = vmatpush1.msra.mxu0 0.0
        %619 = vmatprep.subr.mxu0 0.0
        %620 = vmatpush1.msra.mxu0 0.0
        %621 = vmatprep.subr.mxu0 0.0
        %622 = vmatpush1.msra.mxu0 0.0
        %623 = vmatprep.subr.mxu0 0.0
        %624 = vmatpush1.msra.mxu0 0.0
        %625 = vmatprep.subr.mxu0 0.0
        %626 = vmatpush1.msra.mxu0 0.0
        %627 = vmatprep.subr.mxu0 0.0
        %628 = vmatpush1.msra.mxu0 0.0
        %629 = vmatprep.subr.mxu0 0.0
        %630 = vmatpush1.msra.mxu0 0.0
        %631 = vmatprep.subr.mxu0 0.0
        %632 = vmatpush1.msra.mxu0 0.0
        %633 = vmatprep.subr.mxu0 0.0
        %634 = vmatpush1.msra.mxu0 0.0
        %635 = vmatprep.subr.mxu0 0.0
        %636 = vmatpush1.msra.mxu0 0.0
        %637 = vmatprep.subr.mxu0 0.0
        %638 = vmatpush1.msra.mxu0 0.0
        %639 = vmatprep.subr.mxu0 0.0
        %640 = vmatpush1.msra.mxu0 0.0
        %641 = vmatprep.mubr.f32.mxu0 0.0
        %642 = vmatmul.mubr.f32.gmra.mrb[0].mxu0 %v365
        %v643 = vpop.f32.mrb[0].mxu0
        %v644 = vadd.f32 %v338, %v643
        %v645 = vpop.f32.mrb[0].mxu0
        %646 = vdwg.mxu0
        %647 = vmatprep.subr.mxu0 0.0
        %648 = vmatpush1.msra.mxu0 %v291
        %649 = vmatprep.subr.mxu0 0.0
        %650 = vmatpush1.msra.mxu0 %v292
        %651 = vmatprep.subr.mxu0 0.0
        %652 = vmatpush1.msra.mxu0 %v293
        %653 = vmatprep.subr.mxu0 0.0
        %654 = vmatpush1.msra.mxu0 %v294
        %655 = vmatprep.subr.mxu0 0.0
        %656 = vmatpush1.msra.mxu0 0.0
        %657 = vmatprep.subr.mxu0 0.0
        %658 = vmatpush1.msra.mxu0 0.0
        %659 = vmatprep.subr.mxu0 0.0
        %660 = vmatpush1.msra.mxu0 0.0
        %661 = vmatprep.subr.mxu0 0.0
        %662 = vmatpush1.msra.mxu0 0.0
        %663 = vmatprep.subr.mxu0 0.0
        %664 = vmatpush1.msra.mxu0 0.0
        %665 = vmatprep.subr.mxu0 0.0
        %666 = vmatpush1.msra.mxu0 0.0
        %667 = vmatprep.subr.mxu0 0.0
        %668 = vmatpush1.msra.mxu0 0.0
        %669 = vmatprep.subr.mxu0 0.0
        %670 = vmatpush1.msra.mxu0 0.0
        %671 = vmatprep.subr.mxu0 0.0
        %672 = vmatpush1.msra.mxu0 0.0
        %673 = vmatprep.subr.mxu0 0.0
        %674 = vmatpush1.msra.mxu0 0.0
        %675 = vmatprep.subr.mxu0 0.0
        %676 = vmatpush1.msra.mxu0 0.0
        %677 = vmatprep.subr.mxu0 0.0
        %678 = vmatpush1.msra.mxu0 0.0
        %679 = vmatprep.subr.mxu0 0.0
        %680 = vmatpush1.msra.mxu0 0.0
        %681 = vmatprep.subr.mxu0 0.0
        %682 = vmatpush1.msra.mxu0 0.0
        %683 = vmatprep.subr.mxu0 0.0
        %684 = vmatpush1.msra.mxu0 0.0
        %685 = vmatprep.subr.mxu0 0.0
        %686 = vmatpush1.msra.mxu0 0.0
        %687 = vmatprep.subr.mxu0 0.0
        %688 = vmatpush1.msra.mxu0 0.0
        %689 = vmatprep.subr.mxu0 0.0
        %690 = vmatpush1.msra.mxu0 0.0
        %691 = vmatprep.subr.mxu0 0.0
        %692 = vmatpush1.msra.mxu0 0.0
        %693 = vmatprep.subr.mxu0 0.0
        %694 = vmatpush1.msra.mxu0 0.0
        %695 = vmatprep.subr.mxu0 0.0
        %696 = vmatpush1.msra.mxu0 0.0
        %697 = vmatprep.subr.mxu0 0.0
        %698 = vmatpush1.msra.mxu0 0.0
        %699 = vmatprep.subr.mxu0 0.0
        %700 = vmatpush1.msra.mxu0 0.0
        %701 = vmatprep.subr.mxu0 0.0
        %702 = vmatpush1.msra.mxu0 0.0
        %703 = vmatprep.subr.mxu0 0.0
        %704 = vmatpush1.msra.mxu0 0.0
        %705 = vmatprep.subr.mxu0 0.0
        %706 = vmatpush1.msra.mxu0 0.0
        %707 = vmatprep.subr.mxu0 0.0
        %708 = vmatpush1.msra.mxu0 0.0
        %709 = vmatprep.subr.mxu0 0.0
        %710 = vmatpush1.msra.mxu0 0.0
        %711 = vmatprep.mubr.f32.mxu0 0.0
        %712 = vmatmul.mubr.f32.gmra.mrb[0].mxu0 %v365
        %v713 = vpop.f32.mrb[0].mxu0
        %v714 = vadd.f32 %v342, %v713
        %v715 = vpop.f32.mrb[0].mxu0
        %716 = vdwg.mxu0
        %717 = vmatprep.subr.mxu0 0.0
        %718 = vmatpush1.msra.mxu0 %v295
        %719 = vmatprep.subr.mxu0 0.0
        %720 = vmatpush1.msra.mxu0 %v296
        %721 = vmatprep.subr.mxu0 0.0
        %722 = vmatpush1.msra.mxu0 %v297
        %723 = vmatprep.subr.mxu0 0.0
        %724 = vmatpush1.msra.mxu0 %v298
        %725 = vmatprep.subr.mxu0 0.0
        %726 = vmatpush1.msra.mxu0 0.0
        %727 = vmatprep.subr.mxu0 0.0
        %728 = vmatpush1.msra.mxu0 0.0
        %729 = vmatprep.subr.mxu0 0.0
        %730 = vmatpush1.msra.mxu0 0.0
        %731 = vmatprep.subr.mxu0 0.0
        %732 = vmatpush1.msra.mxu0 0.0
        %733 = vmatprep.subr.mxu0 0.0
        %734 = vmatpush1.msra.mxu0 0.0
        %735 = vmatprep.subr.mxu0 0.0
        %736 = vmatpush1.msra.mxu0 0.0
        %737 = vmatprep.subr.mxu0 0.0
        %738 = vmatpush1.msra.mxu0 0.0
        %739 = vmatprep.subr.mxu0 0.0
        %740 = vmatpush1.msra.mxu0 0.0
        %741 = vmatprep.subr.mxu0 0.0
        %742 = vmatpush1.msra.mxu0 0.0
        %743 = vmatprep.subr.mxu0 0.0
        %744 = vmatpush1.msra.mxu0 0.0
        %745 = vmatprep.subr.mxu0 0.0
        %746 = vmatpush1.msra.mxu0 0.0
        %747 = vmatprep.subr.mxu0 0.0
        %748 = vmatpush1.msra.mxu0 0.0
        %749 = vmatprep.subr.mxu0 0.0
        %750 = vmatpush1.msra.mxu0 0.0
        %751 = vmatprep.subr.mxu0 0.0
        %752 = vmatpush1.msra.mxu0 0.0
        %753 = vmatprep.subr.mxu0 0.0
        %754 = vmatpush1.msra.mxu0 0.0
        %755 = vmatprep.subr.mxu0 0.0
        %756 = vmatpush1.msra.mxu0 0.0
        %757 = vmatprep.subr.mxu0 0.0
        %758 = vmatpush1.msra.mxu0 0.0
        %759 = vmatprep.subr.mxu0 0.0
        %760 = vmatpush1.msra.mxu0 0.0
        %761 = vmatprep.subr.mxu0 0.0
        %762 = vmatpush1.msra.mxu0 0.0
        %763 = vmatprep.subr.mxu0 0.0
        %764 = vmatpush1.msra.mxu0 0.0
        %765 = vmatprep.subr.mxu0 0.0
        %766 = vmatpush1.msra.mxu0 0.0
        %767 = vmatprep.subr.mxu0 0.0
        %768 = vmatpush1.msra.mxu0 0.0
        %769 = vmatprep.subr.mxu0 0.0
        %770 = vmatpush1.msra.mxu0 0.0
        %771 = vmatprep.subr.mxu0 0.0
        %772 = vmatpush1.msra.mxu0 0.0
        %773 = vmatprep.subr.mxu0 0.0
        %774 = vmatpush1.msra.mxu0 0.0
        %775 = vmatprep.subr.mxu0 0.0
        %776 = vmatpush1.msra.mxu0 0.0
        %777 = vmatprep.subr.mxu0 0.0
        %778 = vmatpush1.msra.mxu0 0.0
        %779 = vmatprep.subr.mxu0 0.0
        %780 = vmatpush1.msra.mxu0 0.0
        %781 = vmatprep.mubr.f32.mxu0 0.0
        %782 = vmatmul.mubr.f32.gmra.mrb[0].mxu0 %v365
        %v783 = vpop.f32.mrb[0].mxu0
        %v784 = vadd.f32 %v346, %v783
        %v785 = vpop.f32.mrb[0].mxu0
        %786 = vdwg.mxu0
        %787 = vmatprep.subr.mxu0 0.0
        %788 = vmatpush1.msra.mxu0 %v299
        %789 = vmatprep.subr.mxu0 0.0
        %790 = vmatpush1.msra.mxu0 %v300
        %791 = vmatprep.subr.mxu0 0.0
        %792 = vmatpush1.msra.mxu0 %v301
        %793 = vmatprep.subr.mxu0 0.0
        %794 = vmatpush1.msra.mxu0 %v302
        %795 = vmatprep.subr.mxu0 0.0
        %796 = vmatpush1.msra.mxu0 0.0
        %797 = vmatprep.subr.mxu0 0.0
        %798 = vmatpush1.msra.mxu0 0.0
        %799 = vmatprep.subr.mxu0 0.0
        %800 = vmatpush1.msra.mxu0 0.0
        %801 = vmatprep.subr.mxu0 0.0
        %802 = vmatpush1.msra.mxu0 0.0
        %803 = vmatprep.subr.mxu0 0.0
        %804 = vmatpush1.msra.mxu0 0.0
        %805 = vmatprep.subr.mxu0 0.0
        %806 = vmatpush1.msra.mxu0 0.0
        %807 = vmatprep.subr.mxu0 0.0
        %808 = vmatpush1.msra.mxu0 0.0
        %809 = vmatprep.subr.mxu0 0.0
        %810 = vmatpush1.msra.mxu0 0.0
        %811 = vmatprep.subr.mxu0 0.0
        %812 = vmatpush1.msra.mxu0 0.0
        %813 = vmatprep.subr.mxu0 0.0
        %814 = vmatpush1.msra.mxu0 0.0
        %815 = vmatprep.subr.mxu0 0.0
        %816 = vmatpush1.msra.mxu0 0.0
        %817 = vmatprep.subr.mxu0 0.0
        %818 = vmatpush1.msra.mxu0 0.0
        %819 = vmatprep.subr.mxu0 0.0
        %820 = vmatpush1.msra.mxu0 0.0
        %821 = vmatprep.subr.mxu0 0.0
        %822 = vmatpush1.msra.mxu0 0.0
        %823 = vmatprep.subr.mxu0 0.0
        %824 = vmatpush1.msra.mxu0 0.0
        %825 = vmatprep.subr.mxu0 0.0
        %826 = vmatpush1.msra.mxu0 0.0
        %827 = vmatprep.subr.mxu0 0.0
        %828 = vmatpush1.msra.mxu0 0.0
        %829 = vmatprep.subr.mxu0 0.0
        %830 = vmatpush1.msra.mxu0 0.0
        %831 = vmatprep.subr.mxu0 0.0
        %832 = vmatpush1.msra.mxu0 0.0
        %833 = vmatprep.subr.mxu0 0.0
        %834 = vmatpush1.msra.mxu0 0.0
        %835 = vmatprep.subr.mxu0 0.0
        %836 = vmatpush1.msra.mxu0 0.0
        %837 = vmatprep.subr.mxu0 0.0
        %838 = vmatpush1.msra.mxu0 0.0
        %839 = vmatprep.subr.mxu0 0.0
        %840 = vmatpush1.msra.mxu0 0.0
        %841 = vmatprep.subr.mxu0 0.0
        %842 = vmatpush1.msra.mxu0 0.0
        %843 = vmatprep.subr.mxu0 0.0
        %844 = vmatpush1.msra.mxu0 0.0
        %845 = vmatprep.subr.mxu0 0.0
        %846 = vmatpush1.msra.mxu0 0.0
        %847 = vmatprep.subr.mxu0 0.0
        %848 = vmatpush1.msra.mxu0 0.0
        %849 = vmatprep.subr.mxu0 0.0
        %850 = vmatpush1.msra.mxu0 0.0
        %851 = vmatprep.mubr.f32.mxu0 0.0
        %852 = vmatmul.mubr.f32.gmra.mrb[0].mxu0 %v365
        %v853 = vpop.f32.mrb[0].mxu0
        %v854 = vadd.f32 %v350, %v853
        %v855 = vpop.f32.mrb[0].mxu0
        %856 = vdwg.mxu0
        %857 = vmatprep.subr.mxu0 0.0
        %858 = vmatpush1.msra.mxu0 %v303
        %859 = vmatprep.subr.mxu0 0.0
        %860 = vmatpush1.msra.mxu0 %v304
        %861 = vmatprep.subr.mxu0 0.0
        %862 = vmatpush1.msra.mxu0 %v305
        %863 = vmatprep.subr.mxu0 0.0
        %864 = vmatpush1.msra.mxu0 %v306
        %865 = vmatprep.subr.mxu0 0.0
        %866 = vmatpush1.msra.mxu0 0.0
        %867 = vmatprep.subr.mxu0 0.0
        %868 = vmatpush1.msra.mxu0 0.0
        %869 = vmatprep.subr.mxu0 0.0
        %870 = vmatpush1.msra.mxu0 0.0
        %871 = vmatprep.subr.mxu0 0.0
        %872 = vmatpush1.msra.mxu0 0.0
        %873 = vmatprep.subr.mxu0 0.0
        %874 = vmatpush1.msra.mxu0 0.0
        %875 = vmatprep.subr.mxu0 0.0
        %876 = vmatpush1.msra.mxu0 0.0
        %877 = vmatprep.subr.mxu0 0.0
        %878 = vmatpush1.msra.mxu0 0.0
        %879 = vmatprep.subr.mxu0 0.0
        %880 = vmatpush1.msra.mxu0 0.0
        %881 = vmatprep.subr.mxu0 0.0
        %882 = vmatpush1.msra.mxu0 0.0
        %883 = vmatprep.subr.mxu0 0.0
        %884 = vmatpush1.msra.mxu0 0.0
        %885 = vmatprep.subr.mxu0 0.0
        %886 = vmatpush1.msra.mxu0 0.0
        %887 = vmatprep.subr.mxu0 0.0
        %888 = vmatpush1.msra.mxu0 0.0
        %889 = vmatprep.subr.mxu0 0.0
        %890 = vmatpush1.msra.mxu0 0.0
        %891 = vmatprep.subr.mxu0 0.0
        %892 = vmatpush1.msra.mxu0 0.0
        %893 = vmatprep.subr.mxu0 0.0
        %894 = vmatpush1.msra.mxu0 0.0
        %895 = vmatprep.subr.mxu0 0.0
        %896 = vmatpush1.msra.mxu0 0.0
        %897 = vmatprep.subr.mxu0 0.0
        %898 = vmatpush1.msra.mxu0 0.0
        %899 = vmatprep.subr.mxu0 0.0
        %900 = vmatpush1.msra.mxu0 0.0
        %901 = vmatprep.subr.mxu0 0.0
        %902 = vmatpush1.msra.mxu0 0.0
        %903 = vmatprep.subr.mxu0 0.0
        %904 = vmatpush1.msra.mxu0 0.0
        %905 = vmatprep.subr.mxu0 0.0
        %906 = vmatpush1.msra.mxu0 0.0
        %907 = vmatprep.subr.mxu0 0.0
        %908 = vmatpush1.msra.mxu0 0.0
        %909 = vmatprep.subr.mxu0 0.0
        %910 = vmatpush1.msra.mxu0 0.0
        %911 = vmatprep.subr.mxu0 0.0
        %912 = vmatpush1.msra.mxu0 0.0
        %913 = vmatprep.subr.mxu0 0.0
        %914 = vmatpush1.msra.mxu0 0.0
        %915 = vmatprep.subr.mxu0 0.0
        %916 = vmatpush1.msra.mxu0 0.0
        %917 = vmatprep.subr.mxu0 0.0
        %918 = vmatpush1.msra.mxu0 0.0
        %919 = vmatprep.subr.mxu0 0.0
        %920 = vmatpush1.msra.mxu0 0.0
        %921 = vmatprep.mubr.f32.mxu0 0.0
        %922 = vmatmul.mubr.f32.gmra.mrb[0].mxu0 %v365
        %v923 = vpop.f32.mrb[0].mxu0
        %v924 = vadd.f32 %v354, %v923
        %v925 = vpop.f32.mrb[0].mxu0
        %926 = vdwg.mxu0
        %v927 = vmul.f32 %v434, 0.5
        %v928 = vmul.f32 %v504, 0.5
        %v929 = vmul.f32 %v574, 0.5
        %v930 = vmul.f32 %v644, 0.5
        %v931 = vmul.f32 %v714, 0.5
        %v932 = vmul.f32 %v784, 0.5
        %v933 = vmul.f32 %v854, 0.5
        %v934 = vmul.f32 %v924, 0.5
        %936 = vrot.lane.b32.xlu0 %v434, 124
        %v937 = vpop.permute.xlu0 %936
        %vm938 = vcmask 31744
        %v940 = vsel %vm938, %v927, 0
        %v942 = vsel %vm938, %v937, 0
        %944 = vmatprep.subr.mxu0 0.0
        %945 = vmatpush1.xpose.msra.mxu0 %v942
        %946 = vmatprep.subr.mxu0 0.0
        %947 = vmatpush1.xpose.msra.mxu0 0.0
        %948 = vmatprep.subr.mxu0 0.0
        %949 = vmatpush1.xpose.msra.mxu0 0.0
        %950 = vmatprep.subr.mxu0 0.0
        %951 = vmatpush1.xpose.msra.mxu0 0.0
        %952 = vmatprep.subr.mxu0 0.0
        %953 = vmatpush1.xpose.msra.mxu0 0.0
        %954 = vmatprep.subr.mxu0 0.0
        %955 = vmatpush1.xpose.msra.mxu0 0.0
        %956 = vmatprep.subr.mxu0 0.0
        %957 = vmatpush1.xpose.msra.mxu0 0.0
        %958 = vmatprep.subr.mxu0 0.0
        %959 = vmatpush1.xpose.msra.mxu0 0.0
        %960 = vmatprep.subr.mxu0 0.0
        %961 = vmatpush1.xpose.msra.mxu0 0.0
        %962 = vmatprep.subr.mxu0 0.0
        %963 = vmatpush1.xpose.msra.mxu0 0.0
        %964 = vmatprep.subr.mxu0 0.0
        %965 = vmatpush1.xpose.msra.mxu0 0.0
        %966 = vmatprep.subr.mxu0 0.0
        %967 = vmatpush1.xpose.msra.mxu0 0.0
        %968 = vmatprep.subr.mxu0 0.0
        %969 = vmatpush1.xpose.msra.mxu0 0.0
        %970 = vmatprep.subr.mxu0 0.0
        %971 = vmatpush1.xpose.msra.mxu0 0.0
        %972 = vmatprep.subr.mxu0 0.0
        %973 = vmatpush1.xpose.msra.mxu0 0.0
        %974 = vmatprep.subr.mxu0 0.0
        %975 = vmatpush1.xpose.msra.mxu0 0.0
        %976 = vmatprep.subr.mxu0 0.0
        %977 = vmatpush1.xpose.msra.mxu0 0.0
        %978 = vmatprep.subr.mxu0 0.0
        %979 = vmatpush1.xpose.msra.mxu0 0.0
        %980 = vmatprep.subr.mxu0 0.0
        %981 = vmatpush1.xpose.msra.mxu0 0.0
        %982 = vmatprep.subr.mxu0 0.0
        %983 = vmatpush1.xpose.msra.mxu0 0.0
        %984 = vmatprep.subr.mxu0 0.0
        %985 = vmatpush1.xpose.msra.mxu0 0.0
        %986 = vmatprep.subr.mxu0 0.0
        %987 = vmatpush1.xpose.msra.mxu0 0.0
        %988 = vmatprep.subr.mxu0 0.0
        %989 = vmatpush1.xpose.msra.mxu0 0.0
        %990 = vmatprep.subr.mxu0 0.0
        %991 = vmatpush1.xpose.msra.mxu0 0.0
        %992 = vmatprep.subr.mxu0 0.0
        %993 = vmatpush1.xpose.msra.mxu0 0.0
        %994 = vmatprep.subr.mxu0 0.0
        %995 = vmatpush1.xpose.msra.mxu0 0.0
        %996 = vmatprep.subr.mxu0 0.0
        %997 = vmatpush1.xpose.msra.mxu0 0.0
        %998 = vmatprep.subr.mxu0 0.0
        %999 = vmatpush1.xpose.msra.mxu0 0.0
        %1000 = vmatprep.subr.mxu0 0.0
        %1001 = vmatpush1.xpose.msra.mxu0 0.0
        %1002 = vmatprep.subr.mxu0 0.0
        %1003 = vmatpush1.xpose.msra.mxu0 0.0
        %1004 = vmatprep.subr.mxu0 0.0
        %1005 = vmatpush1.xpose.msra.mxu0 0.0
        %1006 = vmatprep.subr.mxu0 0.0
        %1007 = vmatpush1.xpose.msra.mxu0 0.0
        %1008 = vmatprep.mubr.f32.mxu0 0.0
        %1009 = vmatmul.mubr.f32.gmra.mrb[0].mxu0 %v940
        %v1010 = vpop.f32.mrb[0].mxu0
        %v1011 = vadd.f32 0.0, %v1010
        %v1012 = vpop.f32.mrb[0].mxu0
        %1013 = vdwg.mxu0
        %1015 = vrot.lane.b32.xlu0 %v504, 124
        %v1016 = vpop.permute.xlu0 %1015
        %v1018 = vsel %vm938, %v928, 0
        %v1020 = vsel %vm938, %v1016, 0
        %1022 = vmatprep.subr.mxu0 0.0
        %1023 = vmatpush1.xpose.msra.mxu0 %v1020
        %1024 = vmatprep.subr.mxu0 0.0
        %1025 = vmatpush1.xpose.msra.mxu0 0.0
        %1026 = vmatprep.subr.mxu0 0.0
        %1027 = vmatpush1.xpose.msra.mxu0 0.0
        %1028 = vmatprep.subr.mxu0 0.0
        %1029 = vmatpush1.xpose.msra.mxu0 0.0
        %1030 = vmatprep.subr.mxu0 0.0
        %1031 = vmatpush1.xpose.msra.mxu0 0.0
        %1032 = vmatprep.subr.mxu0 0.0
        %1033 = vmatpush1.xpose.msra.mxu0 0.0
        %1034 = vmatprep.subr.mxu0 0.0
        %1035 = vmatpush1.xpose.msra.mxu0 0.0
        %1036 = vmatprep.subr.mxu0 0.0
        %1037 = vmatpush1.xpose.msra.mxu0 0.0
        %1038 = vmatprep.subr.mxu0 0.0
        %1039 = vmatpush1.xpose.msra.mxu0 0.0
        %1040 = vmatprep.subr.mxu0 0.0
        %1041 = vmatpush1.xpose.msra.mxu0 0.0
        %1042 = vmatprep.subr.mxu0 0.0
        %1043 = vmatpush1.xpose.msra.mxu0 0.0
        %1044 = vmatprep.subr.mxu0 0.0
        %1045 = vmatpush1.xpose.msra.mxu0 0.0
        %1046 = vmatprep.subr.mxu0 0.0
        %1047 = vmatpush1.xpose.msra.mxu0 0.0
        %1048 = vmatprep.subr.mxu0 0.0
        %1049 = vmatpush1.xpose.msra.mxu0 0.0
        %1050 = vmatprep.subr.mxu0 0.0
        %1051 = vmatpush1.xpose.msra.mxu0 0.0
        %1052 = vmatprep.subr.mxu0 0.0
        %1053 = vmatpush1.xpose.msra.mxu0 0.0
        %1054 = vmatprep.subr.mxu0 0.0
        %1055 = vmatpush1.xpose.msra.mxu0 0.0
        %1056 = vmatprep.subr.mxu0 0.0
        %1057 = vmatpush1.xpose.msra.mxu0 0.0
        %1058 = vmatprep.subr.mxu0 0.0
        %1059 = vmatpush1.xpose.msra.mxu0 0.0
        %1060 = vmatprep.subr.mxu0 0.0
        %1061 = vmatpush1.xpose.msra.mxu0 0.0
        %1062 = vmatprep.subr.mxu0 0.0
        %1063 = vmatpush1.xpose.msra.mxu0 0.0
        %1064 = vmatprep.subr.mxu0 0.0
        %1065 = vmatpush1.xpose.msra.mxu0 0.0
        %1066 = vmatprep.subr.mxu0 0.0
        %1067 = vmatpush1.xpose.msra.mxu0 0.0
        %1068 = vmatprep.subr.mxu0 0.0
        %1069 = vmatpush1.xpose.msra.mxu0 0.0
        %1070 = vmatprep.subr.mxu0 0.0
        %1071 = vmatpush1.xpose.msra.mxu0 0.0
        %1072 = vmatprep.subr.mxu0 0.0
        %1073 = vmatpush1.xpose.msra.mxu0 0.0
        %1074 = vmatprep.subr.mxu0 0.0
        %1075 = vmatpush1.xpose.msra.mxu0 0.0
        %1076 = vmatprep.subr.mxu0 0.0
        %1077 = vmatpush1.xpose.msra.mxu0 0.0
        %1078 = vmatprep.subr.mxu0 0.0
        %1079 = vmatpush1.xpose.msra.mxu0 0.0
        %1080 = vmatprep.subr.mxu0 0.0
        %1081 = vmatpush1.xpose.msra.mxu0 0.0
        %1082 = vmatprep.subr.mxu0 0.0
        %1083 = vmatpush1.xpose.msra.mxu0 0.0
        %1084 = vmatprep.subr.mxu0 0.0
        %1085 = vmatpush1.xpose.msra.mxu0 0.0
        %1086 = vmatprep.mubr.f32.mxu0 0.0
        %1087 = vmatmul.mubr.f32.gmra.mrb[0].mxu0 %v1018
        %v1088 = vpop.f32.mrb[0].mxu0
        %v1089 = vadd.f32 0.0, %v1088
        %v1090 = vpop.f32.mrb[0].mxu0
        %1091 = vdwg.mxu0
        %1093 = vrot.lane.b32.xlu0 %v574, 124
        %v1094 = vpop.permute.xlu0 %1093
        %v1096 = vsel %vm938, %v929, 0
        %v1098 = vsel %vm938, %v1094, 0
        %1100 = vmatprep.subr.mxu0 0.0
        %1101 = vmatpush1.xpose.msra.mxu0 %v1098
        %1102 = vmatprep.subr.mxu0 0.0
        %1103 = vmatpush1.xpose.msra.mxu0 0.0
        %1104 = vmatprep.subr.mxu0 0.0
        %1105 = vmatpush1.xpose.msra.mxu0 0.0
        %1106 = vmatprep.subr.mxu0 0.0
        %1107 = vmatpush1.xpose.msra.mxu0 0.0
        %1108 = vmatprep.subr.mxu0 0.0
        %1109 = vmatpush1.xpose.msra.mxu0 0.0
        %1110 = vmatprep.subr.mxu0 0.0
        %1111 = vmatpush1.xpose.msra.mxu0 0.0
        %1112 = vmatprep.subr.mxu0 0.0
        %1113 = vmatpush1.xpose.msra.mxu0 0.0
        %1114 = vmatprep.subr.mxu0 0.0
        %1115 = vmatpush1.xpose.msra.mxu0 0.0
        %1116 = vmatprep.subr.mxu0 0.0
        %1117 = vmatpush1.xpose.msra.mxu0 0.0
        %1118 = vmatprep.subr.mxu0 0.0
        %1119 = vmatpush1.xpose.msra.mxu0 0.0
        %1120 = vmatprep.subr.mxu0 0.0
        %1121 = vmatpush1.xpose.msra.mxu0 0.0
        %1122 = vmatprep.subr.mxu0 0.0
        %1123 = vmatpush1.xpose.msra.mxu0 0.0
        %1124 = vmatprep.subr.mxu0 0.0
        %1125 = vmatpush1.xpose.msra.mxu0 0.0
        %1126 = vmatprep.subr.mxu0 0.0
        %1127 = vmatpush1.xpose.msra.mxu0 0.0
        %1128 = vmatprep.subr.mxu0 0.0
        %1129 = vmatpush1.xpose.msra.mxu0 0.0
        %1130 = vmatprep.subr.mxu0 0.0
        %1131 = vmatpush1.xpose.msra.mxu0 0.0
        %1132 = vmatprep.subr.mxu0 0.0
        %1133 = vmatpush1.xpose.msra.mxu0 0.0
        %1134 = vmatprep.subr.mxu0 0.0
        %1135 = vmatpush1.xpose.msra.mxu0 0.0
        %1136 = vmatprep.subr.mxu0 0.0
        %1137 = vmatpush1.xpose.msra.mxu0 0.0
        %1138 = vmatprep.subr.mxu0 0.0
        %1139 = vmatpush1.xpose.msra.mxu0 0.0
        %1140 = vmatprep.subr.mxu0 0.0
        %1141 = vmatpush1.xpose.msra.mxu0 0.0
        %1142 = vmatprep.subr.mxu0 0.0
        %1143 = vmatpush1.xpose.msra.mxu0 0.0
        %1144 = vmatprep.subr.mxu0 0.0
        %1145 = vmatpush1.xpose.msra.mxu0 0.0
        %1146 = vmatprep.subr.mxu0 0.0
        %1147 = vmatpush1.xpose.msra.mxu0 0.0
        %1148 = vmatprep.subr.mxu0 0.0
        %1149 = vmatpush1.xpose.msra.mxu0 0.0
        %1150 = vmatprep.subr.mxu0 0.0
        %1151 = vmatpush1.xpose.msra.mxu0 0.0
        %1152 = vmatprep.subr.mxu0 0.0
        %1153 = vmatpush1.xpose.msra.mxu0 0.0
        %1154 = vmatprep.subr.mxu0 0.0
        %1155 = vmatpush1.xpose.msra.mxu0 0.0
        %1156 = vmatprep.subr.mxu0 0.0
        %1157 = vmatpush1.xpose.msra.mxu0 0.0
        %1158 = vmatprep.subr.mxu0 0.0
        %1159 = vmatpush1.xpose.msra.mxu0 0.0
        %1160 = vmatprep.subr.mxu0 0.0
        %1161 = vmatpush1.xpose.msra.mxu0 0.0
        %1162 = vmatprep.subr.mxu0 0.0
        %1163 = vmatpush1.xpose.msra.mxu0 0.0
        %1164 = vmatprep.mubr.f32.mxu0 0.0
        %1165 = vmatmul.mubr.f32.gmra.mrb[0].mxu0 %v1096
        %v1166 = vpop.f32.mrb[0].mxu0
        %v1167 = vadd.f32 0.0, %v1166
        %v1168 = vpop.f32.mrb[0].mxu0
        %1169 = vdwg.mxu0
        %1171 = vrot.lane.b32.xlu0 %v644, 124
        %v1172 = vpop.permute.xlu0 %1171
        %v1174 = vsel %vm938, %v930, 0
        %v1176 = vsel %vm938, %v1172, 0
        %1178 = vmatprep.subr.mxu0 0.0
        %1179 = vmatpush1.xpose.msra.mxu0 %v1176
        %1180 = vmatprep.subr.mxu0 0.0
        %1181 = vmatpush1.xpose.msra.mxu0 0.0
        %1182 = vmatprep.subr.mxu0 0.0
        %1183 = vmatpush1.xpose.msra.mxu0 0.0
        %1184 = vmatprep.subr.mxu0 0.0
        %1185 = vmatpush1.xpose.msra.mxu0 0.0
        %1186 = vmatprep.subr.mxu0 0.0
        %1187 = vmatpush1.xpose.msra.mxu0 0.0
        %1188 = vmatprep.subr.mxu0 0.0
        %1189 = vmatpush1.xpose.msra.mxu0 0.0
        %1190 = vmatprep.subr.mxu0 0.0
        %1191 = vmatpush1.xpose.msra.mxu0 0.0
        %1192 = vmatprep.subr.mxu0 0.0
        %1193 = vmatpush1.xpose.msra.mxu0 0.0
        %1194 = vmatprep.subr.mxu0 0.0
        %1195 = vmatpush1.xpose.msra.mxu0 0.0
        %1196 = vmatprep.subr.mxu0 0.0
        %1197 = vmatpush1.xpose.msra.mxu0 0.0
        %1198 = vmatprep.subr.mxu0 0.0
        %1199 = vmatpush1.xpose.msra.mxu0 0.0
        %1200 = vmatprep.subr.mxu0 0.0
        %1201 = vmatpush1.xpose.msra.mxu0 0.0
        %1202 = vmatprep.subr.mxu0 0.0
        %1203 = vmatpush1.xpose.msra.mxu0 0.0
        %1204 = vmatprep.subr.mxu0 0.0
        %1205 = vmatpush1.xpose.msra.mxu0 0.0
        %1206 = vmatprep.subr.mxu0 0.0
        %1207 = vmatpush1.xpose.msra.mxu0 0.0
        %1208 = vmatprep.subr.mxu0 0.0
        %1209 = vmatpush1.xpose.msra.mxu0 0.0
        %1210 = vmatprep.subr.mxu0 0.0
        %1211 = vmatpush1.xpose.msra.mxu0 0.0
        %1212 = vmatprep.subr.mxu0 0.0
        %1213 = vmatpush1.xpose.msra.mxu0 0.0
        %1214 = vmatprep.subr.mxu0 0.0
        %1215 = vmatpush1.xpose.msra.mxu0 0.0
        %1216 = vmatprep.subr.mxu0 0.0
        %1217 = vmatpush1.xpose.msra.mxu0 0.0
        %1218 = vmatprep.subr.mxu0 0.0
        %1219 = vmatpush1.xpose.msra.mxu0 0.0
        %1220 = vmatprep.subr.mxu0 0.0
        %1221 = vmatpush1.xpose.msra.mxu0 0.0
        %1222 = vmatprep.subr.mxu0 0.0
        %1223 = vmatpush1.xpose.msra.mxu0 0.0
        %1224 = vmatprep.subr.mxu0 0.0
        %1225 = vmatpush1.xpose.msra.mxu0 0.0
        %1226 = vmatprep.subr.mxu0 0.0
        %1227 = vmatpush1.xpose.msra.mxu0 0.0
        %1228 = vmatprep.subr.mxu0 0.0
        %1229 = vmatpush1.xpose.msra.mxu0 0.0
        %1230 = vmatprep.subr.mxu0 0.0
        %1231 = vmatpush1.xpose.msra.mxu0 0.0
        %1232 = vmatprep.subr.mxu0 0.0
        %1233 = vmatpush1.xpose.msra.mxu0 0.0
        %1234 = vmatprep.subr.mxu0 0.0
        %1235 = vmatpush1.xpose.msra.mxu0 0.0
        %1236 = vmatprep.subr.mxu0 0.0
        %1237 = vmatpush1.xpose.msra.mxu0 0.0
        %1238 = vmatprep.subr.mxu0 0.0
        %1239 = vmatpush1.xpose.msra.mxu0 0.0
        %1240 = vmatprep.subr.mxu0 0.0
        %1241 = vmatpush1.xpose.msra.mxu0 0.0
        %1242 = vmatprep.mubr.f32.mxu0 0.0
        %1243 = vmatmul.mubr.f32.gmra.mrb[0].mxu0 %v1174
        %v1244 = vpop.f32.mrb[0].mxu0
        %v1245 = vadd.f32 0.0, %v1244
        %v1246 = vpop.f32.mrb[0].mxu0
        %1247 = vdwg.mxu0
        %1249 = vrot.lane.b32.xlu0 %v714, 124
        %v1250 = vpop.permute.xlu0 %1249
        %v1252 = vsel %vm938, %v931, 0
        %v1254 = vsel %vm938, %v1250, 0
        %1256 = vmatprep.subr.mxu0 0.0
        %1257 = vmatpush1.xpose.msra.mxu0 %v1254
        %1258 = vmatprep.subr.mxu0 0.0
        %1259 = vmatpush1.xpose.msra.mxu0 0.0
        %1260 = vmatprep.subr.mxu0 0.0
        %1261 = vmatpush1.xpose.msra.mxu0 0.0
        %1262 = vmatprep.subr.mxu0 0.0
        %1263 = vmatpush1.xpose.msra.mxu0 0.0
        %1264 = vmatprep.subr.mxu0 0.0
        %1265 = vmatpush1.xpose.msra.mxu0 0.0
        %1266 = vmatprep.subr.mxu0 0.0
        %1267 = vmatpush1.xpose.msra.mxu0 0.0
        %1268 = vmatprep.subr.mxu0 0.0
        %1269 = vmatpush1.xpose.msra.mxu0 0.0
        %1270 = vmatprep.subr.mxu0 0.0
        %1271 = vmatpush1.xpose.msra.mxu0 0.0
        %1272 = vmatprep.subr.mxu0 0.0
        %1273 = vmatpush1.xpose.msra.mxu0 0.0
        %1274 = vmatprep.subr.mxu0 0.0
        %1275 = vmatpush1.xpose.msra.mxu0 0.0
        %1276 = vmatprep.subr.mxu0 0.0
        %1277 = vmatpush1.xpose.msra.mxu0 0.0
        %1278 = vmatprep.subr.mxu0 0.0
        %1279 = vmatpush1.xpose.msra.mxu0 0.0
        %1280 = vmatprep.subr.mxu0 0.0
        %1281 = vmatpush1.xpose.msra.mxu0 0.0
        %1282 = vmatprep.subr.mxu0 0.0
        %1283 = vmatpush1.xpose.msra.mxu0 0.0
        %1284 = vmatprep.subr.mxu0 0.0
        %1285 = vmatpush1.xpose.msra.mxu0 0.0
        %1286 = vmatprep.subr.mxu0 0.0
        %1287 = vmatpush1.xpose.msra.mxu0 0.0
        %1288 = vmatprep.subr.mxu0 0.0
        %1289 = vmatpush1.xpose.msra.mxu0 0.0
        %1290 = vmatprep.subr.mxu0 0.0
        %1291 = vmatpush1.xpose.msra.mxu0 0.0
        %1292 = vmatprep.subr.mxu0 0.0
        %1293 = vmatpush1.xpose.msra.mxu0 0.0
        %1294 = vmatprep.subr.mxu0 0.0
        %1295 = vmatpush1.xpose.msra.mxu0 0.0
        %1296 = vmatprep.subr.mxu0 0.0
        %1297 = vmatpush1.xpose.msra.mxu0 0.0
        %1298 = vmatprep.subr.mxu0 0.0
        %1299 = vmatpush1.xpose.msra.mxu0 0.0
        %1300 = vmatprep.subr.mxu0 0.0
        %1301 = vmatpush1.xpose.msra.mxu0 0.0
        %1302 = vmatprep.subr.mxu0 0.0
        %1303 = vmatpush1.xpose.msra.mxu0 0.0
        %1304 = vmatprep.subr.mxu0 0.0
        %1305 = vmatpush1.xpose.msra.mxu0 0.0
        %1306 = vmatprep.subr.mxu0 0.0
        %1307 = vmatpush1.xpose.msra.mxu0 0.0
        %1308 = vmatprep.subr.mxu0 0.0
        %1309 = vmatpush1.xpose.msra.mxu0 0.0
        %1310 = vmatprep.subr.mxu0 0.0
        %1311 = vmatpush1.xpose.msra.mxu0 0.0
        %1312 = vmatprep.subr.mxu0 0.0
        %1313 = vmatpush1.xpose.msra.mxu0 0.0
        %1314 = vmatprep.subr.mxu0 0.0
        %1315 = vmatpush1.xpose.msra.mxu0 0.0
        %1316 = vmatprep.subr.mxu0 0.0
        %1317 = vmatpush1.xpose.msra.mxu0 0.0
        %1318 = vmatprep.subr.mxu0 0.0
        %1319 = vmatpush1.xpose.msra.mxu0 0.0
        %1320 = vmatprep.mubr.f32.mxu0 0.0
        %1321 = vmatmul.mubr.f32.gmra.mrb[0].mxu0 %v1252
        %v1322 = vpop.f32.mrb[0].mxu0
        %v1323 = vadd.f32 0.0, %v1322
        %v1324 = vpop.f32.mrb[0].mxu0
        %1325 = vdwg.mxu0
        %1327 = vrot.lane.b32.xlu0 %v784, 124
        %v1328 = vpop.permute.xlu0 %1327
        %v1330 = vsel %vm938, %v932, 0
        %v1332 = vsel %vm938, %v1328, 0
        %1334 = vmatprep.subr.mxu0 0.0
        %1335 = vmatpush1.xpose.msra.mxu0 %v1332
        %1336 = vmatprep.subr.mxu0 0.0
        %1337 = vmatpush1.xpose.msra.mxu0 0.0
        %1338 = vmatprep.subr.mxu0 0.0
        %1339 = vmatpush1.xpose.msra.mxu0 0.0
        %1340 = vmatprep.subr.mxu0 0.0
        %1341 = vmatpush1.xpose.msra.mxu0 0.0
        %1342 = vmatprep.subr.mxu0 0.0
        %1343 = vmatpush1.xpose.msra.mxu0 0.0
        %1344 = vmatprep.subr.mxu0 0.0
        %1345 = vmatpush1.xpose.msra.mxu0 0.0
        %1346 = vmatprep.subr.mxu0 0.0
        %1347 = vmatpush1.xpose.msra.mxu0 0.0
        %1348 = vmatprep.subr.mxu0 0.0
        %1349 = vmatpush1.xpose.msra.mxu0 0.0
        %1350 = vmatprep.subr.mxu0 0.0
        %1351 = vmatpush1.xpose.msra.mxu0 0.0
        %1352 = vmatprep.subr.mxu0 0.0
        %1353 = vmatpush1.xpose.msra.mxu0 0.0
        %1354 = vmatprep.subr.mxu0 0.0
        %1355 = vmatpush1.xpose.msra.mxu0 0.0
        %1356 = vmatprep.subr.mxu0 0.0
        %1357 = vmatpush1.xpose.msra.mxu0 0.0
        %1358 = vmatprep.subr.mxu0 0.0
        %1359 = vmatpush1.xpose.msra.mxu0 0.0
        %1360 = vmatprep.subr.mxu0 0.0
        %1361 = vmatpush1.xpose.msra.mxu0 0.0
        %1362 = vmatprep.subr.mxu0 0.0
        %1363 = vmatpush1.xpose.msra.mxu0 0.0
        %1364 = vmatprep.subr.mxu0 0.0
        %1365 = vmatpush1.xpose.msra.mxu0 0.0
        %1366 = vmatprep.subr.mxu0 0.0
        %1367 = vmatpush1.xpose.msra.mxu0 0.0
        %1368 = vmatprep.subr.mxu0 0.0
        %1369 = vmatpush1.xpose.msra.mxu0 0.0
        %1370 = vmatprep.subr.mxu0 0.0
        %1371 = vmatpush1.xpose.msra.mxu0 0.0
        %1372 = vmatprep.subr.mxu0 0.0
        %1373 = vmatpush1.xpose.msra.mxu0 0.0
        %1374 = vmatprep.subr.mxu0 0.0
        %1375 = vmatpush1.xpose.msra.mxu0 0.0
        %1376 = vmatprep.subr.mxu0 0.0
        %1377 = vmatpush1.xpose.msra.mxu0 0.0
        %1378 = vmatprep.subr.mxu0 0.0
        %1379 = vmatpush1.xpose.msra.mxu0 0.0
        %1380 = vmatprep.subr.mxu0 0.0
        %1381 = vmatpush1.xpose.msra.mxu0 0.0
        %1382 = vmatprep.subr.mxu0 0.0
        %1383 = vmatpush1.xpose.msra.mxu0 0.0
        %1384 = vmatprep.subr.mxu0 0.0
        %1385 = vmatpush1.xpose.msra.mxu0 0.0
        %1386 = vmatprep.subr.mxu0 0.0
        %1387 = vmatpush1.xpose.msra.mxu0 0.0
        %1388 = vmatprep.subr.mxu0 0.0
        %1389 = vmatpush1.xpose.msra.mxu0 0.0
        %1390 = vmatprep.subr.mxu0 0.0
        %1391 = vmatpush1.xpose.msra.mxu0 0.0
        %1392 = vmatprep.subr.mxu0 0.0
        %1393 = vmatpush1.xpose.msra.mxu0 0.0
        %1394 = vmatprep.subr.mxu0 0.0
        %1395 = vmatpush1.xpose.msra.mxu0 0.0
        %1396 = vmatprep.subr.mxu0 0.0
        %1397 = vmatpush1.xpose.msra.mxu0 0.0
        %1398 = vmatprep.mubr.f32.mxu0 0.0
        %1399 = vmatmul.mubr.f32.gmra.mrb[0].mxu0 %v1330
        %v1400 = vpop.f32.mrb[0].mxu0
        %v1401 = vadd.f32 0.0, %v1400
        %v1402 = vpop.f32.mrb[0].mxu0
        %1403 = vdwg.mxu0
        %1405 = vrot.lane.b32.xlu0 %v854, 124
        %v1406 = vpop.permute.xlu0 %1405
        %v1408 = vsel %vm938, %v933, 0
        %v1410 = vsel %vm938, %v1406, 0
        %1412 = vmatprep.subr.mxu0 0.0
        %1413 = vmatpush1.xpose.msra.mxu0 %v1410
        %1414 = vmatprep.subr.mxu0 0.0
        %1415 = vmatpush1.xpose.msra.mxu0 0.0
        %1416 = vmatprep.subr.mxu0 0.0
        %1417 = vmatpush1.xpose.msra.mxu0 0.0
        %1418 = vmatprep.subr.mxu0 0.0
        %1419 = vmatpush1.xpose.msra.mxu0 0.0
        %1420 = vmatprep.subr.mxu0 0.0
        %1421 = vmatpush1.xpose.msra.mxu0 0.0
        %1422 = vmatprep.subr.mxu0 0.0
        %1423 = vmatpush1.xpose.msra.mxu0 0.0
        %1424 = vmatprep.subr.mxu0 0.0
        %1425 = vmatpush1.xpose.msra.mxu0 0.0
        %1426 = vmatprep.subr.mxu0 0.0
        %1427 = vmatpush1.xpose.msra.mxu0 0.0
        %1428 = vmatprep.subr.mxu0 0.0
        %1429 = vmatpush1.xpose.msra.mxu0 0.0
        %1430 = vmatprep.subr.mxu0 0.0
        %1431 = vmatpush1.xpose.msra.mxu0 0.0
        %1432 = vmatprep.subr.mxu0 0.0
        %1433 = vmatpush1.xpose.msra.mxu0 0.0
        %1434 = vmatprep.subr.mxu0 0.0
        %1435 = vmatpush1.xpose.msra.mxu0 0.0
        %1436 = vmatprep.subr.mxu0 0.0
        %1437 = vmatpush1.xpose.msra.mxu0 0.0
        %1438 = vmatprep.subr.mxu0 0.0
        %1439 = vmatpush1.xpose.msra.mxu0 0.0
        %1440 = vmatprep.subr.mxu0 0.0
        %1441 = vmatpush1.xpose.msra.mxu0 0.0
        %1442 = vmatprep.subr.mxu0 0.0
        %1443 = vmatpush1.xpose.msra.mxu0 0.0
        %1444 = vmatprep.subr.mxu0 0.0
        %1445 = vmatpush1.xpose.msra.mxu0 0.0
        %1446 = vmatprep.subr.mxu0 0.0
        %1447 = vmatpush1.xpose.msra.mxu0 0.0
        %1448 = vmatprep.subr.mxu0 0.0
        %1449 = vmatpush1.xpose.msra.mxu0 0.0
        %1450 = vmatprep.subr.mxu0 0.0
        %1451 = vmatpush1.xpose.msra.mxu0 0.0
        %1452 = vmatprep.subr.mxu0 0.0
        %1453 = vmatpush1.xpose.msra.mxu0 0.0
        %1454 = vmatprep.subr.mxu0 0.0
        %1455 = vmatpush1.xpose.msra.mxu0 0.0
        %1456 = vmatprep.subr.mxu0 0.0
        %1457 = vmatpush1.xpose.msra.mxu0 0.0
        %1458 = vmatprep.subr.mxu0 0.0
        %1459 = vmatpush1.xpose.msra.mxu0 0.0
        %1460 = vmatprep.subr.mxu0 0.0
        %1461 = vmatpush1.xpose.msra.mxu0 0.0
        %1462 = vmatprep.subr.mxu0 0.0
        %1463 = vmatpush1.xpose.msra.mxu0 0.0
        %1464 = vmatprep.subr.mxu0 0.0
        %1465 = vmatpush1.xpose.msra.mxu0 0.0
        %1466 = vmatprep.subr.mxu0 0.0
        %1467 = vmatpush1.xpose.msra.mxu0 0.0
        %1468 = vmatprep.subr.mxu0 0.0
        %1469 = vmatpush1.xpose.msra.mxu0 0.0
        %1470 = vmatprep.subr.mxu0 0.0
        %1471 = vmatpush1.xpose.msra.mxu0 0.0
        %1472 = vmatprep.subr.mxu0 0.0
        %1473 = vmatpush1.xpose.msra.mxu0 0.0
        %1474 = vmatprep.subr.mxu0 0.0
        %1475 = vmatpush1.xpose.msra.mxu0 0.0
        %1476 = vmatprep.mubr.f32.mxu0 0.0
        %1477 = vmatmul.mubr.f32.gmra.mrb[0].mxu0 %v1408
        %v1478 = vpop.f32.mrb[0].mxu0
        %v1479 = vadd.f32 0.0, %v1478
        %v1480 = vpop.f32.mrb[0].mxu0
        %1481 = vdwg.mxu0
        %1483 = vrot.lane.b32.xlu0 %v924, 124
        %v1484 = vpop.permute.xlu0 %1483
        %v1486 = vsel %vm938, %v934, 0
        %v1488 = vsel %vm938, %v1484, 0
        %1490 = vmatprep.subr.mxu0 0.0
        %1491 = vmatpush1.xpose.msra.mxu0 %v1488
        %1492 = vmatprep.subr.mxu0 0.0
        %1493 = vmatpush1.xpose.msra.mxu0 0.0
        %1494 = vmatprep.subr.mxu0 0.0
        %1495 = vmatpush1.xpose.msra.mxu0 0.0
        %1496 = vmatprep.subr.mxu0 0.0
        %1497 = vmatpush1.xpose.msra.mxu0 0.0
        %1498 = vmatprep.subr.mxu0 0.0
        %1499 = vmatpush1.xpose.msra.mxu0 0.0
        %1500 = vmatprep.subr.mxu0 0.0
        %1501 = vmatpush1.xpose.msra.mxu0 0.0
        %1502 = vmatprep.subr.mxu0 0.0
        %1503 = vmatpush1.xpose.msra.mxu0 0.0
        %1504 = vmatprep.subr.mxu0 0.0
        %1505 = vmatpush1.xpose.msra.mxu0 0.0
        %1506 = vmatprep.subr.mxu0 0.0
        %1507 = vmatpush1.xpose.msra.mxu0 0.0
        %1508 = vmatprep.subr.mxu0 0.0
        %1509 = vmatpush1.xpose.msra.mxu0 0.0
        %1510 = vmatprep.subr.mxu0 0.0
        %1511 = vmatpush1.xpose.msra.mxu0 0.0
        %1512 = vmatprep.subr.mxu0 0.0
        %1513 = vmatpush1.xpose.msra.mxu0 0.0
        %1514 = vmatprep.subr.mxu0 0.0
        %1515 = vmatpush1.xpose.msra.mxu0 0.0
        %1516 = vmatprep.subr.mxu0 0.0
        %1517 = vmatpush1.xpose.msra.mxu0 0.0
        %1518 = vmatprep.subr.mxu0 0.0
        %1519 = vmatpush1.xpose.msra.mxu0 0.0
        %1520 = vmatprep.subr.mxu0 0.0
        %1521 = vmatpush1.xpose.msra.mxu0 0.0
        %1522 = vmatprep.subr.mxu0 0.0
        %1523 = vmatpush1.xpose.msra.mxu0 0.0
        %1524 = vmatprep.subr.mxu0 0.0
        %1525 = vmatpush1.xpose.msra.mxu0 0.0
        %1526 = vmatprep.subr.mxu0 0.0
        %1527 = vmatpush1.xpose.msra.mxu0 0.0
        %1528 = vmatprep.subr.mxu0 0.0
        %1529 = vmatpush1.xpose.msra.mxu0 0.0
        %1530 = vmatprep.subr.mxu0 0.0
        %1531 = vmatpush1.xpose.msra.mxu0 0.0
        %1532 = vmatprep.subr.mxu0 0.0
        %1533 = vmatpush1.xpose.msra.mxu0 0.0
        %1534 = vmatprep.subr.mxu0 0.0
        %1535 = vmatpush1.xpose.msra.mxu0 0.0
        %1536 = vmatprep.subr.mxu0 0.0
        %1537 = vmatpush1.xpose.msra.mxu0 0.0
        %1538 = vmatprep.subr.mxu0 0.0
        %1539 = vmatpush1.xpose.msra.mxu0 0.0
        %1540 = vmatprep.subr.mxu0 0.0
        %1541 = vmatpush1.xpose.msra.mxu0 0.0
        %1542 = vmatprep.subr.mxu0 0.0
        %1543 = vmatpush1.xpose.msra.mxu0 0.0
        %1544 = vmatprep.subr.mxu0 0.0
        %1545 = vmatpush1.xpose.msra.mxu0 0.0
        %1546 = vmatprep.subr.mxu0 0.0
        %1547 = vmatpush1.xpose.msra.mxu0 0.0
        %1548 = vmatprep.subr.mxu0 0.0
        %1549 = vmatpush1.xpose.msra.mxu0 0.0
        %1550 = vmatprep.subr.mxu0 0.0
        %1551 = vmatpush1.xpose.msra.mxu0 0.0
        %1552 = vmatprep.subr.mxu0 0.0
        %1553 = vmatpush1.xpose.msra.mxu0 0.0
        %1554 = vmatprep.mubr.f32.mxu0 0.0
        %1555 = vmatmul.mubr.f32.gmra.mrb[0].mxu0 %v1486
        %v1556 = vpop.f32.mrb[0].mxu0
        %v1557 = vadd.f32 0.0, %v1556
        %v1558 = vpop.f32.mrb[0].mxu0
        %1559 = vdwg.mxu0
        %vm1560 = vcmask 64512
        %v1561 = vsel %vm1560, %v1011, -inf
        %1562 = vmax.xlane.f32.xlu0 %v1561
        %v1563 = vpop.xlane.xlu0 %1562
        %v1564 = vsel %vm1560, %v1089, -inf
        %1565 = vmax.xlane.f32.xlu0 %v1564
        %v1566 = vpop.xlane.xlu0 %1565
        %v1567 = vsel %vm1560, %v1167, -inf
        %1568 = vmax.xlane.f32.xlu0 %v1567
        %v1569 = vpop.xlane.xlu0 %1568
        %v1570 = vsel %vm1560, %v1245, -inf
        %1571 = vmax.xlane.f32.xlu0 %v1570
        %v1572 = vpop.xlane.xlu0 %1571
        %v1573 = vsel %vm1560, %v1323, -inf
        %1574 = vmax.xlane.f32.xlu0 %v1573
        %v1575 = vpop.xlane.xlu0 %1574
        %v1576 = vsel %vm1560, %v1401, -inf
        %1577 = vmax.xlane.f32.xlu0 %v1576
        %v1578 = vpop.xlane.xlu0 %1577
        %v1579 = vsel %vm1560, %v1479, -inf
        %1580 = vmax.xlane.f32.xlu0 %v1579
        %v1581 = vpop.xlane.xlu0 %1580
        %v1582 = vsel %vm1560, %v1557, -inf
        %1583 = vmax.xlane.f32.xlu0 %v1582
        %v1584 = vpop.xlane.xlu0 %1583
        %v1585 = vsub.f32 %v1011, %v1563
        %v1586 = vsub.f32 %v1089, %v1566
        %v1587 = vsub.f32 %v1167, %v1569
        %v1588 = vsub.f32 %v1245, %v1572
        %v1589 = vsub.f32 %v1323, %v1575
        %v1590 = vsub.f32 %v1401, %v1578
        %v1591 = vsub.f32 %v1479, %v1581
        %v1592 = vsub.f32 %v1557, %v1584
        %v1593 = vmul.f32 %v1585, 1.442695
        %v1594 = vpow.pop %v1593
        %v1595 = vmul.f32 %v1586, 1.442695
        %v1596 = vpow.pop %v1595
        %v1597 = vmul.f32 %v1587, 1.442695
        %v1598 = vpow.pop %v1597
        %v1599 = vmul.f32 %v1588, 1.442695
        %v1600 = vpow.pop %v1599
        %v1601 = vmul.f32 %v1589, 1.442695
        %v1602 = vpow.pop %v1601
        %v1603 = vmul.f32 %v1590, 1.442695
        %v1604 = vpow.pop %v1603
        %v1605 = vmul.f32 %v1591, 1.442695
        %v1606 = vpow.pop %v1605
        %v1607 = vmul.f32 %v1592, 1.442695
        %v1608 = vpow.pop %v1607
        %v1609 = vsel %vm1560, %v1594, 0.0
        %1610 = vadd.xlane.f32.xlu0 %v1609
        %v1611 = vpop.xlane.xlu0 %1610
        %v1612 = vsel %vm1560, %v1596, 0.0
        %1613 = vadd.xlane.f32.xlu0 %v1612
        %v1614 = vpop.xlane.xlu0 %1613
        %v1615 = vsel %vm1560, %v1598, 0.0
        %1616 = vadd.xlane.f32.xlu0 %v1615
        %v1617 = vpop.xlane.xlu0 %1616
        %v1618 = vsel %vm1560, %v1600, 0.0
        %1619 = vadd.xlane.f32.xlu0 %v1618
        %v1620 = vpop.xlane.xlu0 %1619
        %v1621 = vsel %vm1560, %v1602, 0.0
        %1622 = vadd.xlane.f32.xlu0 %v1621
        %v1623 = vpop.xlane.xlu0 %1622
        %v1624 = vsel %vm1560, %v1604, 0.0
        %1625 = vadd.xlane.f32.xlu0 %v1624
        %v1626 = vpop.xlane.xlu0 %1625
        %v1627 = vsel %vm1560, %v1606, 0.0
        %1628 = vadd.xlane.f32.xlu0 %v1627
        %v1629 = vpop.xlane.xlu0 %1628
        %v1630 = vsel %vm1560, %v1608, 0.0
        %1631 = vadd.xlane.f32.xlu0 %v1630
        %v1632 = vpop.xlane.xlu0 %1631
        %v1633 = vrcp.pop %v1611
        %v1634 = vrcp.pop %v1614
        %v1635 = vrcp.pop %v1617
        %v1636 = vrcp.pop %v1620
        %v1637 = vrcp.pop %v1623
        %v1638 = vrcp.pop %v1626
        %v1639 = vrcp.pop %v1629
        %v1640 = vrcp.pop %v1632
        %v1641 = vmul.f32 %v1594, %v1633
        %v1642 = vmul.f32 %v1596, %v1634
        %v1643 = vmul.f32 %v1598, %v1635
        %v1644 = vmul.f32 %v1600, %v1636
        %v1645 = vmul.f32 %v1602, %v1637
        %v1646 = vmul.f32 %v1604, %v1638
        %v1647 = vmul.f32 %v1606, %v1639
        %v1648 = vmul.f32 %v1608, %v1640
        %1649 = vrot.lane.b32.xlu0 %v434, 120
        %v1650 = vpop.permute.xlu0 %1649
        %v1653 = vsel %vm1560, %v1641, 0
        %1655 = vmatprep.subr.mxu0 0.0
        %1656 = vmatpush1.msra.mxu0 %v1650
        %1657 = vmatprep.subr.mxu0 0.0
        %1658 = vmatpush1.msra.mxu0 0.0
        %1659 = vmatprep.subr.mxu0 0.0
        %1660 = vmatpush1.msra.mxu0 0.0
        %1661 = vmatprep.subr.mxu0 0.0
        %1662 = vmatpush1.msra.mxu0 0.0
        %1663 = vmatprep.subr.mxu0 0.0
        %1664 = vmatpush1.msra.mxu0 0.0
        %1665 = vmatprep.subr.mxu0 0.0
        %1666 = vmatpush1.msra.mxu0 0.0
        %1667 = vmatprep.subr.mxu0 0.0
        %1668 = vmatpush1.msra.mxu0 0.0
        %1669 = vmatprep.subr.mxu0 0.0
        %1670 = vmatpush1.msra.mxu0 0.0
        %1671 = vmatprep.subr.mxu0 0.0
        %1672 = vmatpush1.msra.mxu0 0.0
        %1673 = vmatprep.subr.mxu0 0.0
        %1674 = vmatpush1.msra.mxu0 0.0
        %1675 = vmatprep.subr.mxu0 0.0
        %1676 = vmatpush1.msra.mxu0 0.0
        %1677 = vmatprep.subr.mxu0 0.0
        %1678 = vmatpush1.msra.mxu0 0.0
        %1679 = vmatprep.subr.mxu0 0.0
        %1680 = vmatpush1.msra.mxu0 0.0
        %1681 = vmatprep.subr.mxu0 0.0
        %1682 = vmatpush1.msra.mxu0 0.0
        %1683 = vmatprep.subr.mxu0 0.0
        %1684 = vmatpush1.msra.mxu0 0.0
        %1685 = vmatprep.subr.mxu0 0.0
        %1686 = vmatpush1.msra.mxu0 0.0
        %1687 = vmatprep.subr.mxu0 0.0
        %1688 = vmatpush1.msra.mxu0 0.0
        %1689 = vmatprep.subr.mxu0 0.0
        %1690 = vmatpush1.msra.mxu0 0.0
        %1691 = vmatprep.subr.mxu0 0.0
        %1692 = vmatpush1.msra.mxu0 0.0
        %1693 = vmatprep.subr.mxu0 0.0
        %1694 = vmatpush1.msra.mxu0 0.0
        %1695 = vmatprep.subr.mxu0 0.0
        %1696 = vmatpush1.msra.mxu0 0.0
        %1697 = vmatprep.subr.mxu0 0.0
        %1698 = vmatpush1.msra.mxu0 0.0
        %1699 = vmatprep.subr.mxu0 0.0
        %1700 = vmatpush1.msra.mxu0 0.0
        %1701 = vmatprep.subr.mxu0 0.0
        %1702 = vmatpush1.msra.mxu0 0.0
        %1703 = vmatprep.subr.mxu0 0.0
        %1704 = vmatpush1.msra.mxu0 0.0
        %1705 = vmatprep.subr.mxu0 0.0
        %1706 = vmatpush1.msra.mxu0 0.0
        %1707 = vmatprep.subr.mxu0 0.0
        %1708 = vmatpush1.msra.mxu0 0.0
        %1709 = vmatprep.subr.mxu0 0.0
        %1710 = vmatpush1.msra.mxu0 0.0
        %1711 = vmatprep.subr.mxu0 0.0
        %1712 = vmatpush1.msra.mxu0 0.0
        %1713 = vmatprep.subr.mxu0 0.0
        %1714 = vmatpush1.msra.mxu0 0.0
        %1715 = vmatprep.subr.mxu0 0.0
        %1716 = vmatpush1.msra.mxu0 0.0
        %1717 = vmatprep.subr.mxu0 0.0
        %1718 = vmatpush1.msra.mxu0 0.0
        %1719 = vmatprep.mubr.f32.mxu0 0.0
        %1720 = vmatmul.mubr.f32.gmra.mrb[0].mxu0 %v1653
        %v1721 = vpop.f32.mrb[0].mxu0
        %v1722 = vadd.f32 0.0, %v1721
        %v1723 = vpop.f32.mrb[0].mxu0
        %1724 = vdwg.mxu0
        %1725 = vrot.lane.b32.xlu0 %v504, 120
        %v1726 = vpop.permute.xlu0 %1725
        %v1729 = vsel %vm1560, %v1642, 0
        %1731 = vmatprep.subr.mxu0 0.0
        %1732 = vmatpush1.msra.mxu0 %v1726
        %1733 = vmatprep.subr.mxu0 0.0
        %1734 = vmatpush1.msra.mxu0 0.0
        %1735 = vmatprep.subr.mxu0 0.0
        %1736 = vmatpush1.msra.mxu0 0.0
        %1737 = vmatprep.subr.mxu0 0.0
        %1738 = vmatpush1.msra.mxu0 0.0
        %1739 = vmatprep.subr.mxu0 0.0
        %1740 = vmatpush1.msra.mxu0 0.0
        %1741 = vmatprep.subr.mxu0 0.0
        %1742 = vmatpush1.msra.mxu0 0.0
        %1743 = vmatprep.subr.mxu0 0.0
        %1744 = vmatpush1.msra.mxu0 0.0
        %1745 = vmatprep.subr.mxu0 0.0
        %1746 = vmatpush1.msra.mxu0 0.0
        %1747 = vmatprep.subr.mxu0 0.0
        %1748 = vmatpush1.msra.mxu0 0.0
        %1749 = vmatprep.subr.mxu0 0.0
        %1750 = vmatpush1.msra.mxu0 0.0
        %1751 = vmatprep.subr.mxu0 0.0
        %1752 = vmatpush1.msra.mxu0 0.0
        %1753 = vmatprep.subr.mxu0 0.0
        %1754 = vmatpush1.msra.mxu0 0.0
        %1755 = vmatprep.subr.mxu0 0.0
        %1756 = vmatpush1.msra.mxu0 0.0
        %1757 = vmatprep.subr.mxu0 0.0
        %1758 = vmatpush1.msra.mxu0 0.0
        %1759 = vmatprep.subr.mxu0 0.0
        %1760 = vmatpush1.msra.mxu0 0.0
        %1761 = vmatprep.subr.mxu0 0.0
        %1762 = vmatpush1.msra.mxu0 0.0
        %1763 = vmatprep.subr.mxu0 0.0
        %1764 = vmatpush1.msra.mxu0 0.0
        %1765 = vmatprep.subr.mxu0 0.0
        %1766 = vmatpush1.msra.mxu0 0.0
        %1767 = vmatprep.subr.mxu0 0.0
        %1768 = vmatpush1.msra.mxu0 0.0
        %1769 = vmatprep.subr.mxu0 0.0
        %1770 = vmatpush1.msra.mxu0 0.0
        %1771 = vmatprep.subr.mxu0 0.0
        %1772 = vmatpush1.msra.mxu0 0.0
        %1773 = vmatprep.subr.mxu0 0.0
        %1774 = vmatpush1.msra.mxu0 0.0
        %1775 = vmatprep.subr.mxu0 0.0
        %1776 = vmatpush1.msra.mxu0 0.0
        %1777 = vmatprep.subr.mxu0 0.0
        %1778 = vmatpush1.msra.mxu0 0.0
        %1779 = vmatprep.subr.mxu0 0.0
        %1780 = vmatpush1.msra.mxu0 0.0
        %1781 = vmatprep.subr.mxu0 0.0
        %1782 = vmatpush1.msra.mxu0 0.0
        %1783 = vmatprep.subr.mxu0 0.0
        %1784 = vmatpush1.msra.mxu0 0.0
        %1785 = vmatprep.subr.mxu0 0.0
        %1786 = vmatpush1.msra.mxu0 0.0
        %1787 = vmatprep.subr.mxu0 0.0
        %1788 = vmatpush1.msra.mxu0 0.0
        %1789 = vmatprep.subr.mxu0 0.0
        %1790 = vmatpush1.msra.mxu0 0.0
        %1791 = vmatprep.subr.mxu0 0.0
        %1792 = vmatpush1.msra.mxu0 0.0
        %1793 = vmatprep.subr.mxu0 0.0
        %1794 = vmatpush1.msra.mxu0 0.0
        %1795 = vmatprep.mubr.f32.mxu0 0.0
        %1796 = vmatmul.mubr.f32.gmra.mrb[0].mxu0 %v1729
        %v1797 = vpop.f32.mrb[0].mxu0
        %v1798 = vadd.f32 0.0, %v1797
        %v1799 = vpop.f32.mrb[0].mxu0
        %1800 = vdwg.mxu0
        %1801 = vrot.lane.b32.xlu0 %v574, 120
        %v1802 = vpop.permute.xlu0 %1801
        %v1805 = vsel %vm1560, %v1643, 0
        %1807 = vmatprep.subr.mxu0 0.0
        %1808 = vmatpush1.msra.mxu0 %v1802
        %1809 = vmatprep.subr.mxu0 0.0
        %1810 = vmatpush1.msra.mxu0 0.0
        %1811 = vmatprep.subr.mxu0 0.0
        %1812 = vmatpush1.msra.mxu0 0.0
        %1813 = vmatprep.subr.mxu0 0.0
        %1814 = vmatpush1.msra.mxu0 0.0
        %1815 = vmatprep.subr.mxu0 0.0
        %1816 = vmatpush1.msra.mxu0 0.0
        %1817 = vmatprep.subr.mxu0 0.0
        %1818 = vmatpush1.msra.mxu0 0.0
        %1819 = vmatprep.subr.mxu0 0.0
        %1820 = vmatpush1.msra.mxu0 0.0
        %1821 = vmatprep.subr.mxu0 0.0
        %1822 = vmatpush1.msra.mxu0 0.0
        %1823 = vmatprep.subr.mxu0 0.0
        %1824 = vmatpush1.msra.mxu0 0.0
        %1825 = vmatprep.subr.mxu0 0.0
        %1826 = vmatpush1.msra.mxu0 0.0
        %1827 = vmatprep.subr.mxu0 0.0
        %1828 = vmatpush1.msra.mxu0 0.0
        %1829 = vmatprep.subr.mxu0 0.0
        %1830 = vmatpush1.msra.mxu0 0.0
        %1831 = vmatprep.subr.mxu0 0.0
        %1832 = vmatpush1.msra.mxu0 0.0
        %1833 = vmatprep.subr.mxu0 0.0
        %1834 = vmatpush1.msra.mxu0 0.0
        %1835 = vmatprep.subr.mxu0 0.0
        %1836 = vmatpush1.msra.mxu0 0.0
        %1837 = vmatprep.subr.mxu0 0.0
        %1838 = vmatpush1.msra.mxu0 0.0
        %1839 = vmatprep.subr.mxu0 0.0
        %1840 = vmatpush1.msra.mxu0 0.0
        %1841 = vmatprep.subr.mxu0 0.0
        %1842 = vmatpush1.msra.mxu0 0.0
        %1843 = vmatprep.subr.mxu0 0.0
        %1844 = vmatpush1.msra.mxu0 0.0
        %1845 = vmatprep.subr.mxu0 0.0
        %1846 = vmatpush1.msra.mxu0 0.0
        %1847 = vmatprep.subr.mxu0 0.0
        %1848 = vmatpush1.msra.mxu0 0.0
        %1849 = vmatprep.subr.mxu0 0.0
        %1850 = vmatpush1.msra.mxu0 0.0
        %1851 = vmatprep.subr.mxu0 0.0
        %1852 = vmatpush1.msra.mxu0 0.0
        %1853 = vmatprep.subr.mxu0 0.0
        %1854 = vmatpush1.msra.mxu0 0.0
        %1855 = vmatprep.subr.mxu0 0.0
        %1856 = vmatpush1.msra.mxu0 0.0
        %1857 = vmatprep.subr.mxu0 0.0
        %1858 = vmatpush1.msra.mxu0 0.0
        %1859 = vmatprep.subr.mxu0 0.0
        %1860 = vmatpush1.msra.mxu0 0.0
        %1861 = vmatprep.subr.mxu0 0.0
        %1862 = vmatpush1.msra.mxu0 0.0
        %1863 = vmatprep.subr.mxu0 0.0
        %1864 = vmatpush1.msra.mxu0 0.0
        %1865 = vmatprep.subr.mxu0 0.0
        %1866 = vmatpush1.msra.mxu0 0.0
        %1867 = vmatprep.subr.mxu0 0.0
        %1868 = vmatpush1.msra.mxu0 0.0
        %1869 = vmatprep.subr.mxu0 0.0
        %1870 = vmatpush1.msra.mxu0 0.0
        %1871 = vmatprep.mubr.f32.mxu0 0.0
        %1872 = vmatmul.mubr.f32.gmra.mrb[0].mxu0 %v1805
        %v1873 = vpop.f32.mrb[0].mxu0
        %v1874 = vadd.f32 0.0, %v1873
        %v1875 = vpop.f32.mrb[0].mxu0
        %1876 = vdwg.mxu0
        %1877 = vrot.lane.b32.xlu0 %v644, 120
        %v1878 = vpop.permute.xlu0 %1877
        %v1881 = vsel %vm1560, %v1644, 0
        %1883 = vmatprep.subr.mxu0 0.0
        %1884 = vmatpush1.msra.mxu0 %v1878
        %1885 = vmatprep.subr.mxu0 0.0
        %1886 = vmatpush1.msra.mxu0 0.0
        %1887 = vmatprep.subr.mxu0 0.0
        %1888 = vmatpush1.msra.mxu0 0.0
        %1889 = vmatprep.subr.mxu0 0.0
        %1890 = vmatpush1.msra.mxu0 0.0
        %1891 = vmatprep.subr.mxu0 0.0
        %1892 = vmatpush1.msra.mxu0 0.0
        %1893 = vmatprep.subr.mxu0 0.0
        %1894 = vmatpush1.msra.mxu0 0.0
        %1895 = vmatprep.subr.mxu0 0.0
        %1896 = vmatpush1.msra.mxu0 0.0
        %1897 = vmatprep.subr.mxu0 0.0
        %1898 = vmatpush1.msra.mxu0 0.0
        %1899 = vmatprep.subr.mxu0 0.0
        %1900 = vmatpush1.msra.mxu0 0.0
        %1901 = vmatprep.subr.mxu0 0.0
        %1902 = vmatpush1.msra.mxu0 0.0
        %1903 = vmatprep.subr.mxu0 0.0
        %1904 = vmatpush1.msra.mxu0 0.0
        %1905 = vmatprep.subr.mxu0 0.0
        %1906 = vmatpush1.msra.mxu0 0.0
        %1907 = vmatprep.subr.mxu0 0.0
        %1908 = vmatpush1.msra.mxu0 0.0
        %1909 = vmatprep.subr.mxu0 0.0
        %1910 = vmatpush1.msra.mxu0 0.0
        %1911 = vmatprep.subr.mxu0 0.0
        %1912 = vmatpush1.msra.mxu0 0.0
        %1913 = vmatprep.subr.mxu0 0.0
        %1914 = vmatpush1.msra.mxu0 0.0
        %1915 = vmatprep.subr.mxu0 0.0
        %1916 = vmatpush1.msra.mxu0 0.0
        %1917 = vmatprep.subr.mxu0 0.0
        %1918 = vmatpush1.msra.mxu0 0.0
        %1919 = vmatprep.subr.mxu0 0.0
        %1920 = vmatpush1.msra.mxu0 0.0
        %1921 = vmatprep.subr.mxu0 0.0
        %1922 = vmatpush1.msra.mxu0 0.0
        %1923 = vmatprep.subr.mxu0 0.0
        %1924 = vmatpush1.msra.mxu0 0.0
        %1925 = vmatprep.subr.mxu0 0.0
        %1926 = vmatpush1.msra.mxu0 0.0
        %1927 = vmatprep.subr.mxu0 0.0
        %1928 = vmatpush1.msra.mxu0 0.0
        %1929 = vmatprep.subr.mxu0 0.0
        %1930 = vmatpush1.msra.mxu0 0.0
        %1931 = vmatprep.subr.mxu0 0.0
        %1932 = vmatpush1.msra.mxu0 0.0
        %1933 = vmatprep.subr.mxu0 0.0
        %1934 = vmatpush1.msra.mxu0 0.0
        %1935 = vmatprep.subr.mxu0 0.0
        %1936 = vmatpush1.msra.mxu0 0.0
        %1937 = vmatprep.subr.mxu0 0.0
        %1938 = vmatpush1.msra.mxu0 0.0
        %1939 = vmatprep.subr.mxu0 0.0
        %1940 = vmatpush1.msra.mxu0 0.0
        %1941 = vmatprep.subr.mxu0 0.0
        %1942 = vmatpush1.msra.mxu0 0.0
        %1943 = vmatprep.subr.mxu0 0.0
        %1944 = vmatpush1.msra.mxu0 0.0
        %1945 = vmatprep.subr.mxu0 0.0
        %1946 = vmatpush1.msra.mxu0 0.0
        %1947 = vmatprep.mubr.f32.mxu0 0.0
        %1948 = vmatmul.mubr.f32.gmra.mrb[0].mxu0 %v1881
        %v1949 = vpop.f32.mrb[0].mxu0
        %v1950 = vadd.f32 0.0, %v1949
        %v1951 = vpop.f32.mrb[0].mxu0
        %1952 = vdwg.mxu0
        %1953 = vrot.lane.b32.xlu0 %v714, 120
        %v1954 = vpop.permute.xlu0 %1953
        %v1957 = vsel %vm1560, %v1645, 0
        %1959 = vmatprep.subr.mxu0 0.0
        %1960 = vmatpush1.msra.mxu0 %v1954
        %1961 = vmatprep.subr.mxu0 0.0
        %1962 = vmatpush1.msra.mxu0 0.0
        %1963 = vmatprep.subr.mxu0 0.0
        %1964 = vmatpush1.msra.mxu0 0.0
        %1965 = vmatprep.subr.mxu0 0.0
        %1966 = vmatpush1.msra.mxu0 0.0
        %1967 = vmatprep.subr.mxu0 0.0
        %1968 = vmatpush1.msra.mxu0 0.0
        %1969 = vmatprep.subr.mxu0 0.0
        %1970 = vmatpush1.msra.mxu0 0.0
        %1971 = vmatprep.subr.mxu0 0.0
        %1972 = vmatpush1.msra.mxu0 0.0
        %1973 = vmatprep.subr.mxu0 0.0
        %1974 = vmatpush1.msra.mxu0 0.0
        %1975 = vmatprep.subr.mxu0 0.0
        %1976 = vmatpush1.msra.mxu0 0.0
        %1977 = vmatprep.subr.mxu0 0.0
        %1978 = vmatpush1.msra.mxu0 0.0
        %1979 = vmatprep.subr.mxu0 0.0
        %1980 = vmatpush1.msra.mxu0 0.0
        %1981 = vmatprep.subr.mxu0 0.0
        %1982 = vmatpush1.msra.mxu0 0.0
        %1983 = vmatprep.subr.mxu0 0.0
        %1984 = vmatpush1.msra.mxu0 0.0
        %1985 = vmatprep.subr.mxu0 0.0
        %1986 = vmatpush1.msra.mxu0 0.0
        %1987 = vmatprep.subr.mxu0 0.0
        %1988 = vmatpush1.msra.mxu0 0.0
        %1989 = vmatprep.subr.mxu0 0.0
        %1990 = vmatpush1.msra.mxu0 0.0
        %1991 = vmatprep.subr.mxu0 0.0
        %1992 = vmatpush1.msra.mxu0 0.0
        %1993 = vmatprep.subr.mxu0 0.0
        %1994 = vmatpush1.msra.mxu0 0.0
        %1995 = vmatprep.subr.mxu0 0.0
        %1996 = vmatpush1.msra.mxu0 0.0
        %1997 = vmatprep.subr.mxu0 0.0
        %1998 = vmatpush1.msra.mxu0 0.0
        %1999 = vmatprep.subr.mxu0 0.0
        %2000 = vmatpush1.msra.mxu0 0.0
        %2001 = vmatprep.subr.mxu0 0.0
        %2002 = vmatpush1.msra.mxu0 0.0
        %2003 = vmatprep.subr.mxu0 0.0
        %2004 = vmatpush1.msra.mxu0 0.0
        %2005 = vmatprep.subr.mxu0 0.0
        %2006 = vmatpush1.msra.mxu0 0.0
        %2007 = vmatprep.subr.mxu0 0.0
        %2008 = vmatpush1.msra.mxu0 0.0
        %2009 = vmatprep.subr.mxu0 0.0
        %2010 = vmatpush1.msra.mxu0 0.0
        %2011 = vmatprep.subr.mxu0 0.0
        %2012 = vmatpush1.msra.mxu0 0.0
        %2013 = vmatprep.subr.mxu0 0.0
        %2014 = vmatpush1.msra.mxu0 0.0
        %2015 = vmatprep.subr.mxu0 0.0
        %2016 = vmatpush1.msra.mxu0 0.0
        %2017 = vmatprep.subr.mxu0 0.0
        %2018 = vmatpush1.msra.mxu0 0.0
        %2019 = vmatprep.subr.mxu0 0.0
        %2020 = vmatpush1.msra.mxu0 0.0
        %2021 = vmatprep.subr.mxu0 0.0
        %2022 = vmatpush1.msra.mxu0 0.0
        %2023 = vmatprep.mubr.f32.mxu0 0.0
        %2024 = vmatmul.mubr.f32.gmra.mrb[0].mxu0 %v1957
        %v2025 = vpop.f32.mrb[0].mxu0
        %v2026 = vadd.f32 0.0, %v2025
        %v2027 = vpop.f32.mrb[0].mxu0
        %2028 = vdwg.mxu0
        %2029 = vrot.lane.b32.xlu0 %v784, 120
        %v2030 = vpop.permute.xlu0 %2029
        %v2033 = vsel %vm1560, %v1646, 0
        %2035 = vmatprep.subr.mxu0 0.0
        %2036 = vmatpush1.msra.mxu0 %v2030
        %2037 = vmatprep.subr.mxu0 0.0
        %2038 = vmatpush1.msra.mxu0 0.0
        %2039 = vmatprep.subr.mxu0 0.0
        %2040 = vmatpush1.msra.mxu0 0.0
        %2041 = vmatprep.subr.mxu0 0.0
        %2042 = vmatpush1.msra.mxu0 0.0
        %2043 = vmatprep.subr.mxu0 0.0
        %2044 = vmatpush1.msra.mxu0 0.0
        %2045 = vmatprep.subr.mxu0 0.0
        %2046 = vmatpush1.msra.mxu0 0.0
        %2047 = vmatprep.subr.mxu0 0.0
        %2048 = vmatpush1.msra.mxu0 0.0
        %2049 = vmatprep.subr.mxu0 0.0
        %2050 = vmatpush1.msra.mxu0 0.0
        %2051 = vmatprep.subr.mxu0 0.0
        %2052 = vmatpush1.msra.mxu0 0.0
        %2053 = vmatprep.subr.mxu0 0.0
        %2054 = vmatpush1.msra.mxu0 0.0
        %2055 = vmatprep.subr.mxu0 0.0
        %2056 = vmatpush1.msra.mxu0 0.0
        %2057 = vmatprep.subr.mxu0 0.0
        %2058 = vmatpush1.msra.mxu0 0.0
        %2059 = vmatprep.subr.mxu0 0.0
        %2060 = vmatpush1.msra.mxu0 0.0
        %2061 = vmatprep.subr.mxu0 0.0
        %2062 = vmatpush1.msra.mxu0 0.0
        %2063 = vmatprep.subr.mxu0 0.0
        %2064 = vmatpush1.msra.mxu0 0.0
        %2065 = vmatprep.subr.mxu0 0.0
        %2066 = vmatpush1.msra.mxu0 0.0
        %2067 = vmatprep.subr.mxu0 0.0
        %2068 = vmatpush1.msra.mxu0 0.0
        %2069 = vmatprep.subr.mxu0 0.0
        %2070 = vmatpush1.msra.mxu0 0.0
        %2071 = vmatprep.subr.mxu0 0.0
        %2072 = vmatpush1.msra.mxu0 0.0
        %2073 = vmatprep.subr.mxu0 0.0
        %2074 = vmatpush1.msra.mxu0 0.0
        %2075 = vmatprep.subr.mxu0 0.0
        %2076 = vmatpush1.msra.mxu0 0.0
        %2077 = vmatprep.subr.mxu0 0.0
        %2078 = vmatpush1.msra.mxu0 0.0
        %2079 = vmatprep.subr.mxu0 0.0
        %2080 = vmatpush1.msra.mxu0 0.0
        %2081 = vmatprep.subr.mxu0 0.0
        %2082 = vmatpush1.msra.mxu0 0.0
        %2083 = vmatprep.subr.mxu0 0.0
        %2084 = vmatpush1.msra.mxu0 0.0
        %2085 = vmatprep.subr.mxu0 0.0
        %2086 = vmatpush1.msra.mxu0 0.0
        %2087 = vmatprep.subr.mxu0 0.0
        %2088 = vmatpush1.msra.mxu0 0.0
        %2089 = vmatprep.subr.mxu0 0.0
        %2090 = vmatpush1.msra.mxu0 0.0
        %2091 = vmatprep.subr.mxu0 0.0
        %2092 = vmatpush1.msra.mxu0 0.0
        %2093 = vmatprep.subr.mxu0 0.0
        %2094 = vmatpush1.msra.mxu0 0.0
        %2095 = vmatprep.subr.mxu0 0.0
        %2096 = vmatpush1.msra.mxu0 0.0
        %2097 = vmatprep.subr.mxu0 0.0
        %2098 = vmatpush1.msra.mxu0 0.0
        %2099 = vmatprep.mubr.f32.mxu0 0.0
        %2100 = vmatmul.mubr.f32.gmra.mrb[0].mxu0 %v2033
        %v2101 = vpop.f32.mrb[0].mxu0
        %v2102 = vadd.f32 0.0, %v2101
        %v2103 = vpop.f32.mrb[0].mxu0
        %2104 = vdwg.mxu0
        %2105 = vrot.lane.b32.xlu0 %v854, 120
        %v2106 = vpop.permute.xlu0 %2105
        %v2109 = vsel %vm1560, %v1647, 0
        %2111 = vmatprep.subr.mxu0 0.0
        %2112 = vmatpush1.msra.mxu0 %v2106
        %2113 = vmatprep.subr.mxu0 0.0
        %2114 = vmatpush1.msra.mxu0 0.0
        %2115 = vmatprep.subr.mxu0 0.0
        %2116 = vmatpush1.msra.mxu0 0.0
        %2117 = vmatprep.subr.mxu0 0.0
        %2118 = vmatpush1.msra.mxu0 0.0
        %2119 = vmatprep.subr.mxu0 0.0
        %2120 = vmatpush1.msra.mxu0 0.0
        %2121 = vmatprep.subr.mxu0 0.0
        %2122 = vmatpush1.msra.mxu0 0.0
        %2123 = vmatprep.subr.mxu0 0.0
        %2124 = vmatpush1.msra.mxu0 0.0
        %2125 = vmatprep.subr.mxu0 0.0
        %2126 = vmatpush1.msra.mxu0 0.0
        %2127 = vmatprep.subr.mxu0 0.0
        %2128 = vmatpush1.msra.mxu0 0.0
        %2129 = vmatprep.subr.mxu0 0.0
        %2130 = vmatpush1.msra.mxu0 0.0
        %2131 = vmatprep.subr.mxu0 0.0
        %2132 = vmatpush1.msra.mxu0 0.0
        %2133 = vmatprep.subr.mxu0 0.0
        %2134 = vmatpush1.msra.mxu0 0.0
        %2135 = vmatprep.subr.mxu0 0.0
        %2136 = vmatpush1.msra.mxu0 0.0
        %2137 = vmatprep.subr.mxu0 0.0
        %2138 = vmatpush1.msra.mxu0 0.0
        %2139 = vmatprep.subr.mxu0 0.0
        %2140 = vmatpush1.msra.mxu0 0.0
        %2141 = vmatprep.subr.mxu0 0.0
        %2142 = vmatpush1.msra.mxu0 0.0
        %2143 = vmatprep.subr.mxu0 0.0
        %2144 = vmatpush1.msra.mxu0 0.0
        %2145 = vmatprep.subr.mxu0 0.0
        %2146 = vmatpush1.msra.mxu0 0.0
        %2147 = vmatprep.subr.mxu0 0.0
        %2148 = vmatpush1.msra.mxu0 0.0
        %2149 = vmatprep.subr.mxu0 0.0
        %2150 = vmatpush1.msra.mxu0 0.0
        %2151 = vmatprep.subr.mxu0 0.0
        %2152 = vmatpush1.msra.mxu0 0.0
        %2153 = vmatprep.subr.mxu0 0.0
        %2154 = vmatpush1.msra.mxu0 0.0
        %2155 = vmatprep.subr.mxu0 0.0
        %2156 = vmatpush1.msra.mxu0 0.0
        %2157 = vmatprep.subr.mxu0 0.0
        %2158 = vmatpush1.msra.mxu0 0.0
        %2159 = vmatprep.subr.mxu0 0.0
        %2160 = vmatpush1.msra.mxu0 0.0
        %2161 = vmatprep.subr.mxu0 0.0
        %2162 = vmatpush1.msra.mxu0 0.0
        %2163 = vmatprep.subr.mxu0 0.0
        %2164 = vmatpush1.msra.mxu0 0.0
        %2165 = vmatprep.subr.mxu0 0.0
        %2166 = vmatpush1.msra.mxu0 0.0
        %2167 = vmatprep.subr.mxu0 0.0
        %2168 = vmatpush1.msra.mxu0 0.0
        %2169 = vmatprep.subr.mxu0 0.0
        %2170 = vmatpush1.msra.mxu0 0.0
        %2171 = vmatprep.subr.mxu0 0.0
        %2172 = vmatpush1.msra.mxu0 0.0
        %2173 = vmatprep.subr.mxu0 0.0
        %2174 = vmatpush1.msra.mxu0 0.0
        %2175 = vmatprep.mubr.f32.mxu0 0.0
        %2176 = vmatmul.mubr.f32.gmra.mrb[0].mxu0 %v2109
        %v2177 = vpop.f32.mrb[0].mxu0
        %v2178 = vadd.f32 0.0, %v2177
        %v2179 = vpop.f32.mrb[0].mxu0
        %2180 = vdwg.mxu0
        %2181 = vrot.lane.b32.xlu0 %v924, 120
        %v2182 = vpop.permute.xlu0 %2181
        %v2185 = vsel %vm1560, %v1648, 0
        %2187 = vmatprep.subr.mxu0 0.0
        %2188 = vmatpush1.msra.mxu0 %v2182
        %2189 = vmatprep.subr.mxu0 0.0
        %2190 = vmatpush1.msra.mxu0 0.0
        %2191 = vmatprep.subr.mxu0 0.0
        %2192 = vmatpush1.msra.mxu0 0.0
        %2193 = vmatprep.subr.mxu0 0.0
        %2194 = vmatpush1.msra.mxu0 0.0
        %2195 = vmatprep.subr.mxu0 0.0
        %2196 = vmatpush1.msra.mxu0 0.0
        %2197 = vmatprep.subr.mxu0 0.0
        %2198 = vmatpush1.msra.mxu0 0.0
        %2199 = vmatprep.subr.mxu0 0.0
        %2200 = vmatpush1.msra.mxu0 0.0
        %2201 = vmatprep.subr.mxu0 0.0
        %2202 = vmatpush1.msra.mxu0 0.0
        %2203 = vmatprep.subr.mxu0 0.0
        %2204 = vmatpush1.msra.mxu0 0.0
        %2205 = vmatprep.subr.mxu0 0.0
        %2206 = vmatpush1.msra.mxu0 0.0
        %2207 = vmatprep.subr.mxu0 0.0
        %2208 = vmatpush1.msra.mxu0 0.0
        %2209 = vmatprep.subr.mxu0 0.0
        %2210 = vmatpush1.msra.mxu0 0.0
        %2211 = vmatprep.subr.mxu0 0.0
        %2212 = vmatpush1.msra.mxu0 0.0
        %2213 = vmatprep.subr.mxu0 0.0
        %2214 = vmatpush1.msra.mxu0 0.0
        %2215 = vmatprep.subr.mxu0 0.0
        %2216 = vmatpush1.msra.mxu0 0.0
        %2217 = vmatprep.subr.mxu0 0.0
        %2218 = vmatpush1.msra.mxu0 0.0
        %2219 = vmatprep.subr.mxu0 0.0
        %2220 = vmatpush1.msra.mxu0 0.0
        %2221 = vmatprep.subr.mxu0 0.0
        %2222 = vmatpush1.msra.mxu0 0.0
        %2223 = vmatprep.subr.mxu0 0.0
        %2224 = vmatpush1.msra.mxu0 0.0
        %2225 = vmatprep.subr.mxu0 0.0
        %2226 = vmatpush1.msra.mxu0 0.0
        %2227 = vmatprep.subr.mxu0 0.0
        %2228 = vmatpush1.msra.mxu0 0.0
        %2229 = vmatprep.subr.mxu0 0.0
        %2230 = vmatpush1.msra.mxu0 0.0
        %2231 = vmatprep.subr.mxu0 0.0
        %2232 = vmatpush1.msra.mxu0 0.0
        %2233 = vmatprep.subr.mxu0 0.0
        %2234 = vmatpush1.msra.mxu0 0.0
        %2235 = vmatprep.subr.mxu0 0.0
        %2236 = vmatpush1.msra.mxu0 0.0
        %2237 = vmatprep.subr.mxu0 0.0
        %2238 = vmatpush1.msra.mxu0 0.0
        %2239 = vmatprep.subr.mxu0 0.0
        %2240 = vmatpush1.msra.mxu0 0.0
        %2241 = vmatprep.subr.mxu0 0.0
        %2242 = vmatpush1.msra.mxu0 0.0
        %2243 = vmatprep.subr.mxu0 0.0
        %2244 = vmatpush1.msra.mxu0 0.0
        %2245 = vmatprep.subr.mxu0 0.0
        %2246 = vmatpush1.msra.mxu0 0.0
        %2247 = vmatprep.subr.mxu0 0.0
        %2248 = vmatpush1.msra.mxu0 0.0
        %2249 = vmatprep.subr.mxu0 0.0
        %2250 = vmatpush1.msra.mxu0 0.0
        %2251 = vmatprep.mubr.f32.mxu0 0.0
        %2252 = vmatmul.mubr.f32.gmra.mrb[0].mxu0 %v2185
        %v2253 = vpop.f32.mrb[0].mxu0
        %v2254 = vadd.f32 0.0, %v2253
        %v2255 = vpop.f32.mrb[0].mxu0
        %2256 = vdwg.mxu0
        %v2257 = vld [vmem:[%s3] sm:$0xf]
        %v2258 = vld [vmem:[%s3 + $0x4] sm:$0xf]
        %v2259 = vld [vmem:[%s3 + $0x8] sm:$0xf]
        %v2260 = vld [vmem:[%s3 + $0xc] sm:$0xf]
        %v2261 = vld [vmem:[%s3 + $0x10] sm:$0xf]
        %v2262 = vld [vmem:[%s3 + $0x14] sm:$0xf]
        %v2263 = vld [vmem:[%s3 + $0x18] sm:$0xf]
        %v2264 = vld [vmem:[%s3 + $0x1c] sm:$0xf]
        %v2266 = vsel %vm938, %v1722, 0
        %vm2268 = vcmask 1043456
        %v2270 = vsel %vm2268, %v2257, 0
        %2272 = vmatprep.subr.mxu0 0.0
        %2273 = vmatpush1.msra.mxu0 %v2270
        %2274 = vmatprep.subr.mxu0 0.0
        %2275 = vmatpush1.msra.mxu0 0.0
        %2276 = vmatprep.subr.mxu0 0.0
        %2277 = vmatpush1.msra.mxu0 0.0
        %2278 = vmatprep.subr.mxu0 0.0
        %2279 = vmatpush1.msra.mxu0 0.0
        %2280 = vmatprep.subr.mxu0 0.0
        %2281 = vmatpush1.msra.mxu0 0.0
        %2282 = vmatprep.subr.mxu0 0.0
        %2283 = vmatpush1.msra.mxu0 0.0
        %2284 = vmatprep.subr.mxu0 0.0
        %2285 = vmatpush1.msra.mxu0 0.0
        %2286 = vmatprep.subr.mxu0 0.0
        %2287 = vmatpush1.msra.mxu0 0.0
        %2288 = vmatprep.subr.mxu0 0.0
        %2289 = vmatpush1.msra.mxu0 0.0
        %2290 = vmatprep.subr.mxu0 0.0
        %2291 = vmatpush1.msra.mxu0 0.0
        %2292 = vmatprep.subr.mxu0 0.0
        %2293 = vmatpush1.msra.mxu0 0.0
        %2294 = vmatprep.subr.mxu0 0.0
        %2295 = vmatpush1.msra.mxu0 0.0
        %2296 = vmatprep.subr.mxu0 0.0
        %2297 = vmatpush1.msra.mxu0 0.0
        %2298 = vmatprep.subr.mxu0 0.0
        %2299 = vmatpush1.msra.mxu0 0.0
        %2300 = vmatprep.subr.mxu0 0.0
        %2301 = vmatpush1.msra.mxu0 0.0
        %2302 = vmatprep.subr.mxu0 0.0
        %2303 = vmatpush1.msra.mxu0 0.0
        %2304 = vmatprep.subr.mxu0 0.0
        %2305 = vmatpush1.msra.mxu0 0.0
        %2306 = vmatprep.subr.mxu0 0.0
        %2307 = vmatpush1.msra.mxu0 0.0
        %2308 = vmatprep.subr.mxu0 0.0
        %2309 = vmatpush1.msra.mxu0 0.0
        %2310 = vmatprep.subr.mxu0 0.0
        %2311 = vmatpush1.msra.mxu0 0.0
        %2312 = vmatprep.subr.mxu0 0.0
        %2313 = vmatpush1.msra.mxu0 0.0
        %2314 = vmatprep.subr.mxu0 0.0
        %2315 = vmatpush1.msra.mxu0 0.0
        %2316 = vmatprep.subr.mxu0 0.0
        %2317 = vmatpush1.msra.mxu0 0.0
        %2318 = vmatprep.subr.mxu0 0.0
        %2319 = vmatpush1.msra.mxu0 0.0
        %2320 = vmatprep.subr.mxu0 0.0
        %2321 = vmatpush1.msra.mxu0 0.0
        %2322 = vmatprep.subr.mxu0 0.0
        %2323 = vmatpush1.msra.mxu0 0.0
        %2324 = vmatprep.subr.mxu0 0.0
        %2325 = vmatpush1.msra.mxu0 0.0
        %2326 = vmatprep.subr.mxu0 0.0
        %2327 = vmatpush1.msra.mxu0 0.0
        %2328 = vmatprep.subr.mxu0 0.0
        %2329 = vmatpush1.msra.mxu0 0.0
        %2330 = vmatprep.subr.mxu0 0.0
        %2331 = vmatpush1.msra.mxu0 0.0
        %2332 = vmatprep.subr.mxu0 0.0
        %2333 = vmatpush1.msra.mxu0 0.0
        %2334 = vmatprep.subr.mxu0 0.0
        %2335 = vmatpush1.msra.mxu0 0.0
        %2336 = vmatprep.mubr.f32.mxu0 0.0
        %2337 = vmatmul.mubr.f32.gmra.mrb[0].mxu0 %v2266
        %v2338 = vpop.f32.mrb[0].mxu0
        %v2339 = vadd.f32 0.0, %v2338
        %v2340 = vpop.f32.mrb[0].mxu0
        %2341 = vdwg.mxu0
        %v2343 = vsel %vm938, %v1798, 0
        %v2346 = vsel %vm2268, %v2258, 0
        %2348 = vmatprep.subr.mxu0 0.0
        %2349 = vmatpush1.msra.mxu0 %v2346
        %2350 = vmatprep.subr.mxu0 0.0
        %2351 = vmatpush1.msra.mxu0 0.0
        %2352 = vmatprep.subr.mxu0 0.0
        %2353 = vmatpush1.msra.mxu0 0.0
        %2354 = vmatprep.subr.mxu0 0.0
        %2355 = vmatpush1.msra.mxu0 0.0
        %2356 = vmatprep.subr.mxu0 0.0
        %2357 = vmatpush1.msra.mxu0 0.0
        %2358 = vmatprep.subr.mxu0 0.0
        %2359 = vmatpush1.msra.mxu0 0.0
        %2360 = vmatprep.subr.mxu0 0.0
        %2361 = vmatpush1.msra.mxu0 0.0
        %2362 = vmatprep.subr.mxu0 0.0
        %2363 = vmatpush1.msra.mxu0 0.0
        %2364 = vmatprep.subr.mxu0 0.0
        %2365 = vmatpush1.msra.mxu0 0.0
        %2366 = vmatprep.subr.mxu0 0.0
        %2367 = vmatpush1.msra.mxu0 0.0
        %2368 = vmatprep.subr.mxu0 0.0
        %2369 = vmatpush1.msra.mxu0 0.0
        %2370 = vmatprep.subr.mxu0 0.0
        %2371 = vmatpush1.msra.mxu0 0.0
        %2372 = vmatprep.subr.mxu0 0.0
        %2373 = vmatpush1.msra.mxu0 0.0
        %2374 = vmatprep.subr.mxu0 0.0
        %2375 = vmatpush1.msra.mxu0 0.0
        %2376 = vmatprep.subr.mxu0 0.0
        %2377 = vmatpush1.msra.mxu0 0.0
        %2378 = vmatprep.subr.mxu0 0.0
        %2379 = vmatpush1.msra.mxu0 0.0
        %2380 = vmatprep.subr.mxu0 0.0
        %2381 = vmatpush1.msra.mxu0 0.0
        %2382 = vmatprep.subr.mxu0 0.0
        %2383 = vmatpush1.msra.mxu0 0.0
        %2384 = vmatprep.subr.mxu0 0.0
        %2385 = vmatpush1.msra.mxu0 0.0
        %2386 = vmatprep.subr.mxu0 0.0
        %2387 = vmatpush1.msra.mxu0 0.0
        %2388 = vmatprep.subr.mxu0 0.0
        %2389 = vmatpush1.msra.mxu0 0.0
        %2390 = vmatprep.subr.mxu0 0.0
        %2391 = vmatpush1.msra.mxu0 0.0
        %2392 = vmatprep.subr.mxu0 0.0
        %2393 = vmatpush1.msra.mxu0 0.0
        %2394 = vmatprep.subr.mxu0 0.0
        %2395 = vmatpush1.msra.mxu0 0.0
        %2396 = vmatprep.subr.mxu0 0.0
        %2397 = vmatpush1.msra.mxu0 0.0
        %2398 = vmatprep.subr.mxu0 0.0
        %2399 = vmatpush1.msra.mxu0 0.0
        %2400 = vmatprep.subr.mxu0 0.0
        %2401 = vmatpush1.msra.mxu0 0.0
        %2402 = vmatprep.subr.mxu0 0.0
        %2403 = vmatpush1.msra.mxu0 0.0
        %2404 = vmatprep.subr.mxu0 0.0
        %2405 = vmatpush1.msra.mxu0 0.0
        %2406 = vmatprep.subr.mxu0 0.0
        %2407 = vmatpush1.msra.mxu0 0.0
        %2408 = vmatprep.subr.mxu0 0.0
        %2409 = vmatpush1.msra.mxu0 0.0
        %2410 = vmatprep.subr.mxu0 0.0
        %2411 = vmatpush1.msra.mxu0 0.0
        %2412 = vmatprep.mubr.f32.mxu0 0.0
        %2413 = vmatmul.mubr.f32.gmra.mrb[0].mxu0 %v2343
        %v2414 = vpop.f32.mrb[0].mxu0
        %v2415 = vadd.f32 0.0, %v2414
        %v2416 = vpop.f32.mrb[0].mxu0
        %2417 = vdwg.mxu0
        %v2419 = vsel %vm938, %v1874, 0
        %v2422 = vsel %vm2268, %v2259, 0
        %2424 = vmatprep.subr.mxu0 0.0
        %2425 = vmatpush1.msra.mxu0 %v2422
        %2426 = vmatprep.subr.mxu0 0.0
        %2427 = vmatpush1.msra.mxu0 0.0
        %2428 = vmatprep.subr.mxu0 0.0
        %2429 = vmatpush1.msra.mxu0 0.0
        %2430 = vmatprep.subr.mxu0 0.0
        %2431 = vmatpush1.msra.mxu0 0.0
        %2432 = vmatprep.subr.mxu0 0.0
        %2433 = vmatpush1.msra.mxu0 0.0
        %2434 = vmatprep.subr.mxu0 0.0
        %2435 = vmatpush1.msra.mxu0 0.0
        %2436 = vmatprep.subr.mxu0 0.0
        %2437 = vmatpush1.msra.mxu0 0.0
        %2438 = vmatprep.subr.mxu0 0.0
        %2439 = vmatpush1.msra.mxu0 0.0
        %2440 = vmatprep.subr.mxu0 0.0
        %2441 = vmatpush1.msra.mxu0 0.0
        %2442 = vmatprep.subr.mxu0 0.0
        %2443 = vmatpush1.msra.mxu0 0.0
        %2444 = vmatprep.subr.mxu0 0.0
        %2445 = vmatpush1.msra.mxu0 0.0
        %2446 = vmatprep.subr.mxu0 0.0
        %2447 = vmatpush1.msra.mxu0 0.0
        %2448 = vmatprep.subr.mxu0 0.0
        %2449 = vmatpush1.msra.mxu0 0.0
        %2450 = vmatprep.subr.mxu0 0.0
        %2451 = vmatpush1.msra.mxu0 0.0
        %2452 = vmatprep.subr.mxu0 0.0
        %2453 = vmatpush1.msra.mxu0 0.0
        %2454 = vmatprep.subr.mxu0 0.0
        %2455 = vmatpush1.msra.mxu0 0.0
        %2456 = vmatprep.subr.mxu0 0.0
        %2457 = vmatpush1.msra.mxu0 0.0
        %2458 = vmatprep.subr.mxu0 0.0
        %2459 = vmatpush1.msra.mxu0 0.0
        %2460 = vmatprep.subr.mxu0 0.0
        %2461 = vmatpush1.msra.mxu0 0.0
        %2462 = vmatprep.subr.mxu0 0.0
        %2463 = vmatpush1.msra.mxu0 0.0
        %2464 = vmatprep.subr.mxu0 0.0
        %2465 = vmatpush1.msra.mxu0 0.0
        %2466 = vmatprep.subr.mxu0 0.0
        %2467 = vmatpush1.msra.mxu0 0.0
        %2468 = vmatprep.subr.mxu0 0.0
        %2469 = vmatpush1.msra.mxu0 0.0
        %2470 = vmatprep.subr.mxu0 0.0
        %2471 = vmatpush1.msra.mxu0 0.0
        %2472 = vmatprep.subr.mxu0 0.0
        %2473 = vmatpush1.msra.mxu0 0.0
        %2474 = vmatprep.subr.mxu0 0.0
        %2475 = vmatpush1.msra.mxu0 0.0
        %2476 = vmatprep.subr.mxu0 0.0
        %2477 = vmatpush1.msra.mxu0 0.0
        %2478 = vmatprep.subr.mxu0 0.0
        %2479 = vmatpush1.msra.mxu0 0.0
        %2480 = vmatprep.subr.mxu0 0.0
        %2481 = vmatpush1.msra.mxu0 0.0
        %2482 = vmatprep.subr.mxu0 0.0
        %2483 = vmatpush1.msra.mxu0 0.0
        %2484 = vmatprep.subr.mxu0 0.0
        %2485 = vmatpush1.msra.mxu0 0.0
        %2486 = vmatprep.subr.mxu0 0.0
        %2487 = vmatpush1.msra.mxu0 0.0
        %2488 = vmatprep.mubr.f32.mxu0 0.0
        %2489 = vmatmul.mubr.f32.gmra.mrb[0].mxu0 %v2419
        %v2490 = vpop.f32.mrb[0].mxu0
        %v2491 = vadd.f32 0.0, %v2490
        %v2492 = vpop.f32.mrb[0].mxu0
        %2493 = vdwg.mxu0
        %v2495 = vsel %vm938, %v1950, 0
        %v2498 = vsel %vm2268, %v2260, 0
        %2500 = vmatprep.subr.mxu0 0.0
        %2501 = vmatpush1.msra.mxu0 %v2498
        %2502 = vmatprep.subr.mxu0 0.0
        %2503 = vmatpush1.msra.mxu0 0.0
        %2504 = vmatprep.subr.mxu0 0.0
        %2505 = vmatpush1.msra.mxu0 0.0
        %2506 = vmatprep.subr.mxu0 0.0
        %2507 = vmatpush1.msra.mxu0 0.0
        %2508 = vmatprep.subr.mxu0 0.0
        %2509 = vmatpush1.msra.mxu0 0.0
        %2510 = vmatprep.subr.mxu0 0.0
        %2511 = vmatpush1.msra.mxu0 0.0
        %2512 = vmatprep.subr.mxu0 0.0
        %2513 = vmatpush1.msra.mxu0 0.0
        %2514 = vmatprep.subr.mxu0 0.0
        %2515 = vmatpush1.msra.mxu0 0.0
        %2516 = vmatprep.subr.mxu0 0.0
        %2517 = vmatpush1.msra.mxu0 0.0
        %2518 = vmatprep.subr.mxu0 0.0
        %2519 = vmatpush1.msra.mxu0 0.0
        %2520 = vmatprep.subr.mxu0 0.0
        %2521 = vmatpush1.msra.mxu0 0.0
        %2522 = vmatprep.subr.mxu0 0.0
        %2523 = vmatpush1.msra.mxu0 0.0
        %2524 = vmatprep.subr.mxu0 0.0
        %2525 = vmatpush1.msra.mxu0 0.0
        %2526 = vmatprep.subr.mxu0 0.0
        %2527 = vmatpush1.msra.mxu0 0.0
        %2528 = vmatprep.subr.mxu0 0.0
        %2529 = vmatpush1.msra.mxu0 0.0
        %2530 = vmatprep.subr.mxu0 0.0
        %2531 = vmatpush1.msra.mxu0 0.0
        %2532 = vmatprep.subr.mxu0 0.0
        %2533 = vmatpush1.msra.mxu0 0.0
        %2534 = vmatprep.subr.mxu0 0.0
        %2535 = vmatpush1.msra.mxu0 0.0
        %2536 = vmatprep.subr.mxu0 0.0
        %2537 = vmatpush1.msra.mxu0 0.0
        %2538 = vmatprep.subr.mxu0 0.0
        %2539 = vmatpush1.msra.mxu0 0.0
        %2540 = vmatprep.subr.mxu0 0.0
        %2541 = vmatpush1.msra.mxu0 0.0
        %2542 = vmatprep.subr.mxu0 0.0
        %2543 = vmatpush1.msra.mxu0 0.0
        %2544 = vmatprep.subr.mxu0 0.0
        %2545 = vmatpush1.msra.mxu0 0.0
        %2546 = vmatprep.subr.mxu0 0.0
        %2547 = vmatpush1.msra.mxu0 0.0
        %2548 = vmatprep.subr.mxu0 0.0
        %2549 = vmatpush1.msra.mxu0 0.0
        %2550 = vmatprep.subr.mxu0 0.0
        %2551 = vmatpush1.msra.mxu0 0.0
        %2552 = vmatprep.subr.mxu0 0.0
        %2553 = vmatpush1.msra.mxu0 0.0
        %2554 = vmatprep.subr.mxu0 0.0
        %2555 = vmatpush1.msra.mxu0 0.0
        %2556 = vmatprep.subr.mxu0 0.0
        %2557 = vmatpush1.msra.mxu0 0.0
        %2558 = vmatprep.subr.mxu0 0.0
        %2559 = vmatpush1.msra.mxu0 0.0
        %2560 = vmatprep.subr.mxu0 0.0
        %2561 = vmatpush1.msra.mxu0 0.0
        %2562 = vmatprep.subr.mxu0 0.0
        %2563 = vmatpush1.msra.mxu0 0.0
        %2564 = vmatprep.mubr.f32.mxu0 0.0
        %2565 = vmatmul.mubr.f32.gmra.mrb[0].mxu0 %v2495
        %v2566 = vpop.f32.mrb[0].mxu0
        %v2567 = vadd.f32 0.0, %v2566
        %v2568 = vpop.f32.mrb[0].mxu0
        %2569 = vdwg.mxu0
        %v2571 = vsel %vm938, %v2026, 0
        %v2574 = vsel %vm2268, %v2261, 0
        %2576 = vmatprep.subr.mxu0 0.0
        %2577 = vmatpush1.msra.mxu0 %v2574
        %2578 = vmatprep.subr.mxu0 0.0
        %2579 = vmatpush1.msra.mxu0 0.0
        %2580 = vmatprep.subr.mxu0 0.0
        %2581 = vmatpush1.msra.mxu0 0.0
        %2582 = vmatprep.subr.mxu0 0.0
        %2583 = vmatpush1.msra.mxu0 0.0
        %2584 = vmatprep.subr.mxu0 0.0
        %2585 = vmatpush1.msra.mxu0 0.0
        %2586 = vmatprep.subr.mxu0 0.0
        %2587 = vmatpush1.msra.mxu0 0.0
        %2588 = vmatprep.subr.mxu0 0.0
        %2589 = vmatpush1.msra.mxu0 0.0
        %2590 = vmatprep.subr.mxu0 0.0
        %2591 = vmatpush1.msra.mxu0 0.0
        %2592 = vmatprep.subr.mxu0 0.0
        %2593 = vmatpush1.msra.mxu0 0.0
        %2594 = vmatprep.subr.mxu0 0.0
        %2595 = vmatpush1.msra.mxu0 0.0
        %2596 = vmatprep.subr.mxu0 0.0
        %2597 = vmatpush1.msra.mxu0 0.0
        %2598 = vmatprep.subr.mxu0 0.0
        %2599 = vmatpush1.msra.mxu0 0.0
        %2600 = vmatprep.subr.mxu0 0.0
        %2601 = vmatpush1.msra.mxu0 0.0
        %2602 = vmatprep.subr.mxu0 0.0
        %2603 = vmatpush1.msra.mxu0 0.0
        %2604 = vmatprep.subr.mxu0 0.0
        %2605 = vmatpush1.msra.mxu0 0.0
        %2606 = vmatprep.subr.mxu0 0.0
        %2607 = vmatpush1.msra.mxu0 0.0
        %2608 = vmatprep.subr.mxu0 0.0
        %2609 = vmatpush1.msra.mxu0 0.0
        %2610 = vmatprep.subr.mxu0 0.0
        %2611 = vmatpush1.msra.mxu0 0.0
        %2612 = vmatprep.subr.mxu0 0.0
        %2613 = vmatpush1.msra.mxu0 0.0
        %2614 = vmatprep.subr.mxu0 0.0
        %2615 = vmatpush1.msra.mxu0 0.0
        %2616 = vmatprep.subr.mxu0 0.0
        %2617 = vmatpush1.msra.mxu0 0.0
        %2618 = vmatprep.subr.mxu0 0.0
        %2619 = vmatpush1.msra.mxu0 0.0
        %2620 = vmatprep.subr.mxu0 0.0
        %2621 = vmatpush1.msra.mxu0 0.0
        %2622 = vmatprep.subr.mxu0 0.0
        %2623 = vmatpush1.msra.mxu0 0.0
        %2624 = vmatprep.subr.mxu0 0.0
        %2625 = vmatpush1.msra.mxu0 0.0
        %2626 = vmatprep.subr.mxu0 0.0
        %2627 = vmatpush1.msra.mxu0 0.0
        %2628 = vmatprep.subr.mxu0 0.0
        %2629 = vmatpush1.msra.mxu0 0.0
        %2630 = vmatprep.subr.mxu0 0.0
        %2631 = vmatpush1.msra.mxu0 0.0
        %2632 = vmatprep.subr.mxu0 0.0
        %2633 = vmatpush1.msra.mxu0 0.0
        %2634 = vmatprep.subr.mxu0 0.0
        %2635 = vmatpush1.msra.mxu0 0.0
        %2636 = vmatprep.subr.mxu0 0.0
        %2637 = vmatpush1.msra.mxu0 0.0
        %2638 = vmatprep.subr.mxu0 0.0
        %2639 = vmatpush1.msra.mxu0 0.0
        %2640 = vmatprep.mubr.f32.mxu0 0.0
        %2641 = vmatmul.mubr.f32.gmra.mrb[0].mxu0 %v2571
        %v2642 = vpop.f32.mrb[0].mxu0
        %v2643 = vadd.f32 0.0, %v2642
        %v2644 = vpop.f32.mrb[0].mxu0
        %2645 = vdwg.mxu0
        %v2647 = vsel %vm938, %v2102, 0
        %v2650 = vsel %vm2268, %v2262, 0
        %2652 = vmatprep.subr.mxu0 0.0
        %2653 = vmatpush1.msra.mxu0 %v2650
        %2654 = vmatprep.subr.mxu0 0.0
        %2655 = vmatpush1.msra.mxu0 0.0
        %2656 = vmatprep.subr.mxu0 0.0
        %2657 = vmatpush1.msra.mxu0 0.0
        %2658 = vmatprep.subr.mxu0 0.0
        %2659 = vmatpush1.msra.mxu0 0.0
        %2660 = vmatprep.subr.mxu0 0.0
        %2661 = vmatpush1.msra.mxu0 0.0
        %2662 = vmatprep.subr.mxu0 0.0
        %2663 = vmatpush1.msra.mxu0 0.0
        %2664 = vmatprep.subr.mxu0 0.0
        %2665 = vmatpush1.msra.mxu0 0.0
        %2666 = vmatprep.subr.mxu0 0.0
        %2667 = vmatpush1.msra.mxu0 0.0
        %2668 = vmatprep.subr.mxu0 0.0
        %2669 = vmatpush1.msra.mxu0 0.0
        %2670 = vmatprep.subr.mxu0 0.0
        %2671 = vmatpush1.msra.mxu0 0.0
        %2672 = vmatprep.subr.mxu0 0.0
        %2673 = vmatpush1.msra.mxu0 0.0
        %2674 = vmatprep.subr.mxu0 0.0
        %2675 = vmatpush1.msra.mxu0 0.0
        %2676 = vmatprep.subr.mxu0 0.0
        %2677 = vmatpush1.msra.mxu0 0.0
        %2678 = vmatprep.subr.mxu0 0.0
        %2679 = vmatpush1.msra.mxu0 0.0
        %2680 = vmatprep.subr.mxu0 0.0
        %2681 = vmatpush1.msra.mxu0 0.0
        %2682 = vmatprep.subr.mxu0 0.0
        %2683 = vmatpush1.msra.mxu0 0.0
        %2684 = vmatprep.subr.mxu0 0.0
        %2685 = vmatpush1.msra.mxu0 0.0
        %2686 = vmatprep.subr.mxu0 0.0
        %2687 = vmatpush1.msra.mxu0 0.0
        %2688 = vmatprep.subr.mxu0 0.0
        %2689 = vmatpush1.msra.mxu0 0.0
        %2690 = vmatprep.subr.mxu0 0.0
        %2691 = vmatpush1.msra.mxu0 0.0
        %2692 = vmatprep.subr.mxu0 0.0
        %2693 = vmatpush1.msra.mxu0 0.0
        %2694 = vmatprep.subr.mxu0 0.0
        %2695 = vmatpush1.msra.mxu0 0.0
        %2696 = vmatprep.subr.mxu0 0.0
        %2697 = vmatpush1.msra.mxu0 0.0
        %2698 = vmatprep.subr.mxu0 0.0
        %2699 = vmatpush1.msra.mxu0 0.0
        %2700 = vmatprep.subr.mxu0 0.0
        %2701 = vmatpush1.msra.mxu0 0.0
        %2702 = vmatprep.subr.mxu0 0.0
        %2703 = vmatpush1.msra.mxu0 0.0
        %2704 = vmatprep.subr.mxu0 0.0
        %2705 = vmatpush1.msra.mxu0 0.0
        %2706 = vmatprep.subr.mxu0 0.0
        %2707 = vmatpush1.msra.mxu0 0.0
        %2708 = vmatprep.subr.mxu0 0.0
        %2709 = vmatpush1.msra.mxu0 0.0
        %2710 = vmatprep.subr.mxu0 0.0
        %2711 = vmatpush1.msra.mxu0 0.0
        %2712 = vmatprep.subr.mxu0 0.0
        %2713 = vmatpush1.msra.mxu0 0.0
        %2714 = vmatprep.subr.mxu0 0.0
        %2715 = vmatpush1.msra.mxu0 0.0
        %2716 = vmatprep.mubr.f32.mxu0 0.0
        %2717 = vmatmul.mubr.f32.gmra.mrb[0].mxu0 %v2647
        %v2718 = vpop.f32.mrb[0].mxu0
        %v2719 = vadd.f32 0.0, %v2718
        %v2720 = vpop.f32.mrb[0].mxu0
        %2721 = vdwg.mxu0
        %v2723 = vsel %vm938, %v2178, 0
        %v2726 = vsel %vm2268, %v2263, 0
        %2728 = vmatprep.subr.mxu0 0.0
        %2729 = vmatpush1.msra.mxu0 %v2726
        %2730 = vmatprep.subr.mxu0 0.0
        %2731 = vmatpush1.msra.mxu0 0.0
        %2732 = vmatprep.subr.mxu0 0.0
        %2733 = vmatpush1.msra.mxu0 0.0
        %2734 = vmatprep.subr.mxu0 0.0
        %2735 = vmatpush1.msra.mxu0 0.0
        %2736 = vmatprep.subr.mxu0 0.0
        %2737 = vmatpush1.msra.mxu0 0.0
        %2738 = vmatprep.subr.mxu0 0.0
        %2739 = vmatpush1.msra.mxu0 0.0
        %2740 = vmatprep.subr.mxu0 0.0
        %2741 = vmatpush1.msra.mxu0 0.0
        %2742 = vmatprep.subr.mxu0 0.0
        %2743 = vmatpush1.msra.mxu0 0.0
        %2744 = vmatprep.subr.mxu0 0.0
        %2745 = vmatpush1.msra.mxu0 0.0
        %2746 = vmatprep.subr.mxu0 0.0
        %2747 = vmatpush1.msra.mxu0 0.0
        %2748 = vmatprep.subr.mxu0 0.0
        %2749 = vmatpush1.msra.mxu0 0.0
        %2750 = vmatprep.subr.mxu0 0.0
        %2751 = vmatpush1.msra.mxu0 0.0
        %2752 = vmatprep.subr.mxu0 0.0
        %2753 = vmatpush1.msra.mxu0 0.0
        %2754 = vmatprep.subr.mxu0 0.0
        %2755 = vmatpush1.msra.mxu0 0.0
        %2756 = vmatprep.subr.mxu0 0.0
        %2757 = vmatpush1.msra.mxu0 0.0
        %2758 = vmatprep.subr.mxu0 0.0
        %2759 = vmatpush1.msra.mxu0 0.0
        %2760 = vmatprep.subr.mxu0 0.0
        %2761 = vmatpush1.msra.mxu0 0.0
        %2762 = vmatprep.subr.mxu0 0.0
        %2763 = vmatpush1.msra.mxu0 0.0
        %2764 = vmatprep.subr.mxu0 0.0
        %2765 = vmatpush1.msra.mxu0 0.0
        %2766 = vmatprep.subr.mxu0 0.0
        %2767 = vmatpush1.msra.mxu0 0.0
        %2768 = vmatprep.subr.mxu0 0.0
        %2769 = vmatpush1.msra.mxu0 0.0
        %2770 = vmatprep.subr.mxu0 0.0
        %2771 = vmatpush1.msra.mxu0 0.0
        %2772 = vmatprep.subr.mxu0 0.0
        %2773 = vmatpush1.msra.mxu0 0.0
        %2774 = vmatprep.subr.mxu0 0.0
        %2775 = vmatpush1.msra.mxu0 0.0
        %2776 = vmatprep.subr.mxu0 0.0
        %2777 = vmatpush1.msra.mxu0 0.0
        %2778 = vmatprep.subr.mxu0 0.0
        %2779 = vmatpush1.msra.mxu0 0.0
        %2780 = vmatprep.subr.mxu0 0.0
        %2781 = vmatpush1.msra.mxu0 0.0
        %2782 = vmatprep.subr.mxu0 0.0
        %2783 = vmatpush1.msra.mxu0 0.0
        %2784 = vmatprep.subr.mxu0 0.0
        %2785 = vmatpush1.msra.mxu0 0.0
        %2786 = vmatprep.subr.mxu0 0.0
        %2787 = vmatpush1.msra.mxu0 0.0
        %2788 = vmatprep.subr.mxu0 0.0
        %2789 = vmatpush1.msra.mxu0 0.0
        %2790 = vmatprep.subr.mxu0 0.0
        %2791 = vmatpush1.msra.mxu0 0.0
        %2792 = vmatprep.mubr.f32.mxu0 0.0
        %2793 = vmatmul.mubr.f32.gmra.mrb[0].mxu0 %v2723
        %v2794 = vpop.f32.mrb[0].mxu0
        %v2795 = vadd.f32 0.0, %v2794
        %v2796 = vpop.f32.mrb[0].mxu0
        %2797 = vdwg.mxu0
        %v2799 = vsel %vm938, %v2254, 0
        %v2802 = vsel %vm2268, %v2264, 0
        %2804 = vmatprep.subr.mxu0 0.0
        %2805 = vmatpush1.msra.mxu0 %v2802
        %2806 = vmatprep.subr.mxu0 0.0
        %2807 = vmatpush1.msra.mxu0 0.0
        %2808 = vmatprep.subr.mxu0 0.0
        %2809 = vmatpush1.msra.mxu0 0.0
        %2810 = vmatprep.subr.mxu0 0.0
        %2811 = vmatpush1.msra.mxu0 0.0
        %2812 = vmatprep.subr.mxu0 0.0
        %2813 = vmatpush1.msra.mxu0 0.0
        %2814 = vmatprep.subr.mxu0 0.0
        %2815 = vmatpush1.msra.mxu0 0.0
        %2816 = vmatprep.subr.mxu0 0.0
        %2817 = vmatpush1.msra.mxu0 0.0
        %2818 = vmatprep.subr.mxu0 0.0
        %2819 = vmatpush1.msra.mxu0 0.0
        %2820 = vmatprep.subr.mxu0 0.0
        %2821 = vmatpush1.msra.mxu0 0.0
        %2822 = vmatprep.subr.mxu0 0.0
        %2823 = vmatpush1.msra.mxu0 0.0
        %2824 = vmatprep.subr.mxu0 0.0
        %2825 = vmatpush1.msra.mxu0 0.0
        %2826 = vmatprep.subr.mxu0 0.0
        %2827 = vmatpush1.msra.mxu0 0.0
        %2828 = vmatprep.subr.mxu0 0.0
        %2829 = vmatpush1.msra.mxu0 0.0
        %2830 = vmatprep.subr.mxu0 0.0
        %2831 = vmatpush1.msra.mxu0 0.0
        %2832 = vmatprep.subr.mxu0 0.0
        %2833 = vmatpush1.msra.mxu0 0.0
        %2834 = vmatprep.subr.mxu0 0.0
        %2835 = vmatpush1.msra.mxu0 0.0
        %2836 = vmatprep.subr.mxu0 0.0
        %2837 = vmatpush1.msra.mxu0 0.0
        %2838 = vmatprep.subr.mxu0 0.0
        %2839 = vmatpush1.msra.mxu0 0.0
        %2840 = vmatprep.subr.mxu0 0.0
        %2841 = vmatpush1.msra.mxu0 0.0
        %2842 = vmatprep.subr.mxu0 0.0
        %2843 = vmatpush1.msra.mxu0 0.0
        %2844 = vmatprep.subr.mxu0 0.0
        %2845 = vmatpush1.msra.mxu0 0.0
        %2846 = vmatprep.subr.mxu0 0.0
        %2847 = vmatpush1.msra.mxu0 0.0
        %2848 = vmatprep.subr.mxu0 0.0
        %2849 = vmatpush1.msra.mxu0 0.0
        %2850 = vmatprep.subr.mxu0 0.0
        %2851 = vmatpush1.msra.mxu0 0.0
        %2852 = vmatprep.subr.mxu0 0.0
        %2853 = vmatpush1.msra.mxu0 0.0
        %2854 = vmatprep.subr.mxu0 0.0
        %2855 = vmatpush1.msra.mxu0 0.0
        %2856 = vmatprep.subr.mxu0 0.0
        %2857 = vmatpush1.msra.mxu0 0.0
        %2858 = vmatprep.subr.mxu0 0.0
        %2859 = vmatpush1.msra.mxu0 0.0
        %2860 = vmatprep.subr.mxu0 0.0
        %2861 = vmatpush1.msra.mxu0 0.0
        %2862 = vmatprep.subr.mxu0 0.0
        %2863 = vmatpush1.msra.mxu0 0.0
        %2864 = vmatprep.subr.mxu0 0.0
        %2865 = vmatpush1.msra.mxu0 0.0
        %2866 = vmatprep.subr.mxu0 0.0
        %2867 = vmatpush1.msra.mxu0 0.0
        %2868 = vmatprep.mubr.f32.mxu0 0.0
        %2869 = vmatmul.mubr.f32.gmra.mrb[0].mxu0 %v2799
        %v2870 = vpop.f32.mrb[0].mxu0
        %v2871 = vadd.f32 0.0, %v2870
        %v2872 = vpop.f32.mrb[0].mxu0
        %2873 = vdwg.mxu0
        %v2874 = vsel %vm363, %v2339, 0.0
        %v2875 = vsel %vm363, %v2415, 0.0
        %v2876 = vadd.f32 %v2874, %v2875
        %v2877 = vsel %vm363, %v2491, 0.0
        %v2878 = vadd.f32 %v2876, %v2877
        %v2879 = vsel %vm363, %v2567, 0.0
        %v2880 = vadd.f32 %v2878, %v2879
        %v2881 = vsel %vm363, %v2643, 0.0
        %v2882 = vadd.f32 %v2880, %v2881
        %v2883 = vsel %vm363, %v2719, 0.0
        %v2884 = vadd.f32 %v2882, %v2883
        %v2885 = vsel %vm363, %v2795, 0.0
        %v2886 = vadd.f32 %v2884, %v2885
        %v2887 = vsel %vm363, %v2871, 0.0
        %v2888 = vadd.f32 %v2886, %v2887
        %v2889 = vld [vmem:[%s4] sm:$0x1]
        %v2891 = vlaneseq
        %v2892 = vshrl.u32 %v2891, 7
        %v2893 = vsub.s32 0, %v2892
        %v2894 = vrot.slane %v2889, %v2893
        %v2896 = vadd.f32 %v2888, %v2894
        %v2897 = vadd.f32 %v274, %v2896
        %v2898 = vld [vmem:[%s5] sm:$0xff]
        %v2899 = vld [vmem:[%s5 + $0x8] sm:$0xff]
        %v2900 = vld [vmem:[%s5 + $0x10] sm:$0xff]
        %v2901 = vld [vmem:[%s5 + $0x18] sm:$0xff]
        %v2903 = vsel %vm363, %v2897, 0
        %2905 = vmatprep.subr.mxu0 0.0
        %2906 = vmatpush1.msra.mxu0 %v2898
        %2907 = vmatprep.subr.mxu0 0.0
        %2908 = vmatpush1.msra.mxu0 %v2899
        %2909 = vmatprep.subr.mxu0 0.0
        %2910 = vmatpush1.msra.mxu0 %v2900
        %2911 = vmatprep.subr.mxu0 0.0
        %2912 = vmatpush1.msra.mxu0 %v2901
        %2913 = vmatprep.subr.mxu0 0.0
        %2914 = vmatpush1.msra.mxu0 0.0
        %2915 = vmatprep.subr.mxu0 0.0
        %2916 = vmatpush1.msra.mxu0 0.0
        %2917 = vmatprep.subr.mxu0 0.0
        %2918 = vmatpush1.msra.mxu0 0.0
        %2919 = vmatprep.subr.mxu0 0.0
        %2920 = vmatpush1.msra.mxu0 0.0
        %2921 = vmatprep.subr.mxu0 0.0
        %2922 = vmatpush1.msra.mxu0 0.0
        %2923 = vmatprep.subr.mxu0 0.0
        %2924 = vmatpush1.msra.mxu0 0.0
        %2925 = vmatprep.subr.mxu0 0.0
        %2926 = vmatpush1.msra.mxu0 0.0
        %2927 = vmatprep.subr.mxu0 0.0
        %2928 = vmatpush1.msra.mxu0 0.0
        %2929 = vmatprep.subr.mxu0 0.0
        %2930 = vmatpush1.msra.mxu0 0.0
        %2931 = vmatprep.subr.mxu0 0.0
        %2932 = vmatpush1.msra.mxu0 0.0
        %2933 = vmatprep.subr.mxu0 0.0
        %2934 = vmatpush1.msra.mxu0 0.0
        %2935 = vmatprep.subr.mxu0 0.0
        %2936 = vmatpush1.msra.mxu0 0.0
        %2937 = vmatprep.subr.mxu0 0.0
        %2938 = vmatpush1.msra.mxu0 0.0
        %2939 = vmatprep.subr.mxu0 0.0
        %2940 = vmatpush1.msra.mxu0 0.0
        %2941 = vmatprep.subr.mxu0 0.0
        %2942 = vmatpush1.msra.mxu0 0.0
        %2943 = vmatprep.subr.mxu0 0.0
        %2944 = vmatpush1.msra.mxu0 0.0
        %2945 = vmatprep.subr.mxu0 0.0
        %2946 = vmatpush1.msra.mxu0 0.0
        %2947 = vmatprep.subr.mxu0 0.0
        %2948 = vmatpush1.msra.mxu0 0.0
        %2949 = vmatprep.subr.mxu0 0.0
        %2950 = vmatpush1.msra.mxu0 0.0
        %2951 = vmatprep.subr.mxu0 0.0
        %2952 = vmatpush1.msra.mxu0 0.0
        %2953 = vmatprep.subr.mxu0 0.0
        %2954 = vmatpush1.msra.mxu0 0.0
        %2955 = vmatprep.subr.mxu0 0.0
        %2956 = vmatpush1.msra.mxu0 0.0
        %2957 = vmatprep.subr.mxu0 0.0
        %2958 = vmatpush1.msra.mxu0 0.0
        %2959 = vmatprep.subr.mxu0 0.0
        %2960 = vmatpush1.msra.mxu0 0.0
        %2961 = vmatprep.subr.mxu0 0.0
        %2962 = vmatpush1.msra.mxu0 0.0
        %2963 = vmatprep.subr.mxu0 0.0
        %2964 = vmatpush1.msra.mxu0 0.0
        %2965 = vmatprep.subr.mxu0 0.0
        %2966 = vmatpush1.msra.mxu0 0.0
        %2967 = vmatprep.subr.mxu0 0.0
        %2968 = vmatpush1.msra.mxu0 0.0
        %2969 = vmatprep.mubr.f32.mxu0 0.0
        %2970 = vmatmul.mubr.f32.gmra.mrb[0].mxu0 %v2903
        %v2971 = vpop.f32.mrb[0].mxu0
        %v2972 = vadd.f32 0.0, %v2971
        %v2973 = vpop.f32.mrb[0].mxu0
        %2974 = vdwg.mxu0
        %v2975 = vadd.f32 %v2897, %v2972
        %v2976 = vld [vmem:[%s6] sm:$0x1]
        %v2978 = vlaneseq
        %v2979 = vshrl.u32 %v2978, 7
        %v2980 = vsub.s32 0, %v2979
        %v2981 = vrot.slane %v2976, %v2980
        %v2983 = vadd.f32 %v2975, %v2981
        %2984 = vst.msk [vmem:[%s269] sm:$0xff] %vm363, %v2983
        %s2985 = sand.u32 %s181, 1
        %s2986 = scalar_lea.sflag [#allocation3], %s2985
        %s2987 = sand.u32 %s181, 1
        %s2988 = smul.addr %s2987, 8
        %s2989 = scalar_lea.vmem [#allocation2], %s2988
        // Predicated region
        $region49: #{tpu_custom_call.1} parent=47 // pred_check
          %p2990 = pneg %p191
        $region50: #{tpu_custom_call.1} parent=47 // pred_check_branch
          %2992 = sbr.rel (%p2990) target = $region52
        $region51: #{tpu_custom_call.1} parent=47 // pred_region
          %s2994 = ssub.s32 128, 128
          %2995 = vsyncadd %s2986, %s2994
          %s2996 = smul.addr %s21, 128
          %s2997 = scalar_lea.hbm %s7, %s2996
          %s2999 = sshll.u32 %s2989, 4
          %s3000 = int_to_ptr.vmem [resolvable:$true] %s2999
          %3002 = dma.vmem_to_hbm [thread:$0]  %s3000, 128, %s2997, %s2986
        $region52: #{tpu_custom_call.1} parent=47 // pred_fallthru
          _
      $region48: #{tpu_custom_call.1} parent=5 // pred_fallthru
        _
      %p3003 = scmp.le.s32.totalorder 2, %s16
      // Predicated region
      $region53: #{tpu_custom_call.1} parent=5 // pred_check
        %p3004 = pneg %p3003
      $region54: #{tpu_custom_call.1} parent=5 // pred_check_branch
        %3006 = sbr.rel (%p3004) target = $region56
      $region55: #{tpu_custom_call.1} parent=5 // pred_region
        %s3007 = ssub.s32 %s16, 2
        // Predicated region
        $region57: #{tpu_custom_call.1} parent=55 // pred_check
          %p3008 = pneg %p197
        $region58: #{tpu_custom_call.1} parent=55 // pred_check_branch
          %3010 = sbr.rel (%p3008) target = $region60
        $region59: #{tpu_custom_call.1} parent=55 // pred_region
          %s3011 = sand.u32 %s182, 1
          %s3012 = scalar_lea.sflag [#allocation3], %s3011
          %s3013 = sand.u32 %s182, 1
          %s3014 = smul.addr %s3013, 8
          %s3015 = scalar_lea.vmem [#allocation2], %s3014
          %3016 = dma.done %s3012, 128
        $region60: #{tpu_custom_call.1} parent=55 // pred_fallthru
          _
      $region56: #{tpu_custom_call.1} parent=5 // pred_fallthru
        _
    $region6: #{tpu_custom_call.1} parent=1 // loop_footer
      %s20 = sadd.s32 1, %s16
    $region7: #{tpu_custom_call.1} parent=1 // loop_footer_branch
      %15 = sbr.rel target = $region3
    $region8: #{tpu_custom_call.1} parent=1 // loop_exit
      _
    %3017 = vsyncpa [#allocation3], 1
    %s3018 = scalar_lea.sflag [#allocation3], 1
    %3019 = vsyncpa %s3018, 1

</llo_original>
